<compile_context>
chip_gen: v7x
topology: tpu7x:2x2x1
jax: 0.10.0
libtpu: 0.0.40
codegen_flags: <defaults>
</compile_context>

<pallas_src>
import functools

import jax
import jax.numpy as jnp
from jax.experimental import pallas as pl
from jax.experimental.pallas import tpu as pltpu

EPS = 1e-5


def build_dilations(layer_size, stack_size):
    return [2 ** l for _ in range(stack_size) for l in range(layer_size)]


# ----------------------------------------------------------------------------
# Pallas kernel: entire ResidualStack in one invocation
# ----------------------------------------------------------------------------
def _fused_stack_kernel(x_ref, w1_ref, w2_ref, pc_ref, o_ref,
                        *, dilations, kernel_size):
    K = kernel_size
    x = x_ref[...].astype(jnp.float32)           # (N, C, L_in)
    w1_all = w1_ref[...]                         # (B, C_out, K*C_in)
    w2_all = w2_ref[...]                         # (B, C_out, C_in)
    pc = pc_ref[...]                             # (B, 6, C, 1): b1,g1,be1,b2,g2,be2
    N = x.shape[0]

    for b, d in enumerate(dilations):            # static unroll over blocks
        L_in_b = x.shape[2]
        L_out = L_in_b - d * (K - 1)
        inv_cnt = 1.0 / float(N * L_out)

        # ---- conv1: dilated Conv1d as ONE contraction over K*C_in ----
        x_cat = jnp.concatenate(
            [x[:, :, k * d: k * d + L_out] for k in range(K)], axis=1)   # (N, K*C, L_out)
        h = jnp.einsum('ok,nkl->nol', w1_all[b], x_cat,
                       preferred_element_type=jnp.float32)               # (N, C, L_out)
        h = h + pc[b, 0][None]                                           # conv1 bias

        # ---- bn1 (training-mode batch stats, single pass) + relu1 ----
        m1 = jnp.sum(h, axis=(0, 2), keepdims=True) * inv_cnt            # (1, C, 1)
        q1 = jnp.sum(h * h, axis=(0, 2), keepdims=True) * inv_cnt
        v1 = jnp.maximum(q1 - m1 * m1, 0.0)                              # biased var
        scale1 = jax.lax.rsqrt(v1 + EPS) * pc[b, 1][None]                # gamma folded
        shift1 = pc[b, 2][None] - m1 * scale1                            # beta folded
        h = jnp.maximum(h * scale1 + shift1, 0.0)

        # ---- conv2: 1x1 Conv1d ----
        h2 = jnp.einsum('oc,ncl->nol', w2_all[b], h,
                        preferred_element_type=jnp.float32)
        h2 = h2 + pc[b, 3][None]

        # ---- bn2 (single pass, folded affine) ----
        m2 = jnp.sum(h2, axis=(0, 2), keepdims=True) * inv_cnt
        q2 = jnp.sum(h2 * h2, axis=(0, 2), keepdims=True) * inv_cnt
        v2 = jnp.maximum(q2 - m2 * m2, 0.0)
        scale2 = jax.lax.rsqrt(v2 + EPS) * pc[b, 4][None]
        shift2 = pc[b, 5][None] - m2 * scale2
        h2 = h2 * scale2 + shift2

        # ---- residual crop + add + relu2 ----
        half = d * (K - 1) // 2                                          # static int
        x = jnp.maximum(h2 + x[:, :, half: half + L_out], 0.0)

    o_ref[...] = x.astype(o_ref.dtype)


def residual_stack_forward(x, packed, dilations, kernel_size):
    N, C, L_in = x.shape
    L_out = L_in - sum(d * (kernel_size - 1) for d in dilations)
    kernel = functools.partial(_fused_stack_kernel,
                               dilations=tuple(dilations),
                               kernel_size=kernel_size)
    vmem = pl.BlockSpec(memory_space=pltpu.MemorySpace.VMEM)
    return pl.pallas_call(
        kernel,
        out_shape=jax.ShapeDtypeStruct((N, C, L_out), jnp.float32),
        in_specs=[vmem, vmem, vmem, vmem],
        out_specs=vmem,
    )(x, packed['w1'], packed['w2'], packed['pc'])


# ----------------------------------------------------------------------------
# Parameter construction / packing
# ----------------------------------------------------------------------------
def init_stack_params(key, layer_size, stack_size, res_channels, kernel_size):
    """Deterministic synthetic parameters (not a checkpoint load)."""
    C, K = res_channels, kernel_size
    blocks = []
    for i, d in enumerate(build_dilations(layer_size, stack_size)):
        ks = jax.random.split(jax.random.fold_in(key, i), 8)
        p = dict(
            w1=(jax.random.normal(ks[0], (K, C, C), jnp.float32)     # (K, C_out, C_in)
                / jnp.sqrt(float(C * K))),
            b1=0.1 * jax.random.normal(ks[1], (C, 1), jnp.float32),
            g1=1.0 + 0.1 * jax.random.normal(ks[2], (C, 1), jnp.float32),
            be1=0.1 * jax.random.normal(ks[3], (C, 1), jnp.float32),
            w2=(jax.random.normal(ks[4], (C, C), jnp.float32)        # (C_out, C_in)
                / jnp.sqrt(float(C))),
            b2=0.1 * jax.random.normal(ks[5], (C, 1), jnp.float32),
            g2=1.0 + 0.1 * jax.random.normal(ks[6], (C, 1), jnp.float32),
            be2=0.1 * jax.random.normal(ks[7], (C, 1), jnp.float32),
        )
        blocks.append((d, p))
    return blocks


def pack_stack_params(blocks, kernel_size):
    """Pack per-block params into 3 arrays for the fused kernel."""
    K = kernel_size
    C = blocks[0][1]['w2'].shape[0]
    # (K, C_out, C_in) -> (C_out, K, C_in) -> (C_out, K*C_in), matching the
    # channel ordering of the in-kernel concatenation of K shifted slices.
    w1 = jnp.stack([jnp.transpose(p['w1'], (1, 0, 2)).reshape(C, K * C)
                    for _, p in blocks])                              # (B, C, K*C)
    w2 = jnp.stack([p['w2'] for _, p in blocks])                      # (B, C, C)
    pc = jnp.stack([jnp.stack([p['b1'], p['g1'], p['be1'],
                               p['b2'], p['g2'], p['be2']])
                    for _, p in blocks])                              # (B, 6, C, 1)
    return dict(w1=w1, w2=w2, pc=pc)


# ----------------------------------------------------------------------------
# Pure-JAX reference (same math, unpacked, two-pass BN) for a sanity check
# ----------------------------------------------------------------------------
def _ref_block(x, p, d, K):
    N, C, L_in = x.shape
    L_out = L_in - d * (K - 1)
    h = jnp.zeros((N, C, L_out), jnp.float32)
    for k in range(K):
        h = h + jnp.einsum('oc,ncl->nol', p['w1'][k], x[:, :, k * d:k * d + L_out])
    h = h + p['b1'][None]
    m1 = jnp.mean(h, axis=(0, 2), keepdims=True)
    v1 = jnp.mean((h - m1) ** 2, axis=(0, 2), keepdims=True)
    h = (h - m1) / jnp.sqrt(v1 + EPS) * p['g1'][None] + p['be1'][None]
    h = jnp.maximum(h, 0.0)
    h2 = jnp.einsum('oc,ncl->nol', p['w2'], h) + p['b2'][None]
    m2 = jnp.mean(h2, axis=(0, 2), keepdims=True)
    v2 = jnp.mean((h2 - m2) ** 2, axis=(0, 2), keepdims=True)
    h2 = (h2 - m2) / jnp.sqrt(v2 + EPS) * p['g2'][None] + p['be2'][None]
    half = d * (K - 1) // 2
    return jnp.maximum(h2 + x[:, :, half:half + L_out], 0.0)


def _ref_forward(x, blocks, K):
    out = x
    for d, p in blocks:
        out = _ref_block(out, p, d, K)
    return out


# ----------------------------------------------------------------------------
if __name__ == "__main__":
    # ResidualStack(layer_size=2, stack_size=2, res_channels=8,
    #               skip_channels=8, kernel_size=3, dropout=0.0)
    layer_size, stack_size = 2, 2
    res_channels, kernel_size = 8, 3
    batch, seq_len = 2, 32

    key = jax.random.PRNGKey(0)
    kx, kp = jax.random.split(key)
    x = jax.random.normal(kx, (batch, res_channels, seq_len), jnp.float32)
    blocks = init_stack_params(kp, layer_size, stack_size, res_channels,
                               kernel_size)
    dilations = build_dilations(layer_size, stack_size)
    packed = pack_stack_params(blocks, kernel_size)

    fwd = jax.jit(lambda xx: residual_stack_forward(xx, packed, dilations,
                                                    kernel_size))
    out = jax.block_until_ready(fwd(x))

    # expected output length: L - sum(dilation*(K-1)) = 32 - (1+2+1+2)*2 = 20
    assert out.shape == (batch, res_channels, 20), out.shape

    ref = jax.block_until_ready(_ref_forward(x, blocks, kernel_size))
    assert jnp.allclose(out, ref, rtol=1e-2, atol=1e-2), \
        float(jnp.max(jnp.abs(out - ref)))

    print("KERNEL_OK")
</pallas_src>

<mosaic_0001>
module attributes {stable_mosaic.version = 11 : i64} {
  func.func @_fused_stack_kernel(%arg0: memref<2x8x32xf32, #tpu.memory_space<vmem>>, %arg1: memref<4x8x24xf32, #tpu.memory_space<vmem>>, %arg2: memref<4x8x8xf32, #tpu.memory_space<vmem>>, %arg3: memref<4x6x8x1xf32, #tpu.memory_space<vmem>>, %arg4: memref<2x8x20xf32, #tpu.memory_space<vmem>>) attributes {dimension_semantics = [], scalar_prefetch = 0 : i64, scratch_operands = 0 : i64, tpu.core_type = #tpu.core_type<tc>} {
    %c0 = arith.constant 0 : index
    %c0_0 = arith.constant 0 : index
    %c0_1 = arith.constant 0 : index
    %0 = vector.load %arg0[%c0, %c0_0, %c0_1] : memref<2x8x32xf32, #tpu.memory_space<vmem>>, vector<2x8x32xf32>
    %c0_2 = arith.constant 0 : index
    %c0_3 = arith.constant 0 : index
    %c0_4 = arith.constant 0 : index
    %1 = vector.load %arg1[%c0_2, %c0_3, %c0_4] : memref<4x8x24xf32, #tpu.memory_space<vmem>>, vector<4x8x24xf32>
    %c0_5 = arith.constant 0 : index
    %c0_6 = arith.constant 0 : index
    %c0_7 = arith.constant 0 : index
    %2 = vector.load %arg2[%c0_5, %c0_6, %c0_7] : memref<4x8x8xf32, #tpu.memory_space<vmem>>, vector<4x8x8xf32>
    %c0_8 = arith.constant 0 : index
    %c0_9 = arith.constant 0 : index
    %c0_10 = arith.constant 0 : index
    %c0_11 = arith.constant 0 : index
    %3 = vector.load %arg3[%c0_8, %c0_9, %c0_10, %c0_11] : memref<4x6x8x1xf32, #tpu.memory_space<vmem>>, vector<4x6x8x1xf32>
    %4 = vector.extract_strided_slice %0 {offsets = [0, 0, 0], sizes = [2, 8, 30], strides = [1, 1, 1]} : vector<2x8x32xf32> to vector<2x8x30xf32>
    %5 = vector.extract_strided_slice %0 {offsets = [0, 0, 1], sizes = [2, 8, 30], strides = [1, 1, 1]} : vector<2x8x32xf32> to vector<2x8x30xf32>
    %6 = vector.extract_strided_slice %0 {offsets = [0, 0, 2], sizes = [2, 8, 30], strides = [1, 1, 1]} : vector<2x8x32xf32> to vector<2x8x30xf32>
    %7 = tpu.concatenate %4, %5, %6 in 1 : vector<2x8x30xf32>, vector<2x8x30xf32>, vector<2x8x30xf32> -> vector<2x24x30xf32>
    %8 = vector.extract_strided_slice %1 {offsets = [0, 0, 0], sizes = [1, 8, 24], strides = [1, 1, 1]} : vector<4x8x24xf32> to vector<1x8x24xf32>
    %9 = vector.shape_cast %8 : vector<1x8x24xf32> to vector<8x24xf32>
    "tpu.trace_start"() <{level = 10 : i32, message = "ok,nkl->nol"}> : () -> ()
    %cst = arith.constant dense<0.000000e+00> : vector<2x30x8xf32>
    %10 = tpu.matmul %7, %9, %cst {dimension_numbers = #tpu.dot_dimension_numbers<[1], [1], [0, 2], [0], [0, 0, 0, 2, 1, 0], [], []>} : vector<2x24x30xf32>, vector<8x24xf32>, vector<2x30x8xf32> -> vector<2x30x8xf32>
    %11 = tpu.transpose %10, [0, 2, 1] : vector<2x30x8xf32> -> vector<2x8x30xf32>
    "tpu.trace_stop"() : () -> ()
    %12 = vector.extract_strided_slice %3 {offsets = [0, 0, 0, 0], sizes = [1, 1, 8, 1], strides = [1, 1, 1, 1]} : vector<4x6x8x1xf32> to vector<1x1x8x1xf32>
    %13 = vector.shape_cast %12 : vector<1x1x8x1xf32> to vector<8x1xf32>
    %14 = vector.shape_cast %13 : vector<8x1xf32> to vector<1x8x1xf32>
    %15 = vector.broadcast %14 : vector<1x8x1xf32> to vector<2x8x30xf32>
    %16 = arith.addf %11, %15 : vector<2x8x30xf32>
    %cst_12 = arith.constant dense<0.000000e+00> : vector<8xf32>
    %17 = vector.multi_reduction <add>, %16, %cst_12 [0, 2] : vector<2x8x30xf32> to vector<8xf32>
    %18 = vector.shape_cast %17 : vector<8xf32> to vector<1x8x1xf32>
    %cst_13 = arith.constant 0.0166666675 : f32
    %19 = vector.broadcast %cst_13 : f32 to vector<1x8x1xf32>
    %20 = arith.mulf %18, %19 : vector<1x8x1xf32>
    %21 = arith.mulf %16, %16 : vector<2x8x30xf32>
    %cst_14 = arith.constant dense<0.000000e+00> : vector<8xf32>
    %22 = vector.multi_reduction <add>, %21, %cst_14 [0, 2] : vector<2x8x30xf32> to vector<8xf32>
    %23 = vector.shape_cast %22 : vector<8xf32> to vector<1x8x1xf32>
    %cst_15 = arith.constant 0.0166666675 : f32
    %24 = vector.broadcast %cst_15 : f32 to vector<1x8x1xf32>
    %25 = arith.mulf %23, %24 : vector<1x8x1xf32>
    %26 = arith.mulf %20, %20 : vector<1x8x1xf32>
    %27 = arith.subf %25, %26 : vector<1x8x1xf32>
    %cst_16 = arith.constant 0.000000e+00 : f32
    %28 = vector.broadcast %cst_16 : f32 to vector<1x8x1xf32>
    %29 = arith.maximumf %27, %28 : vector<1x8x1xf32>
    %cst_17 = arith.constant 9.99999974E-6 : f32
    %30 = vector.broadcast %cst_17 : f32 to vector<1x8x1xf32>
    %31 = arith.addf %29, %30 : vector<1x8x1xf32>
    %32 = math.rsqrt %31 : vector<1x8x1xf32>
    %33 = vector.extract_strided_slice %3 {offsets = [0, 1, 0, 0], sizes = [1, 1, 8, 1], strides = [1, 1, 1, 1]} : vector<4x6x8x1xf32> to vector<1x1x8x1xf32>
    %34 = vector.shape_cast %33 : vector<1x1x8x1xf32> to vector<8x1xf32>
    %35 = vector.shape_cast %34 : vector<8x1xf32> to vector<1x8x1xf32>
    %36 = arith.mulf %32, %35 : vector<1x8x1xf32>
    %37 = vector.extract_strided_slice %3 {offsets = [0, 2, 0, 0], sizes = [1, 1, 8, 1], strides = [1, 1, 1, 1]} : vector<4x6x8x1xf32> to vector<1x1x8x1xf32>
    %38 = vector.shape_cast %37 : vector<1x1x8x1xf32> to vector<8x1xf32>
    %39 = vector.shape_cast %38 : vector<8x1xf32> to vector<1x8x1xf32>
    %40 = arith.mulf %20, %36 : vector<1x8x1xf32>
    %41 = arith.subf %39, %40 : vector<1x8x1xf32>
    %42 = vector.broadcast %36 : vector<1x8x1xf32> to vector<2x8x30xf32>
    %43 = arith.mulf %16, %42 : vector<2x8x30xf32>
    %44 = vector.broadcast %41 : vector<1x8x1xf32> to vector<2x8x30xf32>
    %45 = arith.addf %43, %44 : vector<2x8x30xf32>
    %cst_18 = arith.constant 0.000000e+00 : f32
    %46 = vector.broadcast %cst_18 : f32 to vector<2x8x30xf32>
    %47 = arith.maximumf %45, %46 : vector<2x8x30xf32>
    %48 = vector.extract_strided_slice %2 {offsets = [0, 0, 0], sizes = [1, 8, 8], strides = [1, 1, 1]} : vector<4x8x8xf32> to vector<1x8x8xf32>
    %49 = vector.shape_cast %48 : vector<1x8x8xf32> to vector<8x8xf32>
    "tpu.trace_start"() <{level = 10 : i32, message = "oc,ncl->nol"}> : () -> ()
    %cst_19 = arith.constant dense<0.000000e+00> : vector<2x30x8xf32>
    %50 = tpu.matmul %47, %49, %cst_19 {dimension_numbers = #tpu.dot_dimension_numbers<[1], [1], [0, 2], [0], [0, 0, 0, 2, 1, 0], [], []>} : vector<2x8x30xf32>, vector<8x8xf32>, vector<2x30x8xf32> -> vector<2x30x8xf32>
    %51 = tpu.transpose %50, [0, 2, 1] : vector<2x30x8xf32> -> vector<2x8x30xf32>
    "tpu.trace_stop"() : () -> ()
    %52 = vector.extract_strided_slice %3 {offsets = [0, 3, 0, 0], sizes = [1, 1, 8, 1], strides = [1, 1, 1, 1]} : vector<4x6x8x1xf32> to vector<1x1x8x1xf32>
    %53 = vector.shape_cast %52 : vector<1x1x8x1xf32> to vector<8x1xf32>
    %54 = vector.shape_cast %53 : vector<8x1xf32> to vector<1x8x1xf32>
    %55 = vector.broadcast %54 : vector<1x8x1xf32> to vector<2x8x30xf32>
    %56 = arith.addf %51, %55 : vector<2x8x30xf32>
    %cst_20 = arith.constant dense<0.000000e+00> : vector<8xf32>
    %57 = vector.multi_reduction <add>, %56, %cst_20 [0, 2] : vector<2x8x30xf32> to vector<8xf32>
    %58 = vector.shape_cast %57 : vector<8xf32> to vector<1x8x1xf32>
    %cst_21 = arith.constant 0.0166666675 : f32
    %59 = vector.broadcast %cst_21 : f32 to vector<1x8x1xf32>
    %60 = arith.mulf %58, %59 : vector<1x8x1xf32>
    %61 = arith.mulf %56, %56 : vector<2x8x30xf32>
    %cst_22 = arith.constant dense<0.000000e+00> : vector<8xf32>
    %62 = vector.multi_reduction <add>, %61, %cst_22 [0, 2] : vector<2x8x30xf32> to vector<8xf32>
    %63 = vector.shape_cast %62 : vector<8xf32> to vector<1x8x1xf32>
    %cst_23 = arith.constant 0.0166666675 : f32
    %64 = vector.broadcast %cst_23 : f32 to vector<1x8x1xf32>
    %65 = arith.mulf %63, %64 : vector<1x8x1xf32>
    %66 = arith.mulf %60, %60 : vector<1x8x1xf32>
    %67 = arith.subf %65, %66 : vector<1x8x1xf32>
    %cst_24 = arith.constant 0.000000e+00 : f32
    %68 = vector.broadcast %cst_24 : f32 to vector<1x8x1xf32>
    %69 = arith.maximumf %67, %68 : vector<1x8x1xf32>
    %cst_25 = arith.constant 9.99999974E-6 : f32
    %70 = vector.broadcast %cst_25 : f32 to vector<1x8x1xf32>
    %71 = arith.addf %69, %70 : vector<1x8x1xf32>
    %72 = math.rsqrt %71 : vector<1x8x1xf32>
    %73 = vector.extract_strided_slice %3 {offsets = [0, 4, 0, 0], sizes = [1, 1, 8, 1], strides = [1, 1, 1, 1]} : vector<4x6x8x1xf32> to vector<1x1x8x1xf32>
    %74 = vector.shape_cast %73 : vector<1x1x8x1xf32> to vector<8x1xf32>
    %75 = vector.shape_cast %74 : vector<8x1xf32> to vector<1x8x1xf32>
    %76 = arith.mulf %72, %75 : vector<1x8x1xf32>
    %77 = vector.extract_strided_slice %3 {offsets = [0, 5, 0, 0], sizes = [1, 1, 8, 1], strides = [1, 1, 1, 1]} : vector<4x6x8x1xf32> to vector<1x1x8x1xf32>
    %78 = vector.shape_cast %77 : vector<1x1x8x1xf32> to vector<8x1xf32>
    %79 = vector.shape_cast %78 : vector<8x1xf32> to vector<1x8x1xf32>
    %80 = arith.mulf %60, %76 : vector<1x8x1xf32>
    %81 = arith.subf %79, %80 : vector<1x8x1xf32>
    %82 = vector.broadcast %76 : vector<1x8x1xf32> to vector<2x8x30xf32>
    %83 = arith.mulf %56, %82 : vector<2x8x30xf32>
    %84 = vector.broadcast %81 : vector<1x8x1xf32> to vector<2x8x30xf32>
    %85 = arith.addf %83, %84 : vector<2x8x30xf32>
    %86 = vector.extract_strided_slice %0 {offsets = [0, 0, 1], sizes = [2, 8, 30], strides = [1, 1, 1]} : vector<2x8x32xf32> to vector<2x8x30xf32>
    %87 = arith.addf %85, %86 : vector<2x8x30xf32>
    %cst_26 = arith.constant 0.000000e+00 : f32
    %88 = vector.broadcast %cst_26 : f32 to vector<2x8x30xf32>
    %89 = arith.maximumf %87, %88 : vector<2x8x30xf32>
    %90 = vector.extract_strided_slice %89 {offsets = [0, 0, 0], sizes = [2, 8, 26], strides = [1, 1, 1]} : vector<2x8x30xf32> to vector<2x8x26xf32>
    %91 = vector.extract_strided_slice %89 {offsets = [0, 0, 2], sizes = [2, 8, 26], strides = [1, 1, 1]} : vector<2x8x30xf32> to vector<2x8x26xf32>
    %92 = vector.extract_strided_slice %89 {offsets = [0, 0, 4], sizes = [2, 8, 26], strides = [1, 1, 1]} : vector<2x8x30xf32> to vector<2x8x26xf32>
    %93 = tpu.concatenate %90, %91, %92 in 1 : vector<2x8x26xf32>, vector<2x8x26xf32>, vector<2x8x26xf32> -> vector<2x24x26xf32>
    %94 = vector.extract_strided_slice %1 {offsets = [1, 0, 0], sizes = [1, 8, 24], strides = [1, 1, 1]} : vector<4x8x24xf32> to vector<1x8x24xf32>
    %95 = vector.shape_cast %94 : vector<1x8x24xf32> to vector<8x24xf32>
    "tpu.trace_start"() <{level = 10 : i32, message = "ok,nkl->nol"}> : () -> ()
    %cst_27 = arith.constant dense<0.000000e+00> : vector<2x26x8xf32>
    %96 = tpu.matmul %93, %95, %cst_27 {dimension_numbers = #tpu.dot_dimension_numbers<[1], [1], [0, 2], [0], [0, 0, 0, 2, 1, 0], [], []>} : vector<2x24x26xf32>, vector<8x24xf32>, vector<2x26x8xf32> -> vector<2x26x8xf32>
    %97 = tpu.transpose %96, [0, 2, 1] : vector<2x26x8xf32> -> vector<2x8x26xf32>
    "tpu.trace_stop"() : () -> ()
    %98 = vector.extract_strided_slice %3 {offsets = [1, 0, 0, 0], sizes = [1, 1, 8, 1], strides = [1, 1, 1, 1]} : vector<4x6x8x1xf32> to vector<1x1x8x1xf32>
    %99 = vector.shape_cast %98 : vector<1x1x8x1xf32> to vector<8x1xf32>
    %100 = vector.shape_cast %99 : vector<8x1xf32> to vector<1x8x1xf32>
    %101 = vector.broadcast %100 : vector<1x8x1xf32> to vector<2x8x26xf32>
    %102 = arith.addf %97, %101 : vector<2x8x26xf32>
    %cst_28 = arith.constant dense<0.000000e+00> : vector<8xf32>
    %103 = vector.multi_reduction <add>, %102, %cst_28 [0, 2] : vector<2x8x26xf32> to vector<8xf32>
    %104 = vector.shape_cast %103 : vector<8xf32> to vector<1x8x1xf32>
    %cst_29 = arith.constant 0.0192307699 : f32
    %105 = vector.broadcast %cst_29 : f32 to vector<1x8x1xf32>
    %106 = arith.mulf %104, %105 : vector<1x8x1xf32>
    %107 = arith.mulf %102, %102 : vector<2x8x26xf32>
    %cst_30 = arith.constant dense<0.000000e+00> : vector<8xf32>
    %108 = vector.multi_reduction <add>, %107, %cst_30 [0, 2] : vector<2x8x26xf32> to vector<8xf32>
    %109 = vector.shape_cast %108 : vector<8xf32> to vector<1x8x1xf32>
    %cst_31 = arith.constant 0.0192307699 : f32
    %110 = vector.broadcast %cst_31 : f32 to vector<1x8x1xf32>
    %111 = arith.mulf %109, %110 : vector<1x8x1xf32>
    %112 = arith.mulf %106, %106 : vector<1x8x1xf32>
    %113 = arith.subf %111, %112 : vector<1x8x1xf32>
    %cst_32 = arith.constant 0.000000e+00 : f32
    %114 = vector.broadcast %cst_32 : f32 to vector<1x8x1xf32>
    %115 = arith.maximumf %113, %114 : vector<1x8x1xf32>
    %cst_33 = arith.constant 9.99999974E-6 : f32
    %116 = vector.broadcast %cst_33 : f32 to vector<1x8x1xf32>
    %117 = arith.addf %115, %116 : vector<1x8x1xf32>
    %118 = math.rsqrt %117 : vector<1x8x1xf32>
    %119 = vector.extract_strided_slice %3 {offsets = [1, 1, 0, 0], sizes = [1, 1, 8, 1], strides = [1, 1, 1, 1]} : vector<4x6x8x1xf32> to vector<1x1x8x1xf32>
    %120 = vector.shape_cast %119 : vector<1x1x8x1xf32> to vector<8x1xf32>
    %121 = vector.shape_cast %120 : vector<8x1xf32> to vector<1x8x1xf32>
    %122 = arith.mulf %118, %121 : vector<1x8x1xf32>
    %123 = vector.extract_strided_slice %3 {offsets = [1, 2, 0, 0], sizes = [1, 1, 8, 1], strides = [1, 1, 1, 1]} : vector<4x6x8x1xf32> to vector<1x1x8x1xf32>
    %124 = vector.shape_cast %123 : vector<1x1x8x1xf32> to vector<8x1xf32>
    %125 = vector.shape_cast %124 : vector<8x1xf32> to vector<1x8x1xf32>
    %126 = arith.mulf %106, %122 : vector<1x8x1xf32>
    %127 = arith.subf %125, %126 : vector<1x8x1xf32>
    %128 = vector.broadcast %122 : vector<1x8x1xf32> to vector<2x8x26xf32>
    %129 = arith.mulf %102, %128 : vector<2x8x26xf32>
    %130 = vector.broadcast %127 : vector<1x8x1xf32> to vector<2x8x26xf32>
    %131 = arith.addf %129, %130 : vector<2x8x26xf32>
    %cst_34 = arith.constant 0.000000e+00 : f32
    %132 = vector.broadcast %cst_34 : f32 to vector<2x8x26xf32>
    %133 = arith.maximumf %131, %132 : vector<2x8x26xf32>
    %134 = vector.extract_strided_slice %2 {offsets = [1, 0, 0], sizes = [1, 8, 8], strides = [1, 1, 1]} : vector<4x8x8xf32> to vector<1x8x8xf32>
    %135 = vector.shape_cast %134 : vector<1x8x8xf32> to vector<8x8xf32>
    "tpu.trace_start"() <{level = 10 : i32, message = "oc,ncl->nol"}> : () -> ()
    %cst_35 = arith.constant dense<0.000000e+00> : vector<2x26x8xf32>
    %136 = tpu.matmul %133, %135, %cst_35 {dimension_numbers = #tpu.dot_dimension_numbers<[1], [1], [0, 2], [0], [0, 0, 0, 2, 1, 0], [], []>} : vector<2x8x26xf32>, vector<8x8xf32>, vector<2x26x8xf32> -> vector<2x26x8xf32>
    %137 = tpu.transpose %136, [0, 2, 1] : vector<2x26x8xf32> -> vector<2x8x26xf32>
    "tpu.trace_stop"() : () -> ()
    %138 = vector.extract_strided_slice %3 {offsets = [1, 3, 0, 0], sizes = [1, 1, 8, 1], strides = [1, 1, 1, 1]} : vector<4x6x8x1xf32> to vector<1x1x8x1xf32>
    %139 = vector.shape_cast %138 : vector<1x1x8x1xf32> to vector<8x1xf32>
    %140 = vector.shape_cast %139 : vector<8x1xf32> to vector<1x8x1xf32>
    %141 = vector.broadcast %140 : vector<1x8x1xf32> to vector<2x8x26xf32>
    %142 = arith.addf %137, %141 : vector<2x8x26xf32>
    %cst_36 = arith.constant dense<0.000000e+00> : vector<8xf32>
    %143 = vector.multi_reduction <add>, %142, %cst_36 [0, 2] : vector<2x8x26xf32> to vector<8xf32>
    %144 = vector.shape_cast %143 : vector<8xf32> to vector<1x8x1xf32>
    %cst_37 = arith.constant 0.0192307699 : f32
    %145 = vector.broadcast %cst_37 : f32 to vector<1x8x1xf32>
    %146 = arith.mulf %144, %145 : vector<1x8x1xf32>
    %147 = arith.mulf %142, %142 : vector<2x8x26xf32>
    %cst_38 = arith.constant dense<0.000000e+00> : vector<8xf32>
    %148 = vector.multi_reduction <add>, %147, %cst_38 [0, 2] : vector<2x8x26xf32> to vector<8xf32>
    %149 = vector.shape_cast %148 : vector<8xf32> to vector<1x8x1xf32>
    %cst_39 = arith.constant 0.0192307699 : f32
    %150 = vector.broadcast %cst_39 : f32 to vector<1x8x1xf32>
    %151 = arith.mulf %149, %150 : vector<1x8x1xf32>
    %152 = arith.mulf %146, %146 : vector<1x8x1xf32>
    %153 = arith.subf %151, %152 : vector<1x8x1xf32>
    %cst_40 = arith.constant 0.000000e+00 : f32
    %154 = vector.broadcast %cst_40 : f32 to vector<1x8x1xf32>
    %155 = arith.maximumf %153, %154 : vector<1x8x1xf32>
    %cst_41 = arith.constant 9.99999974E-6 : f32
    %156 = vector.broadcast %cst_41 : f32 to vector<1x8x1xf32>
    %157 = arith.addf %155, %156 : vector<1x8x1xf32>
    %158 = math.rsqrt %157 : vector<1x8x1xf32>
    %159 = vector.extract_strided_slice %3 {offsets = [1, 4, 0, 0], sizes = [1, 1, 8, 1], strides = [1, 1, 1, 1]} : vector<4x6x8x1xf32> to vector<1x1x8x1xf32>
    %160 = vector.shape_cast %159 : vector<1x1x8x1xf32> to vector<8x1xf32>
    %161 = vector.shape_cast %160 : vector<8x1xf32> to vector<1x8x1xf32>
    %162 = arith.mulf %158, %161 : vector<1x8x1xf32>
    %163 = vector.extract_strided_slice %3 {offsets = [1, 5, 0, 0], sizes = [1, 1, 8, 1], strides = [1, 1, 1, 1]} : vector<4x6x8x1xf32> to vector<1x1x8x1xf32>
    %164 = vector.shape_cast %163 : vector<1x1x8x1xf32> to vector<8x1xf32>
    %165 = vector.shape_cast %164 : vector<8x1xf32> to vector<1x8x1xf32>
    %166 = arith.mulf %146, %162 : vector<1x8x1xf32>
    %167 = arith.subf %165, %166 : vector<1x8x1xf32>
    %168 = vector.broadcast %162 : vector<1x8x1xf32> to vector<2x8x26xf32>
    %169 = arith.mulf %142, %168 : vector<2x8x26xf32>
    %170 = vector.broadcast %167 : vector<1x8x1xf32> to vector<2x8x26xf32>
    %171 = arith.addf %169, %170 : vector<2x8x26xf32>
    %172 = vector.extract_strided_slice %89 {offsets = [0, 0, 2], sizes = [2, 8, 26], strides = [1, 1, 1]} : vector<2x8x30xf32> to vector<2x8x26xf32>
    %173 = arith.addf %171, %172 : vector<2x8x26xf32>
    %cst_42 = arith.constant 0.000000e+00 : f32
    %174 = vector.broadcast %cst_42 : f32 to vector<2x8x26xf32>
    %175 = arith.maximumf %173, %174 : vector<2x8x26xf32>
    %176 = vector.extract_strided_slice %175 {offsets = [0, 0, 0], sizes = [2, 8, 24], strides = [1, 1, 1]} : vector<2x8x26xf32> to vector<2x8x24xf32>
    %177 = vector.extract_strided_slice %175 {offsets = [0, 0, 1], sizes = [2, 8, 24], strides = [1, 1, 1]} : vector<2x8x26xf32> to vector<2x8x24xf32>
    %178 = vector.extract_strided_slice %175 {offsets = [0, 0, 2], sizes = [2, 8, 24], strides = [1, 1, 1]} : vector<2x8x26xf32> to vector<2x8x24xf32>
    %179 = tpu.concatenate %176, %177, %178 in 1 : vector<2x8x24xf32>, vector<2x8x24xf32>, vector<2x8x24xf32> -> vector<2x24x24xf32>
    %180 = vector.extract_strided_slice %1 {offsets = [2, 0, 0], sizes = [1, 8, 24], strides = [1, 1, 1]} : vector<4x8x24xf32> to vector<1x8x24xf32>
    %181 = vector.shape_cast %180 : vector<1x8x24xf32> to vector<8x24xf32>
    "tpu.trace_start"() <{level = 10 : i32, message = "ok,nkl->nol"}> : () -> ()
    %cst_43 = arith.constant dense<0.000000e+00> : vector<2x24x8xf32>
    %182 = tpu.matmul %179, %181, %cst_43 {dimension_numbers = #tpu.dot_dimension_numbers<[1], [1], [0, 2], [0], [0, 0, 0, 2, 1, 0], [], []>} : vector<2x24x24xf32>, vector<8x24xf32>, vector<2x24x8xf32> -> vector<2x24x8xf32>
    %183 = tpu.transpose %182, [0, 2, 1] : vector<2x24x8xf32> -> vector<2x8x24xf32>
    "tpu.trace_stop"() : () -> ()
    %184 = vector.extract_strided_slice %3 {offsets = [2, 0, 0, 0], sizes = [1, 1, 8, 1], strides = [1, 1, 1, 1]} : vector<4x6x8x1xf32> to vector<1x1x8x1xf32>
    %185 = vector.shape_cast %184 : vector<1x1x8x1xf32> to vector<8x1xf32>
    %186 = vector.shape_cast %185 : vector<8x1xf32> to vector<1x8x1xf32>
    %187 = vector.broadcast %186 : vector<1x8x1xf32> to vector<2x8x24xf32>
    %188 = arith.addf %183, %187 : vector<2x8x24xf32>
    %cst_44 = arith.constant dense<0.000000e+00> : vector<8xf32>
    %189 = vector.multi_reduction <add>, %188, %cst_44 [0, 2] : vector<2x8x24xf32> to vector<8xf32>
    %190 = vector.shape_cast %189 : vector<8xf32> to vector<1x8x1xf32>
    %cst_45 = arith.constant 0.020833334 : f32
    %191 = vector.broadcast %cst_45 : f32 to vector<1x8x1xf32>
    %192 = arith.mulf %190, %191 : vector<1x8x1xf32>
    %193 = arith.mulf %188, %188 : vector<2x8x24xf32>
    %cst_46 = arith.constant dense<0.000000e+00> : vector<8xf32>
    %194 = vector.multi_reduction <add>, %193, %cst_46 [0, 2] : vector<2x8x24xf32> to vector<8xf32>
    %195 = vector.shape_cast %194 : vector<8xf32> to vector<1x8x1xf32>
    %cst_47 = arith.constant 0.020833334 : f32
    %196 = vector.broadcast %cst_47 : f32 to vector<1x8x1xf32>
    %197 = arith.mulf %195, %196 : vector<1x8x1xf32>
    %198 = arith.mulf %192, %192 : vector<1x8x1xf32>
    %199 = arith.subf %197, %198 : vector<1x8x1xf32>
    %cst_48 = arith.constant 0.000000e+00 : f32
    %200 = vector.broadcast %cst_48 : f32 to vector<1x8x1xf32>
    %201 = arith.maximumf %199, %200 : vector<1x8x1xf32>
    %cst_49 = arith.constant 9.99999974E-6 : f32
    %202 = vector.broadcast %cst_49 : f32 to vector<1x8x1xf32>
    %203 = arith.addf %201, %202 : vector<1x8x1xf32>
    %204 = math.rsqrt %203 : vector<1x8x1xf32>
    %205 = vector.extract_strided_slice %3 {offsets = [2, 1, 0, 0], sizes = [1, 1, 8, 1], strides = [1, 1, 1, 1]} : vector<4x6x8x1xf32> to vector<1x1x8x1xf32>
    %206 = vector.shape_cast %205 : vector<1x1x8x1xf32> to vector<8x1xf32>
    %207 = vector.shape_cast %206 : vector<8x1xf32> to vector<1x8x1xf32>
    %208 = arith.mulf %204, %207 : vector<1x8x1xf32>
    %209 = vector.extract_strided_slice %3 {offsets = [2, 2, 0, 0], sizes = [1, 1, 8, 1], strides = [1, 1, 1, 1]} : vector<4x6x8x1xf32> to vector<1x1x8x1xf32>
    %210 = vector.shape_cast %209 : vector<1x1x8x1xf32> to vector<8x1xf32>
    %211 = vector.shape_cast %210 : vector<8x1xf32> to vector<1x8x1xf32>
    %212 = arith.mulf %192, %208 : vector<1x8x1xf32>
    %213 = arith.subf %211, %212 : vector<1x8x1xf32>
    %214 = vector.broadcast %208 : vector<1x8x1xf32> to vector<2x8x24xf32>
    %215 = arith.mulf %188, %214 : vector<2x8x24xf32>
    %216 = vector.broadcast %213 : vector<1x8x1xf32> to vector<2x8x24xf32>
    %217 = arith.addf %215, %216 : vector<2x8x24xf32>
    %cst_50 = arith.constant 0.000000e+00 : f32
    %218 = vector.broadcast %cst_50 : f32 to vector<2x8x24xf32>
    %219 = arith.maximumf %217, %218 : vector<2x8x24xf32>
    %220 = vector.extract_strided_slice %2 {offsets = [2, 0, 0], sizes = [1, 8, 8], strides = [1, 1, 1]} : vector<4x8x8xf32> to vector<1x8x8xf32>
    %221 = vector.shape_cast %220 : vector<1x8x8xf32> to vector<8x8xf32>
    "tpu.trace_start"() <{level = 10 : i32, message = "oc,ncl->nol"}> : () -> ()
    %cst_51 = arith.constant dense<0.000000e+00> : vector<2x24x8xf32>
    %222 = tpu.matmul %219, %221, %cst_51 {dimension_numbers = #tpu.dot_dimension_numbers<[1], [1], [0, 2], [0], [0, 0, 0, 2, 1, 0], [], []>} : vector<2x8x24xf32>, vector<8x8xf32>, vector<2x24x8xf32> -> vector<2x24x8xf32>
    %223 = tpu.transpose %222, [0, 2, 1] : vector<2x24x8xf32> -> vector<2x8x24xf32>
    "tpu.trace_stop"() : () -> ()
    %224 = vector.extract_strided_slice %3 {offsets = [2, 3, 0, 0], sizes = [1, 1, 8, 1], strides = [1, 1, 1, 1]} : vector<4x6x8x1xf32> to vector<1x1x8x1xf32>
    %225 = vector.shape_cast %224 : vector<1x1x8x1xf32> to vector<8x1xf32>
    %226 = vector.shape_cast %225 : vector<8x1xf32> to vector<1x8x1xf32>
    %227 = vector.broadcast %226 : vector<1x8x1xf32> to vector<2x8x24xf32>
    %228 = arith.addf %223, %227 : vector<2x8x24xf32>
    %cst_52 = arith.constant dense<0.000000e+00> : vector<8xf32>
    %229 = vector.multi_reduction <add>, %228, %cst_52 [0, 2] : vector<2x8x24xf32> to vector<8xf32>
    %230 = vector.shape_cast %229 : vector<8xf32> to vector<1x8x1xf32>
    %cst_53 = arith.constant 0.020833334 : f32
    %231 = vector.broadcast %cst_53 : f32 to vector<1x8x1xf32>
    %232 = arith.mulf %230, %231 : vector<1x8x1xf32>
    %233 = arith.mulf %228, %228 : vector<2x8x24xf32>
    %cst_54 = arith.constant dense<0.000000e+00> : vector<8xf32>
    %234 = vector.multi_reduction <add>, %233, %cst_54 [0, 2] : vector<2x8x24xf32> to vector<8xf32>
    %235 = vector.shape_cast %234 : vector<8xf32> to vector<1x8x1xf32>
    %cst_55 = arith.constant 0.020833334 : f32
    %236 = vector.broadcast %cst_55 : f32 to vector<1x8x1xf32>
    %237 = arith.mulf %235, %236 : vector<1x8x1xf32>
    %238 = arith.mulf %232, %232 : vector<1x8x1xf32>
    %239 = arith.subf %237, %238 : vector<1x8x1xf32>
    %cst_56 = arith.constant 0.000000e+00 : f32
    %240 = vector.broadcast %cst_56 : f32 to vector<1x8x1xf32>
    %241 = arith.maximumf %239, %240 : vector<1x8x1xf32>
    %cst_57 = arith.constant 9.99999974E-6 : f32
    %242 = vector.broadcast %cst_57 : f32 to vector<1x8x1xf32>
    %243 = arith.addf %241, %242 : vector<1x8x1xf32>
    %244 = math.rsqrt %243 : vector<1x8x1xf32>
    %245 = vector.extract_strided_slice %3 {offsets = [2, 4, 0, 0], sizes = [1, 1, 8, 1], strides = [1, 1, 1, 1]} : vector<4x6x8x1xf32> to vector<1x1x8x1xf32>
    %246 = vector.shape_cast %245 : vector<1x1x8x1xf32> to vector<8x1xf32>
    %247 = vector.shape_cast %246 : vector<8x1xf32> to vector<1x8x1xf32>
    %248 = arith.mulf %244, %247 : vector<1x8x1xf32>
    %249 = vector.extract_strided_slice %3 {offsets = [2, 5, 0, 0], sizes = [1, 1, 8, 1], strides = [1, 1, 1, 1]} : vector<4x6x8x1xf32> to vector<1x1x8x1xf32>
    %250 = vector.shape_cast %249 : vector<1x1x8x1xf32> to vector<8x1xf32>
    %251 = vector.shape_cast %250 : vector<8x1xf32> to vector<1x8x1xf32>
    %252 = arith.mulf %232, %248 : vector<1x8x1xf32>
    %253 = arith.subf %251, %252 : vector<1x8x1xf32>
    %254 = vector.broadcast %248 : vector<1x8x1xf32> to vector<2x8x24xf32>
    %255 = arith.mulf %228, %254 : vector<2x8x24xf32>
    %256 = vector.broadcast %253 : vector<1x8x1xf32> to vector<2x8x24xf32>
    %257 = arith.addf %255, %256 : vector<2x8x24xf32>
    %258 = vector.extract_strided_slice %175 {offsets = [0, 0, 1], sizes = [2, 8, 24], strides = [1, 1, 1]} : vector<2x8x26xf32> to vector<2x8x24xf32>
    %259 = arith.addf %257, %258 : vector<2x8x24xf32>
    %cst_58 = arith.constant 0.000000e+00 : f32
    %260 = vector.broadcast %cst_58 : f32 to vector<2x8x24xf32>
    %261 = arith.maximumf %259, %260 : vector<2x8x24xf32>
    %262 = vector.extract_strided_slice %261 {offsets = [0, 0, 0], sizes = [2, 8, 20], strides = [1, 1, 1]} : vector<2x8x24xf32> to vector<2x8x20xf32>
    %263 = vector.extract_strided_slice %261 {offsets = [0, 0, 2], sizes = [2, 8, 20], strides = [1, 1, 1]} : vector<2x8x24xf32> to vector<2x8x20xf32>
    %264 = vector.extract_strided_slice %261 {offsets = [0, 0, 4], sizes = [2, 8, 20], strides = [1, 1, 1]} : vector<2x8x24xf32> to vector<2x8x20xf32>
    %265 = tpu.concatenate %262, %263, %264 in 1 : vector<2x8x20xf32>, vector<2x8x20xf32>, vector<2x8x20xf32> -> vector<2x24x20xf32>
    %266 = vector.extract_strided_slice %1 {offsets = [3, 0, 0], sizes = [1, 8, 24], strides = [1, 1, 1]} : vector<4x8x24xf32> to vector<1x8x24xf32>
    %267 = vector.shape_cast %266 : vector<1x8x24xf32> to vector<8x24xf32>
    "tpu.trace_start"() <{level = 10 : i32, message = "ok,nkl->nol"}> : () -> ()
    %cst_59 = arith.constant dense<0.000000e+00> : vector<2x20x8xf32>
    %268 = tpu.matmul %265, %267, %cst_59 {dimension_numbers = #tpu.dot_dimension_numbers<[1], [1], [0, 2], [0], [0, 0, 0, 2, 1, 0], [], []>} : vector<2x24x20xf32>, vector<8x24xf32>, vector<2x20x8xf32> -> vector<2x20x8xf32>
    %269 = tpu.transpose %268, [0, 2, 1] : vector<2x20x8xf32> -> vector<2x8x20xf32>
    "tpu.trace_stop"() : () -> ()
    %270 = vector.extract_strided_slice %3 {offsets = [3, 0, 0, 0], sizes = [1, 1, 8, 1], strides = [1, 1, 1, 1]} : vector<4x6x8x1xf32> to vector<1x1x8x1xf32>
    %271 = vector.shape_cast %270 : vector<1x1x8x1xf32> to vector<8x1xf32>
    %272 = vector.shape_cast %271 : vector<8x1xf32> to vector<1x8x1xf32>
    %273 = vector.broadcast %272 : vector<1x8x1xf32> to vector<2x8x20xf32>
    %274 = arith.addf %269, %273 : vector<2x8x20xf32>
    %cst_60 = arith.constant dense<0.000000e+00> : vector<8xf32>
    %275 = vector.multi_reduction <add>, %274, %cst_60 [0, 2] : vector<2x8x20xf32> to vector<8xf32>
    %276 = vector.shape_cast %275 : vector<8xf32> to vector<1x8x1xf32>
    %cst_61 = arith.constant 2.500000e-02 : f32
    %277 = vector.broadcast %cst_61 : f32 to vector<1x8x1xf32>
    %278 = arith.mulf %276, %277 : vector<1x8x1xf32>
    %279 = arith.mulf %274, %274 : vector<2x8x20xf32>
    %cst_62 = arith.constant dense<0.000000e+00> : vector<8xf32>
    %280 = vector.multi_reduction <add>, %279, %cst_62 [0, 2] : vector<2x8x20xf32> to vector<8xf32>
    %281 = vector.shape_cast %280 : vector<8xf32> to vector<1x8x1xf32>
    %cst_63 = arith.constant 2.500000e-02 : f32
    %282 = vector.broadcast %cst_63 : f32 to vector<1x8x1xf32>
    %283 = arith.mulf %281, %282 : vector<1x8x1xf32>
    %284 = arith.mulf %278, %278 : vector<1x8x1xf32>
    %285 = arith.subf %283, %284 : vector<1x8x1xf32>
    %cst_64 = arith.constant 0.000000e+00 : f32
    %286 = vector.broadcast %cst_64 : f32 to vector<1x8x1xf32>
    %287 = arith.maximumf %285, %286 : vector<1x8x1xf32>
    %cst_65 = arith.constant 9.99999974E-6 : f32
    %288 = vector.broadcast %cst_65 : f32 to vector<1x8x1xf32>
    %289 = arith.addf %287, %288 : vector<1x8x1xf32>
    %290 = math.rsqrt %289 : vector<1x8x1xf32>
    %291 = vector.extract_strided_slice %3 {offsets = [3, 1, 0, 0], sizes = [1, 1, 8, 1], strides = [1, 1, 1, 1]} : vector<4x6x8x1xf32> to vector<1x1x8x1xf32>
    %292 = vector.shape_cast %291 : vector<1x1x8x1xf32> to vector<8x1xf32>
    %293 = vector.shape_cast %292 : vector<8x1xf32> to vector<1x8x1xf32>
    %294 = arith.mulf %290, %293 : vector<1x8x1xf32>
    %295 = vector.extract_strided_slice %3 {offsets = [3, 2, 0, 0], sizes = [1, 1, 8, 1], strides = [1, 1, 1, 1]} : vector<4x6x8x1xf32> to vector<1x1x8x1xf32>
    %296 = vector.shape_cast %295 : vector<1x1x8x1xf32> to vector<8x1xf32>
    %297 = vector.shape_cast %296 : vector<8x1xf32> to vector<1x8x1xf32>
    %298 = arith.mulf %278, %294 : vector<1x8x1xf32>
    %299 = arith.subf %297, %298 : vector<1x8x1xf32>
    %300 = vector.broadcast %294 : vector<1x8x1xf32> to vector<2x8x20xf32>
    %301 = arith.mulf %274, %300 : vector<2x8x20xf32>
    %302 = vector.broadcast %299 : vector<1x8x1xf32> to vector<2x8x20xf32>
    %303 = arith.addf %301, %302 : vector<2x8x20xf32>
    %cst_66 = arith.constant 0.000000e+00 : f32
    %304 = vector.broadcast %cst_66 : f32 to vector<2x8x20xf32>
    %305 = arith.maximumf %303, %304 : vector<2x8x20xf32>
    %306 = vector.extract_strided_slice %2 {offsets = [3, 0, 0], sizes = [1, 8, 8], strides = [1, 1, 1]} : vector<4x8x8xf32> to vector<1x8x8xf32>
    %307 = vector.shape_cast %306 : vector<1x8x8xf32> to vector<8x8xf32>
    "tpu.trace_start"() <{level = 10 : i32, message = "oc,ncl->nol"}> : () -> ()
    %cst_67 = arith.constant dense<0.000000e+00> : vector<2x20x8xf32>
    %308 = tpu.matmul %305, %307, %cst_67 {dimension_numbers = #tpu.dot_dimension_numbers<[1], [1], [0, 2], [0], [0, 0, 0, 2, 1, 0], [], []>} : vector<2x8x20xf32>, vector<8x8xf32>, vector<2x20x8xf32> -> vector<2x20x8xf32>
    %309 = tpu.transpose %308, [0, 2, 1] : vector<2x20x8xf32> -> vector<2x8x20xf32>
    "tpu.trace_stop"() : () -> ()
    %310 = vector.extract_strided_slice %3 {offsets = [3, 3, 0, 0], sizes = [1, 1, 8, 1], strides = [1, 1, 1, 1]} : vector<4x6x8x1xf32> to vector<1x1x8x1xf32>
    %311 = vector.shape_cast %310 : vector<1x1x8x1xf32> to vector<8x1xf32>
    %312 = vector.shape_cast %311 : vector<8x1xf32> to vector<1x8x1xf32>
    %313 = vector.broadcast %312 : vector<1x8x1xf32> to vector<2x8x20xf32>
    %314 = arith.addf %309, %313 : vector<2x8x20xf32>
    %cst_68 = arith.constant dense<0.000000e+00> : vector<8xf32>
    %315 = vector.multi_reduction <add>, %314, %cst_68 [0, 2] : vector<2x8x20xf32> to vector<8xf32>
    %316 = vector.shape_cast %315 : vector<8xf32> to vector<1x8x1xf32>
    %cst_69 = arith.constant 2.500000e-02 : f32
    %317 = vector.broadcast %cst_69 : f32 to vector<1x8x1xf32>
    %318 = arith.mulf %316, %317 : vector<1x8x1xf32>
    %319 = arith.mulf %314, %314 : vector<2x8x20xf32>
    %cst_70 = arith.constant dense<0.000000e+00> : vector<8xf32>
    %320 = vector.multi_reduction <add>, %319, %cst_70 [0, 2] : vector<2x8x20xf32> to vector<8xf32>
    %321 = vector.shape_cast %320 : vector<8xf32> to vector<1x8x1xf32>
    %cst_71 = arith.constant 2.500000e-02 : f32
    %322 = vector.broadcast %cst_71 : f32 to vector<1x8x1xf32>
    %323 = arith.mulf %321, %322 : vector<1x8x1xf32>
    %324 = arith.mulf %318, %318 : vector<1x8x1xf32>
    %325 = arith.subf %323, %324 : vector<1x8x1xf32>
    %cst_72 = arith.constant 0.000000e+00 : f32
    %326 = vector.broadcast %cst_72 : f32 to vector<1x8x1xf32>
    %327 = arith.maximumf %325, %326 : vector<1x8x1xf32>
    %cst_73 = arith.constant 9.99999974E-6 : f32
    %328 = vector.broadcast %cst_73 : f32 to vector<1x8x1xf32>
    %329 = arith.addf %327, %328 : vector<1x8x1xf32>
    %330 = math.rsqrt %329 : vector<1x8x1xf32>
    %331 = vector.extract_strided_slice %3 {offsets = [3, 4, 0, 0], sizes = [1, 1, 8, 1], strides = [1, 1, 1, 1]} : vector<4x6x8x1xf32> to vector<1x1x8x1xf32>
    %332 = vector.shape_cast %331 : vector<1x1x8x1xf32> to vector<8x1xf32>
    %333 = vector.shape_cast %332 : vector<8x1xf32> to vector<1x8x1xf32>
    %334 = arith.mulf %330, %333 : vector<1x8x1xf32>
    %335 = vector.extract_strided_slice %3 {offsets = [3, 5, 0, 0], sizes = [1, 1, 8, 1], strides = [1, 1, 1, 1]} : vector<4x6x8x1xf32> to vector<1x1x8x1xf32>
    %336 = vector.shape_cast %335 : vector<1x1x8x1xf32> to vector<8x1xf32>
    %337 = vector.shape_cast %336 : vector<8x1xf32> to vector<1x8x1xf32>
    %338 = arith.mulf %318, %334 : vector<1x8x1xf32>
    %339 = arith.subf %337, %338 : vector<1x8x1xf32>
    %340 = vector.broadcast %334 : vector<1x8x1xf32> to vector<2x8x20xf32>
    %341 = arith.mulf %314, %340 : vector<2x8x20xf32>
    %342 = vector.broadcast %339 : vector<1x8x1xf32> to vector<2x8x20xf32>
    %343 = arith.addf %341, %342 : vector<2x8x20xf32>
    %344 = vector.extract_strided_slice %261 {offsets = [0, 0, 2], sizes = [2, 8, 20], strides = [1, 1, 1]} : vector<2x8x24xf32> to vector<2x8x20xf32>
    %345 = arith.addf %343, %344 : vector<2x8x20xf32>
    %cst_74 = arith.constant 0.000000e+00 : f32
    %346 = vector.broadcast %cst_74 : f32 to vector<2x8x20xf32>
    %347 = arith.maximumf %345, %346 : vector<2x8x20xf32>
    %c0_75 = arith.constant 0 : index
    %c0_76 = arith.constant 0 : index
    %c0_77 = arith.constant 0 : index
    %348 = vector.load %arg4[%c0_75, %c0_76, %c0_77] : memref<2x8x20xf32, #tpu.memory_space<vmem>>, vector<2x8x20xf32>
    tpu.vector_store %arg4[%c0_75, %c0_76, %c0_77], %347 {strides = array<i32>} : memref<2x8x20xf32, #tpu.memory_space<vmem>>, vector<2x8x20xf32>,
    return
  }
}

</mosaic_0001>

<llo_original>
// kernel: _lambda_.1
$region0: #{_lambda_.1}
  #allocation0 [shape = 'u32[]', space=smem, size = 0x4, offset = 0x4, fixed_abs, tag = 'smem constant byte address 0x4 - core index']
  #allocation1 [shape = 'u32[144,128]{1,0:T(1,128)}', space=vmem, size = 0x12000, scoped, tag = 'internal scratch']
  %s0 = inlined_call_operand.hbm [shape: f32[2,8,32], index: 0, kind: input, shape index: {}]
  %s1 = inlined_call_operand.hbm [shape: f32[4,8,24], index: 1, kind: input, shape index: {}]
  %s2 = inlined_call_operand.hbm [shape: f32[4,8,8], index: 2, kind: input, shape index: {}]
  %s3 = inlined_call_operand.hbm [shape: f32[4,6,8,1], index: 3, kind: input, shape index: {}]
  %s4 = inlined_call_operand.hbm [shape: f32[2,8,20], index: 4, kind: output, shape index: {}]
  %s5 = sld [smem:[#allocation0]]
  $region42: #{_lambda_.1} parent=0
    _
  %s7 = ssub.s32 1, %s5
  %s8 = scalar_select 0, %s7, %s5
  $region1: #{_lambda_.1} parent=0
    #allocation2 [shape = 'u8[8192]{0}', space=vmem, size = 0x2000, scoped, tag = 'input window, operand 0, single buffered']
    #allocation3 [shape = 's32[1]{0}', space=sflag, size = 0x4, scoped, tag = 'scoped memory for _lambda_.1']
    #allocation4 [shape = 's32[1]{0}', space=sflag, size = 0x4, scoped, tag = 'scoped memory for _lambda_.1']
    #allocation5 [shape = 'u8[16384]{0}', space=vmem, size = 0x4000, scoped, tag = 'input window, operand 1, single buffered']
    #allocation6 [shape = 's32[1]{0}', space=sflag, size = 0x4, scoped, tag = 'scoped memory for _lambda_.1']
    #allocation7 [shape = 'u8[16384]{0}', space=vmem, size = 0x4000, scoped, tag = 'input window, operand 2, single buffered']
    #allocation8 [shape = 'u8[98304]{0}', space=vmem, size = 0x18000, scoped, tag = 'input window, operand 3, single buffered']
    #allocation9 [shape = 's32[1]{0}', space=sflag, size = 0x4, scoped, tag = 'scoped memory for _lambda_.1']
    #allocation10 [shape = 'u8[8192]{0}', space=vmem, size = 0x2000, scoped, tag = 'output window, operand 0, single buffered']
    %9 = vsyncpa [#allocation3], 0
    %10 = vsyncpa [#allocation6], 0
    %11 = vsyncpa [#allocation9], 0
    %12 = vsyncpa [#allocation4], 0
    // Predicated region
    $region2: #{_lambda_.1} parent=1 // pred_check
      _
    $region3: #{_lambda_.1} parent=1 // pred_check_branch
      %14 = sbr.rel (0) target = $region5
    $region4: #{_lambda_.1} parent=1 // pred_region
      %s16 = ssub.s32 256, 256
      %17 = vsyncadd [#allocation3], %s16
      %s18 = sshll.u32 [#allocation2], 4
      %s19 = int_to_ptr.vmem [resolvable:$true] %s18
      %24 = dma.hbm_to_vmem [thread:$0]  %s0, 256, %s19, [#allocation3], 128, 128, 8
    $region5: #{_lambda_.1} parent=1 // pred_fallthru
      _
    // Predicated region
    $region6: #{_lambda_.1} parent=1 // pred_check
      _
    $region7: #{_lambda_.1} parent=1 // pred_check_branch
      %26 = sbr.rel (0) target = $region9
    $region8: #{_lambda_.1} parent=1 // pred_region
      %s28 = ssub.s32 512, 512
      %29 = vsyncadd [#allocation6], %s28
      %s30 = sshll.u32 [#allocation5], 4
      %s31 = int_to_ptr.vmem [resolvable:$true] %s30
      %36 = dma.hbm_to_vmem [thread:$0]  %s1, 512, %s31, [#allocation6], 128, 128, 8
    $region9: #{_lambda_.1} parent=1 // pred_fallthru
      _
    // Predicated region
    $region10: #{_lambda_.1} parent=1 // pred_check
      _
    $region11: #{_lambda_.1} parent=1 // pred_check_branch
      %38 = sbr.rel (0) target = $region13
    $region12: #{_lambda_.1} parent=1 // pred_region
      %s40 = ssub.s32 512, 512
      %41 = vsyncadd [#allocation6], %s40
      %s42 = sshll.u32 [#allocation7], 4
      %s43 = int_to_ptr.vmem [resolvable:$true] %s42
      %48 = dma.hbm_to_vmem [thread:$0]  %s2, 512, %s43, [#allocation6], 128, 128, 8
    $region13: #{_lambda_.1} parent=1 // pred_fallthru
      _
    // Predicated region
    $region14: #{_lambda_.1} parent=1 // pred_check
      _
    $region15: #{_lambda_.1} parent=1 // pred_check_branch
      %50 = sbr.rel (0) target = $region17
    $region16: #{_lambda_.1} parent=1 // pred_region
      %s52 = ssub.s32 3072, 3072
      %53 = vsyncadd [#allocation9], %s52
      %s54 = sshll.u32 [#allocation8], 4
      %s55 = int_to_ptr.vmem [resolvable:$true] %s54
      %60 = dma.hbm_to_vmem [thread:$0]  %s3, 3072, %s55, [#allocation9], 128, 128, 8
    $region17: #{_lambda_.1} parent=1 // pred_fallthru
      _
    // Predicated region
    $region18: #{_lambda_.1} parent=1 // pred_check
      _
    $region19: #{_lambda_.1} parent=1 // pred_check_branch
      %62 = sbr.rel (0) target = $region21
    $region20: #{_lambda_.1} parent=1 // pred_region
      %63 = dma.done [#allocation3], 256
    $region21: #{_lambda_.1} parent=1 // pred_fallthru
      _
    // Predicated region
    $region22: #{_lambda_.1} parent=1 // pred_check
      _
    $region23: #{_lambda_.1} parent=1 // pred_check_branch
      %65 = sbr.rel (0) target = $region25
    $region24: #{_lambda_.1} parent=1 // pred_region
      %66 = dma.done [#allocation6], 512
    $region25: #{_lambda_.1} parent=1 // pred_fallthru
      _
    // Predicated region
    $region26: #{_lambda_.1} parent=1 // pred_check
      _
    $region27: #{_lambda_.1} parent=1 // pred_check_branch
      %68 = sbr.rel (0) target = $region29
    $region28: #{_lambda_.1} parent=1 // pred_region
      %69 = dma.done [#allocation6], 512
    $region29: #{_lambda_.1} parent=1 // pred_fallthru
      _
    // Predicated region
    $region30: #{_lambda_.1} parent=1 // pred_check
      _
    $region31: #{_lambda_.1} parent=1 // pred_check_branch
      %71 = sbr.rel (0) target = $region33
    $region32: #{_lambda_.1} parent=1 // pred_region
      %72 = dma.done [#allocation9], 3072
    $region33: #{_lambda_.1} parent=1 // pred_fallthru
      _
    %v73 = vld [vmem:[#allocation2] sm:$0xff]
    %v74 = vld [vmem:[#allocation2 + $0x8] sm:$0xff]
    %v75 = vld [vmem:[#allocation5] sm:$0xff]
    %v76 = vld [vmem:[#allocation5 + $0x8] sm:$0xff]
    %v77 = vld [vmem:[#allocation5 + $0x10] sm:$0xff]
    %v78 = vld [vmem:[#allocation5 + $0x18] sm:$0xff]
    %v79 = vld [vmem:[#allocation7] sm:$0xff]
    %v80 = vld [vmem:[#allocation7 + $0x8] sm:$0xff]
    %v81 = vld [vmem:[#allocation7 + $0x10] sm:$0xff]
    %v82 = vld [vmem:[#allocation7 + $0x18] sm:$0xff]
    %v83 = vld [vmem:[#allocation8] sm:$0xff]
    %v84 = vld [vmem:[#allocation8 + $0x8] sm:$0xff]
    %v85 = vld [vmem:[#allocation8 + $0x10] sm:$0xff]
    %v86 = vld [vmem:[#allocation8 + $0x18] sm:$0xff]
    %v87 = vld [vmem:[#allocation8 + $0x20] sm:$0xff]
    %v88 = vld [vmem:[#allocation8 + $0x28] sm:$0xff]
    %v89 = vld [vmem:[#allocation8 + $0x30] sm:$0xff]
    %v90 = vld [vmem:[#allocation8 + $0x38] sm:$0xff]
    %v91 = vld [vmem:[#allocation8 + $0x40] sm:$0xff]
    %v92 = vld [vmem:[#allocation8 + $0x48] sm:$0xff]
    %v93 = vld [vmem:[#allocation8 + $0x50] sm:$0xff]
    %v94 = vld [vmem:[#allocation8 + $0x58] sm:$0xff]
    %v95 = vld [vmem:[#allocation8 + $0x60] sm:$0xff]
    %v96 = vld [vmem:[#allocation8 + $0x68] sm:$0xff]
    %v97 = vld [vmem:[#allocation8 + $0x70] sm:$0xff]
    %v98 = vld [vmem:[#allocation8 + $0x78] sm:$0xff]
    %v99 = vld [vmem:[#allocation8 + $0x80] sm:$0xff]
    %v100 = vld [vmem:[#allocation8 + $0x88] sm:$0xff]
    %v101 = vld [vmem:[#allocation8 + $0x90] sm:$0xff]
    %v102 = vld [vmem:[#allocation8 + $0x98] sm:$0xff]
    %v103 = vld [vmem:[#allocation8 + $0xa0] sm:$0xff]
    %v104 = vld [vmem:[#allocation8 + $0xa8] sm:$0xff]
    %v105 = vld [vmem:[#allocation8 + $0xb0] sm:$0xff]
    %v106 = vld [vmem:[#allocation8 + $0xb8] sm:$0xff]
    %109 = vrot.lane.b32.xlu0 %v73, 127
    %v110 = vpop.permute.xlu0 %109
    %111 = vrot.lane.b32.xlu0 %v74, 127
    %v112 = vpop.permute.xlu0 %111
    %115 = vrot.lane.b32.xlu0 %v73, 126
    %v116 = vpop.permute.xlu0 %115
    %117 = vrot.lane.b32.xlu0 %v74, 126
    %v118 = vpop.permute.xlu0 %117
    %121 = vxpose.xlu0.b32.start [1/16] %v73, 128
    %122 = vxpose.xlu0.b32.cont [2/16] %v110, 128
    %123 = vxpose.xlu0.b32.cont [3/16] %v116, 128
    %124 = vxpose.xlu0.b32.cont [4/16] 0.0, 128
    %125 = vxpose.xlu0.b32.cont [5/16] 0.0, 128
    %126 = vxpose.xlu0.b32.cont [6/16] 0.0, 128
    %127 = vxpose.xlu0.b32.cont [7/16] 0.0, 128
    %128 = vxpose.xlu0.b32.cont [8/16] 0.0, 128
    %129 = vxpose.xlu0.b32.cont [9/16] 0.0, 128
    %130 = vxpose.xlu0.b32.cont [10/16] 0.0, 128
    %131 = vxpose.xlu0.b32.cont [11/16] 0.0, 128
    %132 = vxpose.xlu0.b32.cont [12/16] 0.0, 128
    %133 = vxpose.xlu0.b32.cont [13/16] 0.0, 128
    %134 = vxpose.xlu0.b32.cont [14/16] 0.0, 128
    %135 = vxpose.xlu0.b32.cont [15/16] 0.0, 128
    %136 = vxpose.xlu0.b32.end [16/16] 0.0, 128
    %v137 = vpop.trf.xlu0
    %v138 = vpop.trf.xlu0
    %v139 = vpop.trf.xlu0
    %v140 = vpop.trf.xlu0
    %v141 = vpop.trf.xlu0
    %v142 = vpop.trf.xlu0
    %v143 = vpop.trf.xlu0
    %v144 = vpop.trf.xlu0
    %v145 = vpop.trf.xlu0
    %v146 = vpop.trf.xlu0
    %v147 = vpop.trf.xlu0
    %v148 = vpop.trf.xlu0
    %v149 = vpop.trf.xlu0
    %v150 = vpop.trf.xlu0
    %v151 = vpop.trf.xlu0
    %v152 = vpop.trf.xlu0
    %153 = vxpose.xlu0.b32.start [1/16] %v74, 128
    %154 = vxpose.xlu0.b32.cont [2/16] %v112, 128
    %155 = vxpose.xlu0.b32.cont [3/16] %v118, 128
    %156 = vxpose.xlu0.b32.cont [4/16] 0.0, 128
    %157 = vxpose.xlu0.b32.cont [5/16] 0.0, 128
    %158 = vxpose.xlu0.b32.cont [6/16] 0.0, 128
    %159 = vxpose.xlu0.b32.cont [7/16] 0.0, 128
    %160 = vxpose.xlu0.b32.cont [8/16] 0.0, 128
    %161 = vxpose.xlu0.b32.cont [9/16] 0.0, 128
    %162 = vxpose.xlu0.b32.cont [10/16] 0.0, 128
    %163 = vxpose.xlu0.b32.cont [11/16] 0.0, 128
    %164 = vxpose.xlu0.b32.cont [12/16] 0.0, 128
    %165 = vxpose.xlu0.b32.cont [13/16] 0.0, 128
    %166 = vxpose.xlu0.b32.cont [14/16] 0.0, 128
    %167 = vxpose.xlu0.b32.cont [15/16] 0.0, 128
    %168 = vxpose.xlu0.b32.end [16/16] 0.0, 128
    %v169 = vpop.trf.xlu0
    %v170 = vpop.trf.xlu0
    %v171 = vpop.trf.xlu0
    %v172 = vpop.trf.xlu0
    %v173 = vpop.trf.xlu0
    %v174 = vpop.trf.xlu0
    %v175 = vpop.trf.xlu0
    %v176 = vpop.trf.xlu0
    %v177 = vpop.trf.xlu0
    %v178 = vpop.trf.xlu0
    %v179 = vpop.trf.xlu0
    %v180 = vpop.trf.xlu0
    %v181 = vpop.trf.xlu0
    %v182 = vpop.trf.xlu0
    %v183 = vpop.trf.xlu0
    %v184 = vpop.trf.xlu0
    %v193 = vcombine.high %v137, %v137
    %v195 = vunpack.c.l.s4 1983009808
    %v196 = vunpack.c.0.s8 %v195
    %v197 = vlaneseq
    %v198 = vshrl.u32 %v197, 7
    %v199 = vsub.s32 %v196, %v198
    %v200 = vrot.slane %v137, %v199
    %v202 = vunpack.c.l.s4 1983009808
    %v203 = vunpack.c.0.s8 %v202
    %v204 = vlaneseq
    %v205 = vshrl.u32 %v204, 7
    %v206 = vsub.s32 %v203, %v205
    %v207 = vrot.slane %v193, %v206
    %v208 = vcombine.high %v200, %v200
    %v209 = vcombine.high %v207, %v207
    %v210 = vcombine.high %v138, %v138
    %v212 = vunpack.c.l.s4 1983009808
    %v213 = vunpack.c.0.s8 %v212
    %v214 = vlaneseq
    %v215 = vshrl.u32 %v214, 7
    %v216 = vsub.s32 %v213, %v215
    %v217 = vrot.slane %v138, %v216
    %v219 = vunpack.c.l.s4 1983009808
    %v220 = vunpack.c.0.s8 %v219
    %v221 = vlaneseq
    %v222 = vshrl.u32 %v221, 7
    %v223 = vsub.s32 %v220, %v222
    %v224 = vrot.slane %v210, %v223
    %v225 = vcombine.high %v217, %v217
    %v226 = vcombine.high %v224, %v224
    %v227 = vcombine.high %v139, %v139
    %v229 = vunpack.c.l.s4 1983009808
    %v230 = vunpack.c.0.s8 %v229
    %v231 = vlaneseq
    %v232 = vshrl.u32 %v231, 7
    %v233 = vsub.s32 %v230, %v232
    %v234 = vrot.slane %v139, %v233
    %v236 = vunpack.c.l.s4 1983009808
    %v237 = vunpack.c.0.s8 %v236
    %v238 = vlaneseq
    %v239 = vshrl.u32 %v238, 7
    %v240 = vsub.s32 %v237, %v239
    %v241 = vrot.slane %v227, %v240
    %v242 = vcombine.high %v234, %v234
    %v243 = vcombine.high %v241, %v241
    %v244 = vcombine.high %v140, %v140
    %v246 = vunpack.c.l.s4 1983009808
    %v247 = vunpack.c.0.s8 %v246
    %v248 = vlaneseq
    %v249 = vshrl.u32 %v248, 7
    %v250 = vsub.s32 %v247, %v249
    %v251 = vrot.slane %v140, %v250
    %v253 = vunpack.c.l.s4 1983009808
    %v254 = vunpack.c.0.s8 %v253
    %v255 = vlaneseq
    %v256 = vshrl.u32 %v255, 7
    %v257 = vsub.s32 %v254, %v256
    %v258 = vrot.slane %v244, %v257
    %v259 = vcombine.high %v251, %v251
    %v260 = vcombine.high %v169, %v169
    %v262 = vunpack.c.l.s4 1983009808
    %v263 = vunpack.c.0.s8 %v262
    %v264 = vlaneseq
    %v265 = vshrl.u32 %v264, 7
    %v266 = vsub.s32 %v263, %v265
    %v267 = vrot.slane %v169, %v266
    %v269 = vunpack.c.l.s4 1983009808
    %v270 = vunpack.c.0.s8 %v269
    %v271 = vlaneseq
    %v272 = vshrl.u32 %v271, 7
    %v273 = vsub.s32 %v270, %v272
    %v274 = vrot.slane %v260, %v273
    %v275 = vcombine.high %v267, %v267
    %v276 = vcombine.high %v274, %v274
    %v277 = vcombine.high %v170, %v170
    %v279 = vunpack.c.l.s4 1983009808
    %v280 = vunpack.c.0.s8 %v279
    %v281 = vlaneseq
    %v282 = vshrl.u32 %v281, 7
    %v283 = vsub.s32 %v280, %v282
    %v284 = vrot.slane %v170, %v283
    %v286 = vunpack.c.l.s4 1983009808
    %v287 = vunpack.c.0.s8 %v286
    %v288 = vlaneseq
    %v289 = vshrl.u32 %v288, 7
    %v290 = vsub.s32 %v287, %v289
    %v291 = vrot.slane %v277, %v290
    %v292 = vcombine.high %v284, %v284
    %v293 = vcombine.high %v291, %v291
    %v294 = vcombine.high %v171, %v171
    %v296 = vunpack.c.l.s4 1983009808
    %v297 = vunpack.c.0.s8 %v296
    %v298 = vlaneseq
    %v299 = vshrl.u32 %v298, 7
    %v300 = vsub.s32 %v297, %v299
    %v301 = vrot.slane %v171, %v300
    %v303 = vunpack.c.l.s4 1983009808
    %v304 = vunpack.c.0.s8 %v303
    %v305 = vlaneseq
    %v306 = vshrl.u32 %v305, 7
    %v307 = vsub.s32 %v304, %v306
    %v308 = vrot.slane %v294, %v307
    %v309 = vcombine.high %v301, %v301
    %v310 = vcombine.high %v308, %v308
    %v311 = vcombine.high %v172, %v172
    %v313 = vunpack.c.l.s4 1983009808
    %v314 = vunpack.c.0.s8 %v313
    %v315 = vlaneseq
    %v316 = vshrl.u32 %v315, 7
    %v317 = vsub.s32 %v314, %v316
    %v318 = vrot.slane %v172, %v317
    %v320 = vunpack.c.l.s4 1983009808
    %v321 = vunpack.c.0.s8 %v320
    %v322 = vlaneseq
    %v323 = vshrl.u32 %v322, 7
    %v324 = vsub.s32 %v321, %v323
    %v325 = vrot.slane %v311, %v324
    %v326 = vcombine.high %v318, %v318
    %v327 = vcombine.low %v200, %v208
    %v328 = vcombine.low %v207, %v209
    %v330 = vunpack.c.l.s4 1983009808
    %v331 = vunpack.c.0.s8 %v330
    %v332 = vlaneseq
    %v333 = vshrl.u32 %v332, 7
    %v334 = vsub.s32 %v331, %v333
    %v335 = vrot.slane %v327, %v334
    %v337 = vunpack.c.l.s4 1983009808
    %v338 = vunpack.c.0.s8 %v337
    %v339 = vlaneseq
    %v340 = vshrl.u32 %v339, 7
    %v341 = vsub.s32 %v338, %v340
    %v342 = vrot.slane %v328, %v341
    %v343 = vcombine.low %v335, %v342
    %v344 = vcombine.low %v217, %v225
    %v345 = vcombine.low %v224, %v226
    %v347 = vunpack.c.l.s4 1983009808
    %v348 = vunpack.c.0.s8 %v347
    %v349 = vlaneseq
    %v350 = vshrl.u32 %v349, 7
    %v351 = vsub.s32 %v348, %v350
    %v352 = vrot.slane %v344, %v351
    %v354 = vunpack.c.l.s4 1983009808
    %v355 = vunpack.c.0.s8 %v354
    %v356 = vlaneseq
    %v357 = vshrl.u32 %v356, 7
    %v358 = vsub.s32 %v355, %v357
    %v359 = vrot.slane %v345, %v358
    %v360 = vcombine.low %v352, %v359
    %v361 = vcombine.low %v234, %v242
    %v362 = vcombine.low %v241, %v243
    %v364 = vunpack.c.l.s4 1983009808
    %v365 = vunpack.c.0.s8 %v364
    %v366 = vlaneseq
    %v367 = vshrl.u32 %v366, 7
    %v368 = vsub.s32 %v365, %v367
    %v369 = vrot.slane %v361, %v368
    %v371 = vunpack.c.l.s4 1983009808
    %v372 = vunpack.c.0.s8 %v371
    %v373 = vlaneseq
    %v374 = vshrl.u32 %v373, 7
    %v375 = vsub.s32 %v372, %v374
    %v376 = vrot.slane %v362, %v375
    %v377 = vcombine.low %v369, %v376
    %v378 = vcombine.low %v251, %v259
    %v379 = vcombine.low %v258, %v267
    %v381 = vunpack.c.l.s4 1983009808
    %v382 = vunpack.c.0.s8 %v381
    %v383 = vlaneseq
    %v384 = vshrl.u32 %v383, 7
    %v385 = vsub.s32 %v382, %v384
    %v386 = vrot.slane %v378, %v385
    %v388 = vunpack.c.l.s4 1983009808
    %v389 = vunpack.c.0.s8 %v388
    %v390 = vlaneseq
    %v391 = vshrl.u32 %v390, 7
    %v392 = vsub.s32 %v389, %v391
    %v393 = vrot.slane %v379, %v392
    %v394 = vcombine.low %v386, %v393
    %v395 = vcombine.low %v275, %v274
    %v396 = vcombine.low %v276, %v284
    %v398 = vunpack.c.l.s4 1983009808
    %v399 = vunpack.c.0.s8 %v398
    %v400 = vlaneseq
    %v401 = vshrl.u32 %v400, 7
    %v402 = vsub.s32 %v399, %v401
    %v403 = vrot.slane %v395, %v402
    %v405 = vunpack.c.l.s4 1983009808
    %v406 = vunpack.c.0.s8 %v405
    %v407 = vlaneseq
    %v408 = vshrl.u32 %v407, 7
    %v409 = vsub.s32 %v406, %v408
    %v410 = vrot.slane %v396, %v409
    %v411 = vcombine.low %v403, %v410
    %v412 = vcombine.low %v292, %v291
    %v413 = vcombine.low %v293, %v301
    %v415 = vunpack.c.l.s4 1983009808
    %v416 = vunpack.c.0.s8 %v415
    %v417 = vlaneseq
    %v418 = vshrl.u32 %v417, 7
    %v419 = vsub.s32 %v416, %v418
    %v420 = vrot.slane %v412, %v419
    %v422 = vunpack.c.l.s4 1983009808
    %v423 = vunpack.c.0.s8 %v422
    %v424 = vlaneseq
    %v425 = vshrl.u32 %v424, 7
    %v426 = vsub.s32 %v423, %v425
    %v427 = vrot.slane %v413, %v426
    %v428 = vcombine.low %v420, %v427
    %v429 = vcombine.low %v309, %v308
    %v430 = vcombine.low %v310, %v318
    %v432 = vunpack.c.l.s4 1983009808
    %v433 = vunpack.c.0.s8 %v432
    %v434 = vlaneseq
    %v435 = vshrl.u32 %v434, 7
    %v436 = vsub.s32 %v433, %v435
    %v437 = vrot.slane %v429, %v436
    %v439 = vunpack.c.l.s4 1983009808
    %v440 = vunpack.c.0.s8 %v439
    %v441 = vlaneseq
    %v442 = vshrl.u32 %v441, 7
    %v443 = vsub.s32 %v440, %v442
    %v444 = vrot.slane %v430, %v443
    %v445 = vcombine.low %v437, %v444
    %v446 = vcombine.low %v326, %v325
    %v448 = vunpack.c.l.s4 1983009808
    %v449 = vunpack.c.0.s8 %v448
    %v450 = vlaneseq
    %v451 = vshrl.u32 %v450, 7
    %v452 = vsub.s32 %v449, %v451
    %v453 = vrot.slane %v446, %v452
    %vm454 = vcmask 195584
    %v455 = vsel %vm454, %v343, 0
    %v457 = vsel %vm454, %v360, 0
    %v459 = vsel %vm454, %v377, 0
    %v461 = vsel %vm454, %v394, 0
    %v463 = vsel %vm454, %v411, 0
    %v465 = vsel %vm454, %v428, 0
    %v467 = vsel %vm454, %v445, 0
    %v469 = vsel %vm454, %v453, 0
    %v472 = vsel %vm454, %v75, 0
    %474 = vmatprep.subr.mxu0 0.0
    %475 = vmatpush1.xpose.msra.mxu0 %v472
    %476 = vmatprep.subr.mxu0 0.0
    %477 = vmatpush1.xpose.msra.mxu0 0.0
    %478 = vmatprep.subr.mxu0 0.0
    %479 = vmatpush1.xpose.msra.mxu0 0.0
    %480 = vmatprep.subr.mxu0 0.0
    %481 = vmatpush1.xpose.msra.mxu0 0.0
    %482 = vmatprep.subr.mxu0 0.0
    %483 = vmatpush1.xpose.msra.mxu0 0.0
    %484 = vmatprep.subr.mxu0 0.0
    %485 = vmatpush1.xpose.msra.mxu0 0.0
    %486 = vmatprep.subr.mxu0 0.0
    %487 = vmatpush1.xpose.msra.mxu0 0.0
    %488 = vmatprep.subr.mxu0 0.0
    %489 = vmatpush1.xpose.msra.mxu0 0.0
    %490 = vmatprep.subr.mxu0 0.0
    %491 = vmatpush1.xpose.msra.mxu0 0.0
    %492 = vmatprep.subr.mxu0 0.0
    %493 = vmatpush1.xpose.msra.mxu0 0.0
    %494 = vmatprep.subr.mxu0 0.0
    %495 = vmatpush1.xpose.msra.mxu0 0.0
    %496 = vmatprep.subr.mxu0 0.0
    %497 = vmatpush1.xpose.msra.mxu0 0.0
    %498 = vmatprep.subr.mxu0 0.0
    %499 = vmatpush1.xpose.msra.mxu0 0.0
    %500 = vmatprep.subr.mxu0 0.0
    %501 = vmatpush1.xpose.msra.mxu0 0.0
    %502 = vmatprep.subr.mxu0 0.0
    %503 = vmatpush1.xpose.msra.mxu0 0.0
    %504 = vmatprep.subr.mxu0 0.0
    %505 = vmatpush1.xpose.msra.mxu0 0.0
    %506 = vmatprep.subr.mxu0 0.0
    %507 = vmatpush1.xpose.msra.mxu0 0.0
    %508 = vmatprep.subr.mxu0 0.0
    %509 = vmatpush1.xpose.msra.mxu0 0.0
    %510 = vmatprep.subr.mxu0 0.0
    %511 = vmatpush1.xpose.msra.mxu0 0.0
    %512 = vmatprep.subr.mxu0 0.0
    %513 = vmatpush1.xpose.msra.mxu0 0.0
    %514 = vmatprep.subr.mxu0 0.0
    %515 = vmatpush1.xpose.msra.mxu0 0.0
    %516 = vmatprep.subr.mxu0 0.0
    %517 = vmatpush1.xpose.msra.mxu0 0.0
    %518 = vmatprep.subr.mxu0 0.0
    %519 = vmatpush1.xpose.msra.mxu0 0.0
    %520 = vmatprep.subr.mxu0 0.0
    %521 = vmatpush1.xpose.msra.mxu0 0.0
    %522 = vmatprep.subr.mxu0 0.0
    %523 = vmatpush1.xpose.msra.mxu0 0.0
    %524 = vmatprep.subr.mxu0 0.0
    %525 = vmatpush1.xpose.msra.mxu0 0.0
    %526 = vmatprep.subr.mxu0 0.0
    %527 = vmatpush1.xpose.msra.mxu0 0.0
    %528 = vmatprep.subr.mxu0 0.0
    %529 = vmatpush1.xpose.msra.mxu0 0.0
    %530 = vmatprep.subr.mxu0 0.0
    %531 = vmatpush1.xpose.msra.mxu0 0.0
    %532 = vmatprep.subr.mxu0 0.0
    %533 = vmatpush1.xpose.msra.mxu0 0.0
    %534 = vmatprep.subr.mxu0 0.0
    %535 = vmatpush1.xpose.msra.mxu0 0.0
    %536 = vmatprep.subr.mxu0 0.0
    %537 = vmatpush1.xpose.msra.mxu0 0.0
    %538 = vmatprep.mubr.f32.mxu0 0.0
    %539 = vmatmul.mubr.f32.gmra.mrb[0].mxu0 %v455
    %v540 = vpop.f32.mrb[0].mxu0
    %v541 = vadd.f32 0.0, %v540
    %v542 = vpop.f32.mrb[0].mxu0
    %543 = vmatprep.mubr.f32.mxu0 0.0
    %544 = vmatmul.mubr.f32.gmra.mrb[0].mxu0 %v457
    %v545 = vpop.f32.mrb[0].mxu0
    %v546 = vadd.f32 0.0, %v545
    %v547 = vpop.f32.mrb[0].mxu0
    %548 = vmatprep.mubr.f32.mxu0 0.0
    %549 = vmatmul.mubr.f32.gmra.mrb[0].mxu0 %v459
    %v550 = vpop.f32.mrb[0].mxu0
    %v551 = vadd.f32 0.0, %v550
    %v552 = vpop.f32.mrb[0].mxu0
    %553 = vmatprep.mubr.f32.mxu0 0.0
    %554 = vmatmul.mubr.f32.gmra.mrb[0].mxu0 %v461
    %v555 = vpop.f32.mrb[0].mxu0
    %v556 = vadd.f32 0.0, %v555
    %v557 = vpop.f32.mrb[0].mxu0
    %558 = vmatprep.mubr.f32.mxu0 0.0
    %559 = vmatmul.mubr.f32.gmra.mrb[0].mxu0 %v463
    %v560 = vpop.f32.mrb[0].mxu0
    %v561 = vadd.f32 0.0, %v560
    %v562 = vpop.f32.mrb[0].mxu0
    %563 = vmatprep.mubr.f32.mxu0 0.0
    %564 = vmatmul.mubr.f32.gmra.mrb[0].mxu0 %v465
    %v565 = vpop.f32.mrb[0].mxu0
    %v566 = vadd.f32 0.0, %v565
    %v567 = vpop.f32.mrb[0].mxu0
    %568 = vmatprep.mubr.f32.mxu0 0.0
    %569 = vmatmul.mubr.f32.gmra.mrb[0].mxu0 %v467
    %v570 = vpop.f32.mrb[0].mxu0
    %v571 = vadd.f32 0.0, %v570
    %v572 = vpop.f32.mrb[0].mxu0
    %573 = vmatprep.mubr.f32.mxu0 0.0
    %574 = vmatmul.mubr.f32.gmra.mrb[0].mxu0 %v469
    %v575 = vpop.f32.mrb[0].mxu0
    %v576 = vadd.f32 0.0, %v575
    %v577 = vpop.f32.mrb[0].mxu0
    %578 = vdwg.mxu0
    %v587 = vcombine.high %v541, %v541
    %v589 = vunpack.c.l.s4 1983009808
    %v590 = vunpack.c.0.s8 %v589
    %v591 = vlaneseq
    %v592 = vshrl.u32 %v591, 7
    %v593 = vsub.s32 %v590, %v592
    %v594 = vrot.slane %v541, %v593
    %v596 = vunpack.c.l.s4 1983009808
    %v597 = vunpack.c.0.s8 %v596
    %v598 = vlaneseq
    %v599 = vshrl.u32 %v598, 7
    %v600 = vsub.s32 %v597, %v599
    %v601 = vrot.slane %v587, %v600
    %v602 = vcombine.high %v594, %v594
    %v603 = vcombine.high %v601, %v601
    %v604 = vcombine.high %v546, %v546
    %v606 = vunpack.c.l.s4 1983009808
    %v607 = vunpack.c.0.s8 %v606
    %v608 = vlaneseq
    %v609 = vshrl.u32 %v608, 7
    %v610 = vsub.s32 %v607, %v609
    %v611 = vrot.slane %v546, %v610
    %v613 = vunpack.c.l.s4 1983009808
    %v614 = vunpack.c.0.s8 %v613
    %v615 = vlaneseq
    %v616 = vshrl.u32 %v615, 7
    %v617 = vsub.s32 %v614, %v616
    %v618 = vrot.slane %v604, %v617
    %v619 = vcombine.high %v611, %v611
    %v620 = vcombine.high %v618, %v618
    %v621 = vcombine.high %v551, %v551
    %v623 = vunpack.c.l.s4 1983009808
    %v624 = vunpack.c.0.s8 %v623
    %v625 = vlaneseq
    %v626 = vshrl.u32 %v625, 7
    %v627 = vsub.s32 %v624, %v626
    %v628 = vrot.slane %v551, %v627
    %v630 = vunpack.c.l.s4 1983009808
    %v631 = vunpack.c.0.s8 %v630
    %v632 = vlaneseq
    %v633 = vshrl.u32 %v632, 7
    %v634 = vsub.s32 %v631, %v633
    %v635 = vrot.slane %v621, %v634
    %v636 = vcombine.high %v628, %v628
    %v637 = vcombine.high %v635, %v635
    %v638 = vcombine.high %v556, %v556
    %v640 = vunpack.c.l.s4 1983009808
    %v641 = vunpack.c.0.s8 %v640
    %v642 = vlaneseq
    %v643 = vshrl.u32 %v642, 7
    %v644 = vsub.s32 %v641, %v643
    %v645 = vrot.slane %v556, %v644
    %v647 = vunpack.c.l.s4 1983009808
    %v648 = vunpack.c.0.s8 %v647
    %v649 = vlaneseq
    %v650 = vshrl.u32 %v649, 7
    %v651 = vsub.s32 %v648, %v650
    %v652 = vrot.slane %v638, %v651
    %v653 = vcombine.high %v645, %v645
    %v654 = vcombine.high %v652, %v652
    %v655 = vcombine.high %v561, %v561
    %v657 = vunpack.c.l.s4 1983009808
    %v658 = vunpack.c.0.s8 %v657
    %v659 = vlaneseq
    %v660 = vshrl.u32 %v659, 7
    %v661 = vsub.s32 %v658, %v660
    %v662 = vrot.slane %v561, %v661
    %v664 = vunpack.c.l.s4 1983009808
    %v665 = vunpack.c.0.s8 %v664
    %v666 = vlaneseq
    %v667 = vshrl.u32 %v666, 7
    %v668 = vsub.s32 %v665, %v667
    %v669 = vrot.slane %v655, %v668
    %v670 = vcombine.high %v662, %v662
    %v671 = vcombine.high %v669, %v669
    %v672 = vcombine.high %v566, %v566
    %v674 = vunpack.c.l.s4 1983009808
    %v675 = vunpack.c.0.s8 %v674
    %v676 = vlaneseq
    %v677 = vshrl.u32 %v676, 7
    %v678 = vsub.s32 %v675, %v677
    %v679 = vrot.slane %v566, %v678
    %v681 = vunpack.c.l.s4 1983009808
    %v682 = vunpack.c.0.s8 %v681
    %v683 = vlaneseq
    %v684 = vshrl.u32 %v683, 7
    %v685 = vsub.s32 %v682, %v684
    %v686 = vrot.slane %v672, %v685
    %v687 = vcombine.high %v679, %v679
    %v688 = vcombine.high %v686, %v686
    %v689 = vcombine.high %v571, %v571
    %v691 = vunpack.c.l.s4 1983009808
    %v692 = vunpack.c.0.s8 %v691
    %v693 = vlaneseq
    %v694 = vshrl.u32 %v693, 7
    %v695 = vsub.s32 %v692, %v694
    %v696 = vrot.slane %v571, %v695
    %v698 = vunpack.c.l.s4 1983009808
    %v699 = vunpack.c.0.s8 %v698
    %v700 = vlaneseq
    %v701 = vshrl.u32 %v700, 7
    %v702 = vsub.s32 %v699, %v701
    %v703 = vrot.slane %v689, %v702
    %v704 = vcombine.high %v696, %v696
    %v705 = vcombine.high %v703, %v703
    %v707 = vunpack.c.l.s4 1983009808
    %v708 = vunpack.c.0.s8 %v707
    %v709 = vlaneseq
    %v710 = vshrl.u32 %v709, 7
    %v711 = vsub.s32 %v708, %v710
    %v712 = vrot.slane %v576, %v711
    %v713 = vcombine.high %v712, %v712
    %v714 = vcombine.low %v594, %v602
    %v715 = vcombine.low %v601, %v603
    %v717 = vunpack.c.l.s4 1983009808
    %v718 = vunpack.c.0.s8 %v717
    %v719 = vlaneseq
    %v720 = vshrl.u32 %v719, 7
    %v721 = vsub.s32 %v718, %v720
    %v722 = vrot.slane %v714, %v721
    %v724 = vunpack.c.l.s4 1983009808
    %v725 = vunpack.c.0.s8 %v724
    %v726 = vlaneseq
    %v727 = vshrl.u32 %v726, 7
    %v728 = vsub.s32 %v725, %v727
    %v729 = vrot.slane %v715, %v728
    %v730 = vcombine.low %v722, %v729
    %v731 = vcombine.low %v611, %v619
    %v732 = vcombine.low %v618, %v620
    %v734 = vunpack.c.l.s4 1983009808
    %v735 = vunpack.c.0.s8 %v734
    %v736 = vlaneseq
    %v737 = vshrl.u32 %v736, 7
    %v738 = vsub.s32 %v735, %v737
    %v739 = vrot.slane %v731, %v738
    %v741 = vunpack.c.l.s4 1983009808
    %v742 = vunpack.c.0.s8 %v741
    %v743 = vlaneseq
    %v744 = vshrl.u32 %v743, 7
    %v745 = vsub.s32 %v742, %v744
    %v746 = vrot.slane %v732, %v745
    %v747 = vcombine.low %v739, %v746
    %v748 = vcombine.low %v628, %v636
    %v749 = vcombine.low %v635, %v637
    %v751 = vunpack.c.l.s4 1983009808
    %v752 = vunpack.c.0.s8 %v751
    %v753 = vlaneseq
    %v754 = vshrl.u32 %v753, 7
    %v755 = vsub.s32 %v752, %v754
    %v756 = vrot.slane %v748, %v755
    %v758 = vunpack.c.l.s4 1983009808
    %v759 = vunpack.c.0.s8 %v758
    %v760 = vlaneseq
    %v761 = vshrl.u32 %v760, 7
    %v762 = vsub.s32 %v759, %v761
    %v763 = vrot.slane %v749, %v762
    %v764 = vcombine.low %v756, %v763
    %v765 = vcombine.low %v645, %v653
    %v767 = vunpack.c.l.s4 1983009808
    %v768 = vunpack.c.0.s8 %v767
    %v769 = vlaneseq
    %v770 = vshrl.u32 %v769, 7
    %v771 = vsub.s32 %v768, %v770
    %v772 = vrot.slane %v765, %v771
    %v774 = vunpack.c.l.s4 1983009808
    %v775 = vunpack.c.0.s8 %v774
    %v776 = vlaneseq
    %v777 = vshrl.u32 %v776, 7
    %v778 = vsub.s32 %v775, %v777
    %v779 = vrot.slane %v652, %v778
    %v780 = vcombine.low %v772, %v779
    %v781 = vcombine.low %v654, %v662
    %v782 = vcombine.low %v670, %v669
    %v784 = vunpack.c.l.s4 1983009808
    %v785 = vunpack.c.0.s8 %v784
    %v786 = vlaneseq
    %v787 = vshrl.u32 %v786, 7
    %v788 = vsub.s32 %v785, %v787
    %v789 = vrot.slane %v781, %v788
    %v791 = vunpack.c.l.s4 1983009808
    %v792 = vunpack.c.0.s8 %v791
    %v793 = vlaneseq
    %v794 = vshrl.u32 %v793, 7
    %v795 = vsub.s32 %v792, %v794
    %v796 = vrot.slane %v782, %v795
    %v797 = vcombine.low %v789, %v796
    %v798 = vcombine.low %v671, %v679
    %v799 = vcombine.low %v687, %v686
    %v801 = vunpack.c.l.s4 1983009808
    %v802 = vunpack.c.0.s8 %v801
    %v803 = vlaneseq
    %v804 = vshrl.u32 %v803, 7
    %v805 = vsub.s32 %v802, %v804
    %v806 = vrot.slane %v798, %v805
    %v808 = vunpack.c.l.s4 1983009808
    %v809 = vunpack.c.0.s8 %v808
    %v810 = vlaneseq
    %v811 = vshrl.u32 %v810, 7
    %v812 = vsub.s32 %v809, %v811
    %v813 = vrot.slane %v799, %v812
    %v814 = vcombine.low %v806, %v813
    %v815 = vcombine.low %v688, %v696
    %v816 = vcombine.low %v704, %v703
    %v818 = vunpack.c.l.s4 1983009808
    %v819 = vunpack.c.0.s8 %v818
    %v820 = vlaneseq
    %v821 = vshrl.u32 %v820, 7
    %v822 = vsub.s32 %v819, %v821
    %v823 = vrot.slane %v815, %v822
    %v825 = vunpack.c.l.s4 1983009808
    %v826 = vunpack.c.0.s8 %v825
    %v827 = vlaneseq
    %v828 = vshrl.u32 %v827, 7
    %v829 = vsub.s32 %v826, %v828
    %v830 = vrot.slane %v816, %v829
    %v831 = vcombine.low %v823, %v830
    %v832 = vcombine.low %v705, %v712
    %v834 = vunpack.c.l.s4 1983009808
    %v835 = vunpack.c.0.s8 %v834
    %v836 = vlaneseq
    %v837 = vshrl.u32 %v836, 7
    %v838 = vsub.s32 %v835, %v837
    %v839 = vrot.slane %v832, %v838
    %v841 = vunpack.c.l.s4 1983009808
    %v842 = vunpack.c.0.s8 %v841
    %v843 = vlaneseq
    %v844 = vshrl.u32 %v843, 7
    %v845 = vsub.s32 %v842, %v844
    %v846 = vrot.slane %v713, %v845
    %v847 = vcombine.low %v839, %v846
    %856 = vxpose.xlu0.b32.start [1/16] %v730, 128
    %857 = vxpose.xlu0.b32.cont [2/16] %v747, 128
    %858 = vxpose.xlu0.b32.cont [3/16] %v764, 128
    %859 = vxpose.xlu0.b32.cont [4/16] %v780, 128
    %860 = vxpose.xlu0.b32.cont [5/16] 0.0, 128
    %861 = vxpose.xlu0.b32.cont [6/16] 0.0, 128
    %862 = vxpose.xlu0.b32.cont [7/16] 0.0, 128
    %863 = vxpose.xlu0.b32.cont [8/16] 0.0, 128
    %864 = vxpose.xlu0.b32.cont [9/16] 0.0, 128
    %865 = vxpose.xlu0.b32.cont [10/16] 0.0, 128
    %866 = vxpose.xlu0.b32.cont [11/16] 0.0, 128
    %867 = vxpose.xlu0.b32.cont [12/16] 0.0, 128
    %868 = vxpose.xlu0.b32.cont [13/16] 0.0, 128
    %869 = vxpose.xlu0.b32.cont [14/16] 0.0, 128
    %870 = vxpose.xlu0.b32.cont [15/16] 0.0, 128
    %871 = vxpose.xlu0.b32.end [16/16] 0.0, 128
    %v872 = vpop.trf.xlu0
    %v873 = vpop.trf.xlu0
    %v874 = vpop.trf.xlu0
    %v875 = vpop.trf.xlu0
    %v876 = vpop.trf.xlu0
    %v877 = vpop.trf.xlu0
    %v878 = vpop.trf.xlu0
    %v879 = vpop.trf.xlu0
    %v880 = vpop.trf.xlu0
    %v881 = vpop.trf.xlu0
    %v882 = vpop.trf.xlu0
    %v883 = vpop.trf.xlu0
    %v884 = vpop.trf.xlu0
    %v885 = vpop.trf.xlu0
    %v886 = vpop.trf.xlu0
    %v887 = vpop.trf.xlu0
    %888 = vxpose.xlu0.b32.start [1/16] %v797, 128
    %889 = vxpose.xlu0.b32.cont [2/16] %v814, 128
    %890 = vxpose.xlu0.b32.cont [3/16] %v831, 128
    %891 = vxpose.xlu0.b32.cont [4/16] %v847, 128
    %892 = vxpose.xlu0.b32.cont [5/16] 0.0, 128
    %893 = vxpose.xlu0.b32.cont [6/16] 0.0, 128
    %894 = vxpose.xlu0.b32.cont [7/16] 0.0, 128
    %895 = vxpose.xlu0.b32.cont [8/16] 0.0, 128
    %896 = vxpose.xlu0.b32.cont [9/16] 0.0, 128
    %897 = vxpose.xlu0.b32.cont [10/16] 0.0, 128
    %898 = vxpose.xlu0.b32.cont [11/16] 0.0, 128
    %899 = vxpose.xlu0.b32.cont [12/16] 0.0, 128
    %900 = vxpose.xlu0.b32.cont [13/16] 0.0, 128
    %901 = vxpose.xlu0.b32.cont [14/16] 0.0, 128
    %902 = vxpose.xlu0.b32.cont [15/16] 0.0, 128
    %903 = vxpose.xlu0.b32.end [16/16] 0.0, 128
    %v904 = vpop.trf.xlu0
    %v905 = vpop.trf.xlu0
    %v906 = vpop.trf.xlu0
    %v907 = vpop.trf.xlu0
    %v908 = vpop.trf.xlu0
    %v909 = vpop.trf.xlu0
    %v910 = vpop.trf.xlu0
    %v911 = vpop.trf.xlu0
    %v912 = vpop.trf.xlu0
    %v913 = vpop.trf.xlu0
    %v914 = vpop.trf.xlu0
    %v915 = vpop.trf.xlu0
    %v916 = vpop.trf.xlu0
    %v917 = vpop.trf.xlu0
    %v918 = vpop.trf.xlu0
    %v919 = vpop.trf.xlu0
    %921 = vset.pattern.permute.xlu0 0
    %922 = vperm.xlu0 %921, %v83
    %v923 = vpop.permute.xlu0 %922
    %v925 = vadd.f32 %v872, %v923
    %v926 = vadd.f32 %v904, %v923
    %vm927 = vcmask 244736
    %v928 = vsel %vm927, %v925, 0.0
    %v929 = vsel %vm927, %v926, 0.0
    %v930 = vadd.f32 %v928, %v929
    %931 = vadd.xlane.f32.xlu0 %v930
    %v932 = vpop.xlane.xlu0 %931
    %v933 = vmul.f32 %v932, 0.016666668
    %v934 = vmul.f32 %v925, %v925
    %v935 = vmul.f32 %v926, %v926
    %v936 = vsel %vm927, %v934, 0.0
    %v937 = vsel %vm927, %v935, 0.0
    %v938 = vadd.f32 %v936, %v937
    %939 = vadd.xlane.f32.xlu0 %v938
    %v940 = vpop.xlane.xlu0 %939
    %v941 = vmul.f32 %v940, 0.016666668
    %v942 = vmul.f32 %v933, %v933
    %v943 = vsub.f32 %v941, %v942
    %v944 = vmax.f32 %v943, 0.0
    %v945 = vadd.f32 %v944, 1e-05
    %v946 = vrsqrt.pop %v945
    %v947 = vmul.f32 %v946, %v84
    %v948 = vmul.f32 %v933, %v947
    %v949 = vsub.f32 %v85, %v948
    %951 = vset.pattern.permute.xlu0 0
    %952 = vperm.xlu0 %951, %v947
    %v953 = vpop.permute.xlu0 %952
    %v955 = vmul.f32 %v925, %v953
    %v956 = vmul.f32 %v926, %v953
    %958 = vset.pattern.permute.xlu0 0
    %959 = vperm.xlu0 %958, %v949
    %v960 = vpop.permute.xlu0 %959
    %v962 = vadd.f32 %v955, %v960
    %v963 = vadd.f32 %v956, %v960
    %v964 = vmax.f32 %v962, 0.0
    %v965 = vmax.f32 %v963, 0.0
    %966 = vxpose.xlu0.b32.start [1/16] %v964, 128
    %967 = vxpose.xlu0.b32.cont [2/16] 0.0, 128
    %968 = vxpose.xlu0.b32.cont [3/16] 0.0, 128
    %969 = vxpose.xlu0.b32.cont [4/16] 0.0, 128
    %970 = vxpose.xlu0.b32.cont [5/16] 0.0, 128
    %971 = vxpose.xlu0.b32.cont [6/16] 0.0, 128
    %972 = vxpose.xlu0.b32.cont [7/16] 0.0, 128
    %973 = vxpose.xlu0.b32.cont [8/16] 0.0, 128
    %974 = vxpose.xlu0.b32.cont [9/16] 0.0, 128
    %975 = vxpose.xlu0.b32.cont [10/16] 0.0, 128
    %976 = vxpose.xlu0.b32.cont [11/16] 0.0, 128
    %977 = vxpose.xlu0.b32.cont [12/16] 0.0, 128
    %978 = vxpose.xlu0.b32.cont [13/16] 0.0, 128
    %979 = vxpose.xlu0.b32.cont [14/16] 0.0, 128
    %980 = vxpose.xlu0.b32.cont [15/16] 0.0, 128
    %981 = vxpose.xlu0.b32.end [16/16] 0.0, 128
    %v982 = vpop.trf.xlu0
    %v983 = vpop.trf.xlu0
    %v984 = vpop.trf.xlu0
    %v985 = vpop.trf.xlu0
    %v986 = vpop.trf.xlu0
    %v987 = vpop.trf.xlu0
    %v988 = vpop.trf.xlu0
    %v989 = vpop.trf.xlu0
    %v990 = vpop.trf.xlu0
    %v991 = vpop.trf.xlu0
    %v992 = vpop.trf.xlu0
    %v993 = vpop.trf.xlu0
    %v994 = vpop.trf.xlu0
    %v995 = vpop.trf.xlu0
    %v996 = vpop.trf.xlu0
    %v997 = vpop.trf.xlu0
    %998 = vxpose.xlu0.b32.start [1/16] %v965, 128
    %999 = vxpose.xlu0.b32.cont [2/16] 0.0, 128
    %1000 = vxpose.xlu0.b32.cont [3/16] 0.0, 128
    %1001 = vxpose.xlu0.b32.cont [4/16] 0.0, 128
    %1002 = vxpose.xlu0.b32.cont [5/16] 0.0, 128
    %1003 = vxpose.xlu0.b32.cont [6/16] 0.0, 128
    %1004 = vxpose.xlu0.b32.cont [7/16] 0.0, 128
    %1005 = vxpose.xlu0.b32.cont [8/16] 0.0, 128
    %1006 = vxpose.xlu0.b32.cont [9/16] 0.0, 128
    %1007 = vxpose.xlu0.b32.cont [10/16] 0.0, 128
    %1008 = vxpose.xlu0.b32.cont [11/16] 0.0, 128
    %1009 = vxpose.xlu0.b32.cont [12/16] 0.0, 128
    %1010 = vxpose.xlu0.b32.cont [13/16] 0.0, 128
    %1011 = vxpose.xlu0.b32.cont [14/16] 0.0, 128
    %1012 = vxpose.xlu0.b32.cont [15/16] 0.0, 128
    %1013 = vxpose.xlu0.b32.end [16/16] 0.0, 128
    %v1014 = vpop.trf.xlu0
    %v1015 = vpop.trf.xlu0
    %v1016 = vpop.trf.xlu0
    %v1017 = vpop.trf.xlu0
    %v1018 = vpop.trf.xlu0
    %v1019 = vpop.trf.xlu0
    %v1020 = vpop.trf.xlu0
    %v1021 = vpop.trf.xlu0
    %v1022 = vpop.trf.xlu0
    %v1023 = vpop.trf.xlu0
    %v1024 = vpop.trf.xlu0
    %v1025 = vpop.trf.xlu0
    %v1026 = vpop.trf.xlu0
    %v1027 = vpop.trf.xlu0
    %v1028 = vpop.trf.xlu0
    %v1029 = vpop.trf.xlu0
    %v1038 = vcombine.high %v982, %v982
    %v1040 = vunpack.c.l.s4 1983009808
    %v1041 = vunpack.c.0.s8 %v1040
    %v1042 = vlaneseq
    %v1043 = vshrl.u32 %v1042, 7
    %v1044 = vsub.s32 %v1041, %v1043
    %v1045 = vrot.slane %v982, %v1044
    %v1047 = vunpack.c.l.s4 1983009808
    %v1048 = vunpack.c.0.s8 %v1047
    %v1049 = vlaneseq
    %v1050 = vshrl.u32 %v1049, 7
    %v1051 = vsub.s32 %v1048, %v1050
    %v1052 = vrot.slane %v1038, %v1051
    %v1053 = vcombine.high %v1045, %v1045
    %v1054 = vcombine.high %v1052, %v1052
    %v1055 = vcombine.high %v983, %v983
    %v1057 = vunpack.c.l.s4 1983009808
    %v1058 = vunpack.c.0.s8 %v1057
    %v1059 = vlaneseq
    %v1060 = vshrl.u32 %v1059, 7
    %v1061 = vsub.s32 %v1058, %v1060
    %v1062 = vrot.slane %v983, %v1061
    %v1064 = vunpack.c.l.s4 1983009808
    %v1065 = vunpack.c.0.s8 %v1064
    %v1066 = vlaneseq
    %v1067 = vshrl.u32 %v1066, 7
    %v1068 = vsub.s32 %v1065, %v1067
    %v1069 = vrot.slane %v1055, %v1068
    %v1070 = vcombine.high %v1062, %v1062
    %v1071 = vcombine.high %v1069, %v1069
    %v1072 = vcombine.high %v984, %v984
    %v1074 = vunpack.c.l.s4 1983009808
    %v1075 = vunpack.c.0.s8 %v1074
    %v1076 = vlaneseq
    %v1077 = vshrl.u32 %v1076, 7
    %v1078 = vsub.s32 %v1075, %v1077
    %v1079 = vrot.slane %v984, %v1078
    %v1081 = vunpack.c.l.s4 1983009808
    %v1082 = vunpack.c.0.s8 %v1081
    %v1083 = vlaneseq
    %v1084 = vshrl.u32 %v1083, 7
    %v1085 = vsub.s32 %v1082, %v1084
    %v1086 = vrot.slane %v1072, %v1085
    %v1087 = vcombine.high %v1079, %v1079
    %v1088 = vcombine.high %v1086, %v1086
    %v1089 = vcombine.high %v985, %v985
    %v1091 = vunpack.c.l.s4 1983009808
    %v1092 = vunpack.c.0.s8 %v1091
    %v1093 = vlaneseq
    %v1094 = vshrl.u32 %v1093, 7
    %v1095 = vsub.s32 %v1092, %v1094
    %v1096 = vrot.slane %v985, %v1095
    %v1098 = vunpack.c.l.s4 1983009808
    %v1099 = vunpack.c.0.s8 %v1098
    %v1100 = vlaneseq
    %v1101 = vshrl.u32 %v1100, 7
    %v1102 = vsub.s32 %v1099, %v1101
    %v1103 = vrot.slane %v1089, %v1102
    %v1104 = vcombine.high %v1096, %v1096
    %v1105 = vcombine.high %v1014, %v1014
    %v1107 = vunpack.c.l.s4 1983009808
    %v1108 = vunpack.c.0.s8 %v1107
    %v1109 = vlaneseq
    %v1110 = vshrl.u32 %v1109, 7
    %v1111 = vsub.s32 %v1108, %v1110
    %v1112 = vrot.slane %v1014, %v1111
    %v1114 = vunpack.c.l.s4 1983009808
    %v1115 = vunpack.c.0.s8 %v1114
    %v1116 = vlaneseq
    %v1117 = vshrl.u32 %v1116, 7
    %v1118 = vsub.s32 %v1115, %v1117
    %v1119 = vrot.slane %v1105, %v1118
    %v1120 = vcombine.high %v1112, %v1112
    %v1121 = vcombine.high %v1119, %v1119
    %v1122 = vcombine.high %v1015, %v1015
    %v1124 = vunpack.c.l.s4 1983009808
    %v1125 = vunpack.c.0.s8 %v1124
    %v1126 = vlaneseq
    %v1127 = vshrl.u32 %v1126, 7
    %v1128 = vsub.s32 %v1125, %v1127
    %v1129 = vrot.slane %v1015, %v1128
    %v1131 = vunpack.c.l.s4 1983009808
    %v1132 = vunpack.c.0.s8 %v1131
    %v1133 = vlaneseq
    %v1134 = vshrl.u32 %v1133, 7
    %v1135 = vsub.s32 %v1132, %v1134
    %v1136 = vrot.slane %v1122, %v1135
    %v1137 = vcombine.high %v1129, %v1129
    %v1138 = vcombine.high %v1136, %v1136
    %v1139 = vcombine.high %v1016, %v1016
    %v1141 = vunpack.c.l.s4 1983009808
    %v1142 = vunpack.c.0.s8 %v1141
    %v1143 = vlaneseq
    %v1144 = vshrl.u32 %v1143, 7
    %v1145 = vsub.s32 %v1142, %v1144
    %v1146 = vrot.slane %v1016, %v1145
    %v1148 = vunpack.c.l.s4 1983009808
    %v1149 = vunpack.c.0.s8 %v1148
    %v1150 = vlaneseq
    %v1151 = vshrl.u32 %v1150, 7
    %v1152 = vsub.s32 %v1149, %v1151
    %v1153 = vrot.slane %v1139, %v1152
    %v1154 = vcombine.high %v1146, %v1146
    %v1155 = vcombine.high %v1153, %v1153
    %v1156 = vcombine.high %v1017, %v1017
    %v1158 = vunpack.c.l.s4 1983009808
    %v1159 = vunpack.c.0.s8 %v1158
    %v1160 = vlaneseq
    %v1161 = vshrl.u32 %v1160, 7
    %v1162 = vsub.s32 %v1159, %v1161
    %v1163 = vrot.slane %v1017, %v1162
    %v1165 = vunpack.c.l.s4 1983009808
    %v1166 = vunpack.c.0.s8 %v1165
    %v1167 = vlaneseq
    %v1168 = vshrl.u32 %v1167, 7
    %v1169 = vsub.s32 %v1166, %v1168
    %v1170 = vrot.slane %v1156, %v1169
    %v1171 = vcombine.high %v1163, %v1163
    %v1172 = vcombine.low %v1045, %v1053
    %v1173 = vcombine.low %v1052, %v1054
    %v1175 = vunpack.c.l.s4 1983009808
    %v1176 = vunpack.c.0.s8 %v1175
    %v1177 = vlaneseq
    %v1178 = vshrl.u32 %v1177, 7
    %v1179 = vsub.s32 %v1176, %v1178
    %v1180 = vrot.slane %v1172, %v1179
    %v1182 = vunpack.c.l.s4 1983009808
    %v1183 = vunpack.c.0.s8 %v1182
    %v1184 = vlaneseq
    %v1185 = vshrl.u32 %v1184, 7
    %v1186 = vsub.s32 %v1183, %v1185
    %v1187 = vrot.slane %v1173, %v1186
    %v1188 = vcombine.low %v1180, %v1187
    %v1189 = vcombine.low %v1062, %v1070
    %v1190 = vcombine.low %v1069, %v1071
    %v1192 = vunpack.c.l.s4 1983009808
    %v1193 = vunpack.c.0.s8 %v1192
    %v1194 = vlaneseq
    %v1195 = vshrl.u32 %v1194, 7
    %v1196 = vsub.s32 %v1193, %v1195
    %v1197 = vrot.slane %v1189, %v1196
    %v1199 = vunpack.c.l.s4 1983009808
    %v1200 = vunpack.c.0.s8 %v1199
    %v1201 = vlaneseq
    %v1202 = vshrl.u32 %v1201, 7
    %v1203 = vsub.s32 %v1200, %v1202
    %v1204 = vrot.slane %v1190, %v1203
    %v1205 = vcombine.low %v1197, %v1204
    %v1206 = vcombine.low %v1079, %v1087
    %v1207 = vcombine.low %v1086, %v1088
    %v1209 = vunpack.c.l.s4 1983009808
    %v1210 = vunpack.c.0.s8 %v1209
    %v1211 = vlaneseq
    %v1212 = vshrl.u32 %v1211, 7
    %v1213 = vsub.s32 %v1210, %v1212
    %v1214 = vrot.slane %v1206, %v1213
    %v1216 = vunpack.c.l.s4 1983009808
    %v1217 = vunpack.c.0.s8 %v1216
    %v1218 = vlaneseq
    %v1219 = vshrl.u32 %v1218, 7
    %v1220 = vsub.s32 %v1217, %v1219
    %v1221 = vrot.slane %v1207, %v1220
    %v1222 = vcombine.low %v1214, %v1221
    %v1223 = vcombine.low %v1096, %v1104
    %v1224 = vcombine.low %v1103, %v1112
    %v1226 = vunpack.c.l.s4 1983009808
    %v1227 = vunpack.c.0.s8 %v1226
    %v1228 = vlaneseq
    %v1229 = vshrl.u32 %v1228, 7
    %v1230 = vsub.s32 %v1227, %v1229
    %v1231 = vrot.slane %v1223, %v1230
    %v1233 = vunpack.c.l.s4 1983009808
    %v1234 = vunpack.c.0.s8 %v1233
    %v1235 = vlaneseq
    %v1236 = vshrl.u32 %v1235, 7
    %v1237 = vsub.s32 %v1234, %v1236
    %v1238 = vrot.slane %v1224, %v1237
    %v1239 = vcombine.low %v1231, %v1238
    %v1240 = vcombine.low %v1120, %v1119
    %v1241 = vcombine.low %v1121, %v1129
    %v1243 = vunpack.c.l.s4 1983009808
    %v1244 = vunpack.c.0.s8 %v1243
    %v1245 = vlaneseq
    %v1246 = vshrl.u32 %v1245, 7
    %v1247 = vsub.s32 %v1244, %v1246
    %v1248 = vrot.slane %v1240, %v1247
    %v1250 = vunpack.c.l.s4 1983009808
    %v1251 = vunpack.c.0.s8 %v1250
    %v1252 = vlaneseq
    %v1253 = vshrl.u32 %v1252, 7
    %v1254 = vsub.s32 %v1251, %v1253
    %v1255 = vrot.slane %v1241, %v1254
    %v1256 = vcombine.low %v1248, %v1255
    %v1257 = vcombine.low %v1137, %v1136
    %v1258 = vcombine.low %v1138, %v1146
    %v1260 = vunpack.c.l.s4 1983009808
    %v1261 = vunpack.c.0.s8 %v1260
    %v1262 = vlaneseq
    %v1263 = vshrl.u32 %v1262, 7
    %v1264 = vsub.s32 %v1261, %v1263
    %v1265 = vrot.slane %v1257, %v1264
    %v1267 = vunpack.c.l.s4 1983009808
    %v1268 = vunpack.c.0.s8 %v1267
    %v1269 = vlaneseq
    %v1270 = vshrl.u32 %v1269, 7
    %v1271 = vsub.s32 %v1268, %v1270
    %v1272 = vrot.slane %v1258, %v1271
    %v1273 = vcombine.low %v1265, %v1272
    %v1274 = vcombine.low %v1154, %v1153
    %v1275 = vcombine.low %v1155, %v1163
    %v1277 = vunpack.c.l.s4 1983009808
    %v1278 = vunpack.c.0.s8 %v1277
    %v1279 = vlaneseq
    %v1280 = vshrl.u32 %v1279, 7
    %v1281 = vsub.s32 %v1278, %v1280
    %v1282 = vrot.slane %v1274, %v1281
    %v1284 = vunpack.c.l.s4 1983009808
    %v1285 = vunpack.c.0.s8 %v1284
    %v1286 = vlaneseq
    %v1287 = vshrl.u32 %v1286, 7
    %v1288 = vsub.s32 %v1285, %v1287
    %v1289 = vrot.slane %v1275, %v1288
    %v1290 = vcombine.low %v1282, %v1289
    %v1291 = vcombine.low %v1171, %v1170
    %v1293 = vunpack.c.l.s4 1983009808
    %v1294 = vunpack.c.0.s8 %v1293
    %v1295 = vlaneseq
    %v1296 = vshrl.u32 %v1295, 7
    %v1297 = vsub.s32 %v1294, %v1296
    %v1298 = vrot.slane %v1291, %v1297
    %vm1299 = vcmask 64512
    %v1300 = vsel %vm1299, %v1188, 0
    %v1302 = vsel %vm1299, %v1205, 0
    %v1304 = vsel %vm1299, %v1222, 0
    %v1306 = vsel %vm1299, %v1239, 0
    %v1308 = vsel %vm1299, %v1256, 0
    %v1310 = vsel %vm1299, %v1273, 0
    %v1312 = vsel %vm1299, %v1290, 0
    %v1314 = vsel %vm1299, %v1298, 0
    %v1317 = vsel %vm1299, %v79, 0
    %1319 = vmatprep.subr.mxu0 0.0
    %1320 = vmatpush1.xpose.msra.mxu0 %v1317
    %1321 = vmatprep.subr.mxu0 0.0
    %1322 = vmatpush1.xpose.msra.mxu0 0.0
    %1323 = vmatprep.subr.mxu0 0.0
    %1324 = vmatpush1.xpose.msra.mxu0 0.0
    %1325 = vmatprep.subr.mxu0 0.0
    %1326 = vmatpush1.xpose.msra.mxu0 0.0
    %1327 = vmatprep.subr.mxu0 0.0
    %1328 = vmatpush1.xpose.msra.mxu0 0.0
    %1329 = vmatprep.subr.mxu0 0.0
    %1330 = vmatpush1.xpose.msra.mxu0 0.0
    %1331 = vmatprep.subr.mxu0 0.0
    %1332 = vmatpush1.xpose.msra.mxu0 0.0
    %1333 = vmatprep.subr.mxu0 0.0
    %1334 = vmatpush1.xpose.msra.mxu0 0.0
    %1335 = vmatprep.subr.mxu0 0.0
    %1336 = vmatpush1.xpose.msra.mxu0 0.0
    %1337 = vmatprep.subr.mxu0 0.0
    %1338 = vmatpush1.xpose.msra.mxu0 0.0
    %1339 = vmatprep.subr.mxu0 0.0
    %1340 = vmatpush1.xpose.msra.mxu0 0.0
    %1341 = vmatprep.subr.mxu0 0.0
    %1342 = vmatpush1.xpose.msra.mxu0 0.0
    %1343 = vmatprep.subr.mxu0 0.0
    %1344 = vmatpush1.xpose.msra.mxu0 0.0
    %1345 = vmatprep.subr.mxu0 0.0
    %1346 = vmatpush1.xpose.msra.mxu0 0.0
    %1347 = vmatprep.subr.mxu0 0.0
    %1348 = vmatpush1.xpose.msra.mxu0 0.0
    %1349 = vmatprep.subr.mxu0 0.0
    %1350 = vmatpush1.xpose.msra.mxu0 0.0
    %1351 = vmatprep.subr.mxu0 0.0
    %1352 = vmatpush1.xpose.msra.mxu0 0.0
    %1353 = vmatprep.subr.mxu0 0.0
    %1354 = vmatpush1.xpose.msra.mxu0 0.0
    %1355 = vmatprep.subr.mxu0 0.0
    %1356 = vmatpush1.xpose.msra.mxu0 0.0
    %1357 = vmatprep.subr.mxu0 0.0
    %1358 = vmatpush1.xpose.msra.mxu0 0.0
    %1359 = vmatprep.subr.mxu0 0.0
    %1360 = vmatpush1.xpose.msra.mxu0 0.0
    %1361 = vmatprep.subr.mxu0 0.0
    %1362 = vmatpush1.xpose.msra.mxu0 0.0
    %1363 = vmatprep.subr.mxu0 0.0
    %1364 = vmatpush1.xpose.msra.mxu0 0.0
    %1365 = vmatprep.subr.mxu0 0.0
    %1366 = vmatpush1.xpose.msra.mxu0 0.0
    %1367 = vmatprep.subr.mxu0 0.0
    %1368 = vmatpush1.xpose.msra.mxu0 0.0
    %1369 = vmatprep.subr.mxu0 0.0
    %1370 = vmatpush1.xpose.msra.mxu0 0.0
    %1371 = vmatprep.subr.mxu0 0.0
    %1372 = vmatpush1.xpose.msra.mxu0 0.0
    %1373 = vmatprep.subr.mxu0 0.0
    %1374 = vmatpush1.xpose.msra.mxu0 0.0
    %1375 = vmatprep.subr.mxu0 0.0
    %1376 = vmatpush1.xpose.msra.mxu0 0.0
    %1377 = vmatprep.subr.mxu0 0.0
    %1378 = vmatpush1.xpose.msra.mxu0 0.0
    %1379 = vmatprep.subr.mxu0 0.0
    %1380 = vmatpush1.xpose.msra.mxu0 0.0
    %1381 = vmatprep.subr.mxu0 0.0
    %1382 = vmatpush1.xpose.msra.mxu0 0.0
    %1383 = vmatprep.mubr.f32.mxu0 0.0
    %1384 = vmatmul.mubr.f32.gmra.mrb[0].mxu0 %v1300
    %v1385 = vpop.f32.mrb[0].mxu0
    %v1386 = vadd.f32 0.0, %v1385
    %v1387 = vpop.f32.mrb[0].mxu0
    %1388 = vmatprep.mubr.f32.mxu0 0.0
    %1389 = vmatmul.mubr.f32.gmra.mrb[0].mxu0 %v1302
    %v1390 = vpop.f32.mrb[0].mxu0
    %v1391 = vadd.f32 0.0, %v1390
    %v1392 = vpop.f32.mrb[0].mxu0
    %1393 = vmatprep.mubr.f32.mxu0 0.0
    %1394 = vmatmul.mubr.f32.gmra.mrb[0].mxu0 %v1304
    %v1395 = vpop.f32.mrb[0].mxu0
    %v1396 = vadd.f32 0.0, %v1395
    %v1397 = vpop.f32.mrb[0].mxu0
    %1398 = vmatprep.mubr.f32.mxu0 0.0
    %1399 = vmatmul.mubr.f32.gmra.mrb[0].mxu0 %v1306
    %v1400 = vpop.f32.mrb[0].mxu0
    %v1401 = vadd.f32 0.0, %v1400
    %v1402 = vpop.f32.mrb[0].mxu0
    %1403 = vmatprep.mubr.f32.mxu0 0.0
    %1404 = vmatmul.mubr.f32.gmra.mrb[0].mxu0 %v1308
    %v1405 = vpop.f32.mrb[0].mxu0
    %v1406 = vadd.f32 0.0, %v1405
    %v1407 = vpop.f32.mrb[0].mxu0
    %1408 = vmatprep.mubr.f32.mxu0 0.0
    %1409 = vmatmul.mubr.f32.gmra.mrb[0].mxu0 %v1310
    %v1410 = vpop.f32.mrb[0].mxu0
    %v1411 = vadd.f32 0.0, %v1410
    %v1412 = vpop.f32.mrb[0].mxu0
    %1413 = vmatprep.mubr.f32.mxu0 0.0
    %1414 = vmatmul.mubr.f32.gmra.mrb[0].mxu0 %v1312
    %v1415 = vpop.f32.mrb[0].mxu0
    %v1416 = vadd.f32 0.0, %v1415
    %v1417 = vpop.f32.mrb[0].mxu0
    %1418 = vmatprep.mubr.f32.mxu0 0.0
    %1419 = vmatmul.mubr.f32.gmra.mrb[0].mxu0 %v1314
    %v1420 = vpop.f32.mrb[0].mxu0
    %v1421 = vadd.f32 0.0, %v1420
    %v1422 = vpop.f32.mrb[0].mxu0
    %1423 = vdwg.mxu0
    %v1432 = vcombine.high %v1386, %v1386
    %v1434 = vunpack.c.l.s4 1983009808
    %v1435 = vunpack.c.0.s8 %v1434
    %v1436 = vlaneseq
    %v1437 = vshrl.u32 %v1436, 7
    %v1438 = vsub.s32 %v1435, %v1437
    %v1439 = vrot.slane %v1386, %v1438
    %v1441 = vunpack.c.l.s4 1983009808
    %v1442 = vunpack.c.0.s8 %v1441
    %v1443 = vlaneseq
    %v1444 = vshrl.u32 %v1443, 7
    %v1445 = vsub.s32 %v1442, %v1444
    %v1446 = vrot.slane %v1432, %v1445
    %v1447 = vcombine.high %v1439, %v1439
    %v1448 = vcombine.high %v1446, %v1446
    %v1449 = vcombine.high %v1391, %v1391
    %v1451 = vunpack.c.l.s4 1983009808
    %v1452 = vunpack.c.0.s8 %v1451
    %v1453 = vlaneseq
    %v1454 = vshrl.u32 %v1453, 7
    %v1455 = vsub.s32 %v1452, %v1454
    %v1456 = vrot.slane %v1391, %v1455
    %v1458 = vunpack.c.l.s4 1983009808
    %v1459 = vunpack.c.0.s8 %v1458
    %v1460 = vlaneseq
    %v1461 = vshrl.u32 %v1460, 7
    %v1462 = vsub.s32 %v1459, %v1461
    %v1463 = vrot.slane %v1449, %v1462
    %v1464 = vcombine.high %v1456, %v1456
    %v1465 = vcombine.high %v1463, %v1463
    %v1466 = vcombine.high %v1396, %v1396
    %v1468 = vunpack.c.l.s4 1983009808
    %v1469 = vunpack.c.0.s8 %v1468
    %v1470 = vlaneseq
    %v1471 = vshrl.u32 %v1470, 7
    %v1472 = vsub.s32 %v1469, %v1471
    %v1473 = vrot.slane %v1396, %v1472
    %v1475 = vunpack.c.l.s4 1983009808
    %v1476 = vunpack.c.0.s8 %v1475
    %v1477 = vlaneseq
    %v1478 = vshrl.u32 %v1477, 7
    %v1479 = vsub.s32 %v1476, %v1478
    %v1480 = vrot.slane %v1466, %v1479
    %v1481 = vcombine.high %v1473, %v1473
    %v1482 = vcombine.high %v1480, %v1480
    %v1483 = vcombine.high %v1401, %v1401
    %v1485 = vunpack.c.l.s4 1983009808
    %v1486 = vunpack.c.0.s8 %v1485
    %v1487 = vlaneseq
    %v1488 = vshrl.u32 %v1487, 7
    %v1489 = vsub.s32 %v1486, %v1488
    %v1490 = vrot.slane %v1401, %v1489
    %v1492 = vunpack.c.l.s4 1983009808
    %v1493 = vunpack.c.0.s8 %v1492
    %v1494 = vlaneseq
    %v1495 = vshrl.u32 %v1494, 7
    %v1496 = vsub.s32 %v1493, %v1495
    %v1497 = vrot.slane %v1483, %v1496
    %v1498 = vcombine.high %v1490, %v1490
    %v1499 = vcombine.high %v1497, %v1497
    %v1500 = vcombine.high %v1406, %v1406
    %v1502 = vunpack.c.l.s4 1983009808
    %v1503 = vunpack.c.0.s8 %v1502
    %v1504 = vlaneseq
    %v1505 = vshrl.u32 %v1504, 7
    %v1506 = vsub.s32 %v1503, %v1505
    %v1507 = vrot.slane %v1406, %v1506
    %v1509 = vunpack.c.l.s4 1983009808
    %v1510 = vunpack.c.0.s8 %v1509
    %v1511 = vlaneseq
    %v1512 = vshrl.u32 %v1511, 7
    %v1513 = vsub.s32 %v1510, %v1512
    %v1514 = vrot.slane %v1500, %v1513
    %v1515 = vcombine.high %v1507, %v1507
    %v1516 = vcombine.high %v1514, %v1514
    %v1517 = vcombine.high %v1411, %v1411
    %v1519 = vunpack.c.l.s4 1983009808
    %v1520 = vunpack.c.0.s8 %v1519
    %v1521 = vlaneseq
    %v1522 = vshrl.u32 %v1521, 7
    %v1523 = vsub.s32 %v1520, %v1522
    %v1524 = vrot.slane %v1411, %v1523
    %v1526 = vunpack.c.l.s4 1983009808
    %v1527 = vunpack.c.0.s8 %v1526
    %v1528 = vlaneseq
    %v1529 = vshrl.u32 %v1528, 7
    %v1530 = vsub.s32 %v1527, %v1529
    %v1531 = vrot.slane %v1517, %v1530
    %v1532 = vcombine.high %v1524, %v1524
    %v1533 = vcombine.high %v1531, %v1531
    %v1534 = vcombine.high %v1416, %v1416
    %v1536 = vunpack.c.l.s4 1983009808
    %v1537 = vunpack.c.0.s8 %v1536
    %v1538 = vlaneseq
    %v1539 = vshrl.u32 %v1538, 7
    %v1540 = vsub.s32 %v1537, %v1539
    %v1541 = vrot.slane %v1416, %v1540
    %v1543 = vunpack.c.l.s4 1983009808
    %v1544 = vunpack.c.0.s8 %v1543
    %v1545 = vlaneseq
    %v1546 = vshrl.u32 %v1545, 7
    %v1547 = vsub.s32 %v1544, %v1546
    %v1548 = vrot.slane %v1534, %v1547
    %v1549 = vcombine.high %v1541, %v1541
    %v1550 = vcombine.high %v1548, %v1548
    %v1552 = vunpack.c.l.s4 1983009808
    %v1553 = vunpack.c.0.s8 %v1552
    %v1554 = vlaneseq
    %v1555 = vshrl.u32 %v1554, 7
    %v1556 = vsub.s32 %v1553, %v1555
    %v1557 = vrot.slane %v1421, %v1556
    %v1558 = vcombine.high %v1557, %v1557
    %v1559 = vcombine.low %v1439, %v1447
    %v1560 = vcombine.low %v1446, %v1448
    %v1562 = vunpack.c.l.s4 1983009808
    %v1563 = vunpack.c.0.s8 %v1562
    %v1564 = vlaneseq
    %v1565 = vshrl.u32 %v1564, 7
    %v1566 = vsub.s32 %v1563, %v1565
    %v1567 = vrot.slane %v1559, %v1566
    %v1569 = vunpack.c.l.s4 1983009808
    %v1570 = vunpack.c.0.s8 %v1569
    %v1571 = vlaneseq
    %v1572 = vshrl.u32 %v1571, 7
    %v1573 = vsub.s32 %v1570, %v1572
    %v1574 = vrot.slane %v1560, %v1573
    %v1575 = vcombine.low %v1567, %v1574
    %v1576 = vcombine.low %v1456, %v1464
    %v1577 = vcombine.low %v1463, %v1465
    %v1579 = vunpack.c.l.s4 1983009808
    %v1580 = vunpack.c.0.s8 %v1579
    %v1581 = vlaneseq
    %v1582 = vshrl.u32 %v1581, 7
    %v1583 = vsub.s32 %v1580, %v1582
    %v1584 = vrot.slane %v1576, %v1583
    %v1586 = vunpack.c.l.s4 1983009808
    %v1587 = vunpack.c.0.s8 %v1586
    %v1588 = vlaneseq
    %v1589 = vshrl.u32 %v1588, 7
    %v1590 = vsub.s32 %v1587, %v1589
    %v1591 = vrot.slane %v1577, %v1590
    %v1592 = vcombine.low %v1584, %v1591
    %v1593 = vcombine.low %v1473, %v1481
    %v1594 = vcombine.low %v1480, %v1482
    %v1596 = vunpack.c.l.s4 1983009808
    %v1597 = vunpack.c.0.s8 %v1596
    %v1598 = vlaneseq
    %v1599 = vshrl.u32 %v1598, 7
    %v1600 = vsub.s32 %v1597, %v1599
    %v1601 = vrot.slane %v1593, %v1600
    %v1603 = vunpack.c.l.s4 1983009808
    %v1604 = vunpack.c.0.s8 %v1603
    %v1605 = vlaneseq
    %v1606 = vshrl.u32 %v1605, 7
    %v1607 = vsub.s32 %v1604, %v1606
    %v1608 = vrot.slane %v1594, %v1607
    %v1609 = vcombine.low %v1601, %v1608
    %v1610 = vcombine.low %v1490, %v1498
    %v1612 = vunpack.c.l.s4 1983009808
    %v1613 = vunpack.c.0.s8 %v1612
    %v1614 = vlaneseq
    %v1615 = vshrl.u32 %v1614, 7
    %v1616 = vsub.s32 %v1613, %v1615
    %v1617 = vrot.slane %v1610, %v1616
    %v1619 = vunpack.c.l.s4 1983009808
    %v1620 = vunpack.c.0.s8 %v1619
    %v1621 = vlaneseq
    %v1622 = vshrl.u32 %v1621, 7
    %v1623 = vsub.s32 %v1620, %v1622
    %v1624 = vrot.slane %v1497, %v1623
    %v1625 = vcombine.low %v1617, %v1624
    %v1626 = vcombine.low %v1499, %v1507
    %v1627 = vcombine.low %v1515, %v1514
    %v1629 = vunpack.c.l.s4 1983009808
    %v1630 = vunpack.c.0.s8 %v1629
    %v1631 = vlaneseq
    %v1632 = vshrl.u32 %v1631, 7
    %v1633 = vsub.s32 %v1630, %v1632
    %v1634 = vrot.slane %v1626, %v1633
    %v1636 = vunpack.c.l.s4 1983009808
    %v1637 = vunpack.c.0.s8 %v1636
    %v1638 = vlaneseq
    %v1639 = vshrl.u32 %v1638, 7
    %v1640 = vsub.s32 %v1637, %v1639
    %v1641 = vrot.slane %v1627, %v1640
    %v1642 = vcombine.low %v1634, %v1641
    %v1643 = vcombine.low %v1516, %v1524
    %v1644 = vcombine.low %v1532, %v1531
    %v1646 = vunpack.c.l.s4 1983009808
    %v1647 = vunpack.c.0.s8 %v1646
    %v1648 = vlaneseq
    %v1649 = vshrl.u32 %v1648, 7
    %v1650 = vsub.s32 %v1647, %v1649
    %v1651 = vrot.slane %v1643, %v1650
    %v1653 = vunpack.c.l.s4 1983009808
    %v1654 = vunpack.c.0.s8 %v1653
    %v1655 = vlaneseq
    %v1656 = vshrl.u32 %v1655, 7
    %v1657 = vsub.s32 %v1654, %v1656
    %v1658 = vrot.slane %v1644, %v1657
    %v1659 = vcombine.low %v1651, %v1658
    %v1660 = vcombine.low %v1533, %v1541
    %v1661 = vcombine.low %v1549, %v1548
    %v1663 = vunpack.c.l.s4 1983009808
    %v1664 = vunpack.c.0.s8 %v1663
    %v1665 = vlaneseq
    %v1666 = vshrl.u32 %v1665, 7
    %v1667 = vsub.s32 %v1664, %v1666
    %v1668 = vrot.slane %v1660, %v1667
    %v1670 = vunpack.c.l.s4 1983009808
    %v1671 = vunpack.c.0.s8 %v1670
    %v1672 = vlaneseq
    %v1673 = vshrl.u32 %v1672, 7
    %v1674 = vsub.s32 %v1671, %v1673
    %v1675 = vrot.slane %v1661, %v1674
    %v1676 = vcombine.low %v1668, %v1675
    %v1677 = vcombine.low %v1550, %v1557
    %v1679 = vunpack.c.l.s4 1983009808
    %v1680 = vunpack.c.0.s8 %v1679
    %v1681 = vlaneseq
    %v1682 = vshrl.u32 %v1681, 7
    %v1683 = vsub.s32 %v1680, %v1682
    %v1684 = vrot.slane %v1677, %v1683
    %v1686 = vunpack.c.l.s4 1983009808
    %v1687 = vunpack.c.0.s8 %v1686
    %v1688 = vlaneseq
    %v1689 = vshrl.u32 %v1688, 7
    %v1690 = vsub.s32 %v1687, %v1689
    %v1691 = vrot.slane %v1558, %v1690
    %v1692 = vcombine.low %v1684, %v1691
    %1701 = vxpose.xlu0.b32.start [1/16] %v1575, 128
    %1702 = vxpose.xlu0.b32.cont [2/16] %v1592, 128
    %1703 = vxpose.xlu0.b32.cont [3/16] %v1609, 128
    %1704 = vxpose.xlu0.b32.cont [4/16] %v1625, 128
    %1705 = vxpose.xlu0.b32.cont [5/16] 0.0, 128
    %1706 = vxpose.xlu0.b32.cont [6/16] 0.0, 128
    %1707 = vxpose.xlu0.b32.cont [7/16] 0.0, 128
    %1708 = vxpose.xlu0.b32.cont [8/16] 0.0, 128
    %1709 = vxpose.xlu0.b32.cont [9/16] 0.0, 128
    %1710 = vxpose.xlu0.b32.cont [10/16] 0.0, 128
    %1711 = vxpose.xlu0.b32.cont [11/16] 0.0, 128
    %1712 = vxpose.xlu0.b32.cont [12/16] 0.0, 128
    %1713 = vxpose.xlu0.b32.cont [13/16] 0.0, 128
    %1714 = vxpose.xlu0.b32.cont [14/16] 0.0, 128
    %1715 = vxpose.xlu0.b32.cont [15/16] 0.0, 128
    %1716 = vxpose.xlu0.b32.end [16/16] 0.0, 128
    %v1717 = vpop.trf.xlu0
    %v1718 = vpop.trf.xlu0
    %v1719 = vpop.trf.xlu0
    %v1720 = vpop.trf.xlu0
    %v1721 = vpop.trf.xlu0
    %v1722 = vpop.trf.xlu0
    %v1723 = vpop.trf.xlu0
    %v1724 = vpop.trf.xlu0
    %v1725 = vpop.trf.xlu0
    %v1726 = vpop.trf.xlu0
    %v1727 = vpop.trf.xlu0
    %v1728 = vpop.trf.xlu0
    %v1729 = vpop.trf.xlu0
    %v1730 = vpop.trf.xlu0
    %v1731 = vpop.trf.xlu0
    %v1732 = vpop.trf.xlu0
    %1733 = vxpose.xlu0.b32.start [1/16] %v1642, 128
    %1734 = vxpose.xlu0.b32.cont [2/16] %v1659, 128
    %1735 = vxpose.xlu0.b32.cont [3/16] %v1676, 128
    %1736 = vxpose.xlu0.b32.cont [4/16] %v1692, 128
    %1737 = vxpose.xlu0.b32.cont [5/16] 0.0, 128
    %1738 = vxpose.xlu0.b32.cont [6/16] 0.0, 128
    %1739 = vxpose.xlu0.b32.cont [7/16] 0.0, 128
    %1740 = vxpose.xlu0.b32.cont [8/16] 0.0, 128
    %1741 = vxpose.xlu0.b32.cont [9/16] 0.0, 128
    %1742 = vxpose.xlu0.b32.cont [10/16] 0.0, 128
    %1743 = vxpose.xlu0.b32.cont [11/16] 0.0, 128
    %1744 = vxpose.xlu0.b32.cont [12/16] 0.0, 128
    %1745 = vxpose.xlu0.b32.cont [13/16] 0.0, 128
    %1746 = vxpose.xlu0.b32.cont [14/16] 0.0, 128
    %1747 = vxpose.xlu0.b32.cont [15/16] 0.0, 128
    %1748 = vxpose.xlu0.b32.end [16/16] 0.0, 128
    %v1749 = vpop.trf.xlu0
    %v1750 = vpop.trf.xlu0
    %v1751 = vpop.trf.xlu0
    %v1752 = vpop.trf.xlu0
    %v1753 = vpop.trf.xlu0
    %v1754 = vpop.trf.xlu0
    %v1755 = vpop.trf.xlu0
    %v1756 = vpop.trf.xlu0
    %v1757 = vpop.trf.xlu0
    %v1758 = vpop.trf.xlu0
    %v1759 = vpop.trf.xlu0
    %v1760 = vpop.trf.xlu0
    %v1761 = vpop.trf.xlu0
    %v1762 = vpop.trf.xlu0
    %v1763 = vpop.trf.xlu0
    %v1764 = vpop.trf.xlu0
    %1766 = vset.pattern.permute.xlu0 0
    %1767 = vperm.xlu0 %1766, %v86
    %v1768 = vpop.permute.xlu0 %1767
    %v1770 = vadd.f32 %v1717, %v1768
    %v1771 = vadd.f32 %v1749, %v1768
    %v1772 = vsel %vm927, %v1770, 0.0
    %v1773 = vsel %vm927, %v1771, 0.0
    %v1774 = vadd.f32 %v1772, %v1773
    %1775 = vadd.xlane.f32.xlu0 %v1774
    %v1776 = vpop.xlane.xlu0 %1775
    %v1777 = vmul.f32 %v1776, 0.016666668
    %v1778 = vmul.f32 %v1770, %v1770
    %v1779 = vmul.f32 %v1771, %v1771
    %v1780 = vsel %vm927, %v1778, 0.0
    %v1781 = vsel %vm927, %v1779, 0.0
    %v1782 = vadd.f32 %v1780, %v1781
    %1783 = vadd.xlane.f32.xlu0 %v1782
    %v1784 = vpop.xlane.xlu0 %1783
    %v1785 = vmul.f32 %v1784, 0.016666668
    %v1786 = vmul.f32 %v1777, %v1777
    %v1787 = vsub.f32 %v1785, %v1786
    %v1788 = vmax.f32 %v1787, 0.0
    %v1789 = vadd.f32 %v1788, 1e-05
    %v1790 = vrsqrt.pop %v1789
    %v1791 = vmul.f32 %v1790, %v87
    %v1792 = vmul.f32 %v1777, %v1791
    %v1793 = vsub.f32 %v88, %v1792
    %1795 = vset.pattern.permute.xlu0 0
    %1796 = vperm.xlu0 %1795, %v1791
    %v1797 = vpop.permute.xlu0 %1796
    %v1799 = vmul.f32 %v1770, %v1797
    %v1800 = vmul.f32 %v1771, %v1797
    %1802 = vset.pattern.permute.xlu0 0
    %1803 = vperm.xlu0 %1802, %v1793
    %v1804 = vpop.permute.xlu0 %1803
    %v1806 = vadd.f32 %v1799, %v1804
    %v1807 = vadd.f32 %v1800, %v1804
    %v1808 = vadd.f32 %v1806, %v110
    %v1809 = vadd.f32 %v1807, %v112
    %v1810 = vmax.f32 %v1808, 0.0
    %v1811 = vmax.f32 %v1809, 0.0
    %1814 = vrot.lane.b32.xlu0 %v1810, 126
    %v1815 = vpop.permute.xlu0 %1814
    %1816 = vrot.lane.b32.xlu0 %v1811, 126
    %v1817 = vpop.permute.xlu0 %1816
    %1820 = vrot.lane.b32.xlu0 %v1810, 124
    %v1821 = vpop.permute.xlu0 %1820
    %1822 = vrot.lane.b32.xlu0 %v1811, 124
    %v1823 = vpop.permute.xlu0 %1822
    %1826 = vxpose.xlu0.b32.start [1/16] %v1810, 128
    %1827 = vxpose.xlu0.b32.cont [2/16] %v1815, 128
    %1828 = vxpose.xlu0.b32.cont [3/16] %v1821, 128
    %1829 = vxpose.xlu0.b32.cont [4/16] 0.0, 128
    %1830 = vxpose.xlu0.b32.cont [5/16] 0.0, 128
    %1831 = vxpose.xlu0.b32.cont [6/16] 0.0, 128
    %1832 = vxpose.xlu0.b32.cont [7/16] 0.0, 128
    %1833 = vxpose.xlu0.b32.cont [8/16] 0.0, 128
    %1834 = vxpose.xlu0.b32.cont [9/16] 0.0, 128
    %1835 = vxpose.xlu0.b32.cont [10/16] 0.0, 128
    %1836 = vxpose.xlu0.b32.cont [11/16] 0.0, 128
    %1837 = vxpose.xlu0.b32.cont [12/16] 0.0, 128
    %1838 = vxpose.xlu0.b32.cont [13/16] 0.0, 128
    %1839 = vxpose.xlu0.b32.cont [14/16] 0.0, 128
    %1840 = vxpose.xlu0.b32.cont [15/16] 0.0, 128
    %1841 = vxpose.xlu0.b32.end [16/16] 0.0, 128
    %v1842 = vpop.trf.xlu0
    %v1843 = vpop.trf.xlu0
    %v1844 = vpop.trf.xlu0
    %v1845 = vpop.trf.xlu0
    %v1846 = vpop.trf.xlu0
    %v1847 = vpop.trf.xlu0
    %v1848 = vpop.trf.xlu0
    %v1849 = vpop.trf.xlu0
    %v1850 = vpop.trf.xlu0
    %v1851 = vpop.trf.xlu0
    %v1852 = vpop.trf.xlu0
    %v1853 = vpop.trf.xlu0
    %v1854 = vpop.trf.xlu0
    %v1855 = vpop.trf.xlu0
    %v1856 = vpop.trf.xlu0
    %v1857 = vpop.trf.xlu0
    %1858 = vxpose.xlu0.b32.start [1/16] %v1811, 128
    %1859 = vxpose.xlu0.b32.cont [2/16] %v1817, 128
    %1860 = vxpose.xlu0.b32.cont [3/16] %v1823, 128
    %1861 = vxpose.xlu0.b32.cont [4/16] 0.0, 128
    %1862 = vxpose.xlu0.b32.cont [5/16] 0.0, 128
    %1863 = vxpose.xlu0.b32.cont [6/16] 0.0, 128
    %1864 = vxpose.xlu0.b32.cont [7/16] 0.0, 128
    %1865 = vxpose.xlu0.b32.cont [8/16] 0.0, 128
    %1866 = vxpose.xlu0.b32.cont [9/16] 0.0, 128
    %1867 = vxpose.xlu0.b32.cont [10/16] 0.0, 128
    %1868 = vxpose.xlu0.b32.cont [11/16] 0.0, 128
    %1869 = vxpose.xlu0.b32.cont [12/16] 0.0, 128
    %1870 = vxpose.xlu0.b32.cont [13/16] 0.0, 128
    %1871 = vxpose.xlu0.b32.cont [14/16] 0.0, 128
    %1872 = vxpose.xlu0.b32.cont [15/16] 0.0, 128
    %1873 = vxpose.xlu0.b32.end [16/16] 0.0, 128
    %v1874 = vpop.trf.xlu0
    %v1875 = vpop.trf.xlu0
    %v1876 = vpop.trf.xlu0
    %v1877 = vpop.trf.xlu0
    %v1878 = vpop.trf.xlu0
    %v1879 = vpop.trf.xlu0
    %v1880 = vpop.trf.xlu0
    %v1881 = vpop.trf.xlu0
    %v1882 = vpop.trf.xlu0
    %v1883 = vpop.trf.xlu0
    %v1884 = vpop.trf.xlu0
    %v1885 = vpop.trf.xlu0
    %v1886 = vpop.trf.xlu0
    %v1887 = vpop.trf.xlu0
    %v1888 = vpop.trf.xlu0
    %v1889 = vpop.trf.xlu0
    %v1898 = vcombine.high %v1842, %v1842
    %v1900 = vunpack.c.l.s4 1983009808
    %v1901 = vunpack.c.0.s8 %v1900
    %v1902 = vlaneseq
    %v1903 = vshrl.u32 %v1902, 7
    %v1904 = vsub.s32 %v1901, %v1903
    %v1905 = vrot.slane %v1842, %v1904
    %v1907 = vunpack.c.l.s4 1983009808
    %v1908 = vunpack.c.0.s8 %v1907
    %v1909 = vlaneseq
    %v1910 = vshrl.u32 %v1909, 7
    %v1911 = vsub.s32 %v1908, %v1910
    %v1912 = vrot.slane %v1898, %v1911
    %v1913 = vcombine.high %v1905, %v1905
    %v1914 = vcombine.high %v1912, %v1912
    %v1915 = vcombine.high %v1843, %v1843
    %v1917 = vunpack.c.l.s4 1983009808
    %v1918 = vunpack.c.0.s8 %v1917
    %v1919 = vlaneseq
    %v1920 = vshrl.u32 %v1919, 7
    %v1921 = vsub.s32 %v1918, %v1920
    %v1922 = vrot.slane %v1843, %v1921
    %v1924 = vunpack.c.l.s4 1983009808
    %v1925 = vunpack.c.0.s8 %v1924
    %v1926 = vlaneseq
    %v1927 = vshrl.u32 %v1926, 7
    %v1928 = vsub.s32 %v1925, %v1927
    %v1929 = vrot.slane %v1915, %v1928
    %v1930 = vcombine.high %v1922, %v1922
    %v1931 = vcombine.high %v1929, %v1929
    %v1932 = vcombine.high %v1844, %v1844
    %v1934 = vunpack.c.l.s4 1983009808
    %v1935 = vunpack.c.0.s8 %v1934
    %v1936 = vlaneseq
    %v1937 = vshrl.u32 %v1936, 7
    %v1938 = vsub.s32 %v1935, %v1937
    %v1939 = vrot.slane %v1844, %v1938
    %v1941 = vunpack.c.l.s4 1983009808
    %v1942 = vunpack.c.0.s8 %v1941
    %v1943 = vlaneseq
    %v1944 = vshrl.u32 %v1943, 7
    %v1945 = vsub.s32 %v1942, %v1944
    %v1946 = vrot.slane %v1932, %v1945
    %v1947 = vcombine.high %v1939, %v1939
    %v1948 = vcombine.high %v1946, %v1946
    %v1950 = vunpack.c.l.s4 1983009808
    %v1951 = vunpack.c.0.s8 %v1950
    %v1952 = vlaneseq
    %v1953 = vshrl.u32 %v1952, 7
    %v1954 = vsub.s32 %v1951, %v1953
    %v1955 = vrot.slane %v1845, %v1954
    %v1956 = vcombine.high %v1874, %v1874
    %v1958 = vunpack.c.l.s4 1983009808
    %v1959 = vunpack.c.0.s8 %v1958
    %v1960 = vlaneseq
    %v1961 = vshrl.u32 %v1960, 7
    %v1962 = vsub.s32 %v1959, %v1961
    %v1963 = vrot.slane %v1874, %v1962
    %v1965 = vunpack.c.l.s4 1983009808
    %v1966 = vunpack.c.0.s8 %v1965
    %v1967 = vlaneseq
    %v1968 = vshrl.u32 %v1967, 7
    %v1969 = vsub.s32 %v1966, %v1968
    %v1970 = vrot.slane %v1956, %v1969
    %v1971 = vcombine.high %v1963, %v1963
    %v1972 = vcombine.high %v1970, %v1970
    %v1973 = vcombine.high %v1875, %v1875
    %v1975 = vunpack.c.l.s4 1983009808
    %v1976 = vunpack.c.0.s8 %v1975
    %v1977 = vlaneseq
    %v1978 = vshrl.u32 %v1977, 7
    %v1979 = vsub.s32 %v1976, %v1978
    %v1980 = vrot.slane %v1875, %v1979
    %v1982 = vunpack.c.l.s4 1983009808
    %v1983 = vunpack.c.0.s8 %v1982
    %v1984 = vlaneseq
    %v1985 = vshrl.u32 %v1984, 7
    %v1986 = vsub.s32 %v1983, %v1985
    %v1987 = vrot.slane %v1973, %v1986
    %v1988 = vcombine.high %v1980, %v1980
    %v1989 = vcombine.high %v1987, %v1987
    %v1990 = vcombine.high %v1876, %v1876
    %v1992 = vunpack.c.l.s4 1983009808
    %v1993 = vunpack.c.0.s8 %v1992
    %v1994 = vlaneseq
    %v1995 = vshrl.u32 %v1994, 7
    %v1996 = vsub.s32 %v1993, %v1995
    %v1997 = vrot.slane %v1876, %v1996
    %v1999 = vunpack.c.l.s4 1983009808
    %v2000 = vunpack.c.0.s8 %v1999
    %v2001 = vlaneseq
    %v2002 = vshrl.u32 %v2001, 7
    %v2003 = vsub.s32 %v2000, %v2002
    %v2004 = vrot.slane %v1990, %v2003
    %v2005 = vcombine.high %v1997, %v1997
    %v2006 = vcombine.high %v2004, %v2004
    %v2008 = vunpack.c.l.s4 1983009808
    %v2009 = vunpack.c.0.s8 %v2008
    %v2010 = vlaneseq
    %v2011 = vshrl.u32 %v2010, 7
    %v2012 = vsub.s32 %v2009, %v2011
    %v2013 = vrot.slane %v1877, %v2012
    %v2014 = vcombine.low %v1905, %v1913
    %v2015 = vcombine.low %v1912, %v1914
    %v2017 = vunpack.c.l.s4 1983009808
    %v2018 = vunpack.c.0.s8 %v2017
    %v2019 = vlaneseq
    %v2020 = vshrl.u32 %v2019, 7
    %v2021 = vsub.s32 %v2018, %v2020
    %v2022 = vrot.slane %v2014, %v2021
    %v2024 = vunpack.c.l.s4 1983009808
    %v2025 = vunpack.c.0.s8 %v2024
    %v2026 = vlaneseq
    %v2027 = vshrl.u32 %v2026, 7
    %v2028 = vsub.s32 %v2025, %v2027
    %v2029 = vrot.slane %v2015, %v2028
    %v2030 = vcombine.low %v2022, %v2029
    %v2031 = vcombine.low %v1922, %v1930
    %v2032 = vcombine.low %v1929, %v1931
    %v2034 = vunpack.c.l.s4 1983009808
    %v2035 = vunpack.c.0.s8 %v2034
    %v2036 = vlaneseq
    %v2037 = vshrl.u32 %v2036, 7
    %v2038 = vsub.s32 %v2035, %v2037
    %v2039 = vrot.slane %v2031, %v2038
    %v2041 = vunpack.c.l.s4 1983009808
    %v2042 = vunpack.c.0.s8 %v2041
    %v2043 = vlaneseq
    %v2044 = vshrl.u32 %v2043, 7
    %v2045 = vsub.s32 %v2042, %v2044
    %v2046 = vrot.slane %v2032, %v2045
    %v2047 = vcombine.low %v2039, %v2046
    %v2048 = vcombine.low %v1939, %v1947
    %v2049 = vcombine.low %v1946, %v1948
    %v2051 = vunpack.c.l.s4 1983009808
    %v2052 = vunpack.c.0.s8 %v2051
    %v2053 = vlaneseq
    %v2054 = vshrl.u32 %v2053, 7
    %v2055 = vsub.s32 %v2052, %v2054
    %v2056 = vrot.slane %v2048, %v2055
    %v2058 = vunpack.c.l.s4 1983009808
    %v2059 = vunpack.c.0.s8 %v2058
    %v2060 = vlaneseq
    %v2061 = vshrl.u32 %v2060, 7
    %v2062 = vsub.s32 %v2059, %v2061
    %v2063 = vrot.slane %v2049, %v2062
    %v2064 = vcombine.low %v2056, %v2063
    %v2065 = vcombine.low %v1955, %v1963
    %v2066 = vcombine.low %v1971, %v1970
    %v2068 = vunpack.c.l.s4 1983009808
    %v2069 = vunpack.c.0.s8 %v2068
    %v2070 = vlaneseq
    %v2071 = vshrl.u32 %v2070, 7
    %v2072 = vsub.s32 %v2069, %v2071
    %v2073 = vrot.slane %v2065, %v2072
    %v2075 = vunpack.c.l.s4 1983009808
    %v2076 = vunpack.c.0.s8 %v2075
    %v2077 = vlaneseq
    %v2078 = vshrl.u32 %v2077, 7
    %v2079 = vsub.s32 %v2076, %v2078
    %v2080 = vrot.slane %v2066, %v2079
    %v2081 = vcombine.low %v2073, %v2080
    %v2082 = vcombine.low %v1972, %v1980
    %v2083 = vcombine.low %v1988, %v1987
    %v2085 = vunpack.c.l.s4 1983009808
    %v2086 = vunpack.c.0.s8 %v2085
    %v2087 = vlaneseq
    %v2088 = vshrl.u32 %v2087, 7
    %v2089 = vsub.s32 %v2086, %v2088
    %v2090 = vrot.slane %v2082, %v2089
    %v2092 = vunpack.c.l.s4 1983009808
    %v2093 = vunpack.c.0.s8 %v2092
    %v2094 = vlaneseq
    %v2095 = vshrl.u32 %v2094, 7
    %v2096 = vsub.s32 %v2093, %v2095
    %v2097 = vrot.slane %v2083, %v2096
    %v2098 = vcombine.low %v2090, %v2097
    %v2099 = vcombine.low %v1989, %v1997
    %v2100 = vcombine.low %v2005, %v2004
    %v2102 = vunpack.c.l.s4 1983009808
    %v2103 = vunpack.c.0.s8 %v2102
    %v2104 = vlaneseq
    %v2105 = vshrl.u32 %v2104, 7
    %v2106 = vsub.s32 %v2103, %v2105
    %v2107 = vrot.slane %v2099, %v2106
    %v2109 = vunpack.c.l.s4 1983009808
    %v2110 = vunpack.c.0.s8 %v2109
    %v2111 = vlaneseq
    %v2112 = vshrl.u32 %v2111, 7
    %v2113 = vsub.s32 %v2110, %v2112
    %v2114 = vrot.slane %v2100, %v2113
    %v2115 = vcombine.low %v2107, %v2114
    %v2116 = vcombine.low %v2006, %v2013
    %v2118 = vunpack.c.l.s4 1983009808
    %v2119 = vunpack.c.0.s8 %v2118
    %v2120 = vlaneseq
    %v2121 = vshrl.u32 %v2120, 7
    %v2122 = vsub.s32 %v2119, %v2121
    %v2123 = vrot.slane %v2116, %v2122
    %v2124 = vsel %vm454, %v2030, 0
    %v2126 = vsel %vm454, %v2047, 0
    %v2128 = vsel %vm454, %v2064, 0
    %v2130 = vsel %vm454, %v2081, 0
    %v2132 = vsel %vm454, %v2098, 0
    %v2134 = vsel %vm454, %v2115, 0
    %v2136 = vsel %vm454, %v2123, 0
    %v2139 = vsel %vm454, %v76, 0
    %2141 = vmatprep.subr.mxu0 0.0
    %2142 = vmatpush1.xpose.msra.mxu0 %v2139
    %2143 = vmatprep.subr.mxu0 0.0
    %2144 = vmatpush1.xpose.msra.mxu0 0.0
    %2145 = vmatprep.subr.mxu0 0.0
    %2146 = vmatpush1.xpose.msra.mxu0 0.0
    %2147 = vmatprep.subr.mxu0 0.0
    %2148 = vmatpush1.xpose.msra.mxu0 0.0
    %2149 = vmatprep.subr.mxu0 0.0
    %2150 = vmatpush1.xpose.msra.mxu0 0.0
    %2151 = vmatprep.subr.mxu0 0.0
    %2152 = vmatpush1.xpose.msra.mxu0 0.0
    %2153 = vmatprep.subr.mxu0 0.0
    %2154 = vmatpush1.xpose.msra.mxu0 0.0
    %2155 = vmatprep.subr.mxu0 0.0
    %2156 = vmatpush1.xpose.msra.mxu0 0.0
    %2157 = vmatprep.subr.mxu0 0.0
    %2158 = vmatpush1.xpose.msra.mxu0 0.0
    %2159 = vmatprep.subr.mxu0 0.0
    %2160 = vmatpush1.xpose.msra.mxu0 0.0
    %2161 = vmatprep.subr.mxu0 0.0
    %2162 = vmatpush1.xpose.msra.mxu0 0.0
    %2163 = vmatprep.subr.mxu0 0.0
    %2164 = vmatpush1.xpose.msra.mxu0 0.0
    %2165 = vmatprep.subr.mxu0 0.0
    %2166 = vmatpush1.xpose.msra.mxu0 0.0
    %2167 = vmatprep.subr.mxu0 0.0
    %2168 = vmatpush1.xpose.msra.mxu0 0.0
    %2169 = vmatprep.subr.mxu0 0.0
    %2170 = vmatpush1.xpose.msra.mxu0 0.0
    %2171 = vmatprep.subr.mxu0 0.0
    %2172 = vmatpush1.xpose.msra.mxu0 0.0
    %2173 = vmatprep.subr.mxu0 0.0
    %2174 = vmatpush1.xpose.msra.mxu0 0.0
    %2175 = vmatprep.subr.mxu0 0.0
    %2176 = vmatpush1.xpose.msra.mxu0 0.0
    %2177 = vmatprep.subr.mxu0 0.0
    %2178 = vmatpush1.xpose.msra.mxu0 0.0
    %2179 = vmatprep.subr.mxu0 0.0
    %2180 = vmatpush1.xpose.msra.mxu0 0.0
    %2181 = vmatprep.subr.mxu0 0.0
    %2182 = vmatpush1.xpose.msra.mxu0 0.0
    %2183 = vmatprep.subr.mxu0 0.0
    %2184 = vmatpush1.xpose.msra.mxu0 0.0
    %2185 = vmatprep.subr.mxu0 0.0
    %2186 = vmatpush1.xpose.msra.mxu0 0.0
    %2187 = vmatprep.subr.mxu0 0.0
    %2188 = vmatpush1.xpose.msra.mxu0 0.0
    %2189 = vmatprep.subr.mxu0 0.0
    %2190 = vmatpush1.xpose.msra.mxu0 0.0
    %2191 = vmatprep.subr.mxu0 0.0
    %2192 = vmatpush1.xpose.msra.mxu0 0.0
    %2193 = vmatprep.subr.mxu0 0.0
    %2194 = vmatpush1.xpose.msra.mxu0 0.0
    %2195 = vmatprep.subr.mxu0 0.0
    %2196 = vmatpush1.xpose.msra.mxu0 0.0
    %2197 = vmatprep.subr.mxu0 0.0
    %2198 = vmatpush1.xpose.msra.mxu0 0.0
    %2199 = vmatprep.subr.mxu0 0.0
    %2200 = vmatpush1.xpose.msra.mxu0 0.0
    %2201 = vmatprep.subr.mxu0 0.0
    %2202 = vmatpush1.xpose.msra.mxu0 0.0
    %2203 = vmatprep.subr.mxu0 0.0
    %2204 = vmatpush1.xpose.msra.mxu0 0.0
    %2205 = vmatprep.mubr.f32.mxu0 0.0
    %2206 = vmatmul.mubr.f32.gmra.mrb[0].mxu0 %v2124
    %v2207 = vpop.f32.mrb[0].mxu0
    %v2208 = vadd.f32 0.0, %v2207
    %v2209 = vpop.f32.mrb[0].mxu0
    %2210 = vmatprep.mubr.f32.mxu0 0.0
    %2211 = vmatmul.mubr.f32.gmra.mrb[0].mxu0 %v2126
    %v2212 = vpop.f32.mrb[0].mxu0
    %v2213 = vadd.f32 0.0, %v2212
    %v2214 = vpop.f32.mrb[0].mxu0
    %2215 = vmatprep.mubr.f32.mxu0 0.0
    %2216 = vmatmul.mubr.f32.gmra.mrb[0].mxu0 %v2128
    %v2217 = vpop.f32.mrb[0].mxu0
    %v2218 = vadd.f32 0.0, %v2217
    %v2219 = vpop.f32.mrb[0].mxu0
    %2220 = vmatprep.mubr.f32.mxu0 0.0
    %2221 = vmatmul.mubr.f32.gmra.mrb[0].mxu0 %v2130
    %v2222 = vpop.f32.mrb[0].mxu0
    %v2223 = vadd.f32 0.0, %v2222
    %v2224 = vpop.f32.mrb[0].mxu0
    %2225 = vmatprep.mubr.f32.mxu0 0.0
    %2226 = vmatmul.mubr.f32.gmra.mrb[0].mxu0 %v2132
    %v2227 = vpop.f32.mrb[0].mxu0
    %v2228 = vadd.f32 0.0, %v2227
    %v2229 = vpop.f32.mrb[0].mxu0
    %2230 = vmatprep.mubr.f32.mxu0 0.0
    %2231 = vmatmul.mubr.f32.gmra.mrb[0].mxu0 %v2134
    %v2232 = vpop.f32.mrb[0].mxu0
    %v2233 = vadd.f32 0.0, %v2232
    %v2234 = vpop.f32.mrb[0].mxu0
    %2235 = vmatprep.mubr.f32.mxu0 0.0
    %2236 = vmatmul.mubr.f32.gmra.mrb[0].mxu0 %v2136
    %v2237 = vpop.f32.mrb[0].mxu0
    %v2238 = vadd.f32 0.0, %v2237
    %v2239 = vpop.f32.mrb[0].mxu0
    %2240 = vdwg.mxu0
    %v2248 = vcombine.high %v2208, %v2208
    %v2250 = vunpack.c.l.s4 1983009808
    %v2251 = vunpack.c.0.s8 %v2250
    %v2252 = vlaneseq
    %v2253 = vshrl.u32 %v2252, 7
    %v2254 = vsub.s32 %v2251, %v2253
    %v2255 = vrot.slane %v2208, %v2254
    %v2257 = vunpack.c.l.s4 1983009808
    %v2258 = vunpack.c.0.s8 %v2257
    %v2259 = vlaneseq
    %v2260 = vshrl.u32 %v2259, 7
    %v2261 = vsub.s32 %v2258, %v2260
    %v2262 = vrot.slane %v2248, %v2261
    %v2263 = vcombine.high %v2255, %v2255
    %v2264 = vcombine.high %v2262, %v2262
    %v2265 = vcombine.high %v2213, %v2213
    %v2267 = vunpack.c.l.s4 1983009808
    %v2268 = vunpack.c.0.s8 %v2267
    %v2269 = vlaneseq
    %v2270 = vshrl.u32 %v2269, 7
    %v2271 = vsub.s32 %v2268, %v2270
    %v2272 = vrot.slane %v2213, %v2271
    %v2274 = vunpack.c.l.s4 1983009808
    %v2275 = vunpack.c.0.s8 %v2274
    %v2276 = vlaneseq
    %v2277 = vshrl.u32 %v2276, 7
    %v2278 = vsub.s32 %v2275, %v2277
    %v2279 = vrot.slane %v2265, %v2278
    %v2280 = vcombine.high %v2272, %v2272
    %v2281 = vcombine.high %v2279, %v2279
    %v2282 = vcombine.high %v2218, %v2218
    %v2284 = vunpack.c.l.s4 1983009808
    %v2285 = vunpack.c.0.s8 %v2284
    %v2286 = vlaneseq
    %v2287 = vshrl.u32 %v2286, 7
    %v2288 = vsub.s32 %v2285, %v2287
    %v2289 = vrot.slane %v2218, %v2288
    %v2291 = vunpack.c.l.s4 1983009808
    %v2292 = vunpack.c.0.s8 %v2291
    %v2293 = vlaneseq
    %v2294 = vshrl.u32 %v2293, 7
    %v2295 = vsub.s32 %v2292, %v2294
    %v2296 = vrot.slane %v2282, %v2295
    %v2297 = vcombine.high %v2289, %v2289
    %v2298 = vcombine.high %v2296, %v2296
    %v2299 = vcombine.high %v2223, %v2223
    %v2301 = vunpack.c.l.s4 1983009808
    %v2302 = vunpack.c.0.s8 %v2301
    %v2303 = vlaneseq
    %v2304 = vshrl.u32 %v2303, 7
    %v2305 = vsub.s32 %v2302, %v2304
    %v2306 = vrot.slane %v2223, %v2305
    %v2308 = vunpack.c.l.s4 1983009808
    %v2309 = vunpack.c.0.s8 %v2308
    %v2310 = vlaneseq
    %v2311 = vshrl.u32 %v2310, 7
    %v2312 = vsub.s32 %v2309, %v2311
    %v2313 = vrot.slane %v2299, %v2312
    %v2314 = vcombine.high %v2306, %v2306
    %v2315 = vcombine.high %v2313, %v2313
    %v2316 = vcombine.high %v2228, %v2228
    %v2318 = vunpack.c.l.s4 1983009808
    %v2319 = vunpack.c.0.s8 %v2318
    %v2320 = vlaneseq
    %v2321 = vshrl.u32 %v2320, 7
    %v2322 = vsub.s32 %v2319, %v2321
    %v2323 = vrot.slane %v2228, %v2322
    %v2325 = vunpack.c.l.s4 1983009808
    %v2326 = vunpack.c.0.s8 %v2325
    %v2327 = vlaneseq
    %v2328 = vshrl.u32 %v2327, 7
    %v2329 = vsub.s32 %v2326, %v2328
    %v2330 = vrot.slane %v2316, %v2329
    %v2331 = vcombine.high %v2323, %v2323
    %v2332 = vcombine.high %v2330, %v2330
    %v2333 = vcombine.high %v2233, %v2233
    %v2335 = vunpack.c.l.s4 1983009808
    %v2336 = vunpack.c.0.s8 %v2335
    %v2337 = vlaneseq
    %v2338 = vshrl.u32 %v2337, 7
    %v2339 = vsub.s32 %v2336, %v2338
    %v2340 = vrot.slane %v2233, %v2339
    %v2342 = vunpack.c.l.s4 1983009808
    %v2343 = vunpack.c.0.s8 %v2342
    %v2344 = vlaneseq
    %v2345 = vshrl.u32 %v2344, 7
    %v2346 = vsub.s32 %v2343, %v2345
    %v2347 = vrot.slane %v2333, %v2346
    %v2348 = vcombine.high %v2340, %v2340
    %v2349 = vcombine.high %v2347, %v2347
    %v2351 = vunpack.c.l.s4 1983009808
    %v2352 = vunpack.c.0.s8 %v2351
    %v2353 = vlaneseq
    %v2354 = vshrl.u32 %v2353, 7
    %v2355 = vsub.s32 %v2352, %v2354
    %v2356 = vrot.slane %v2238, %v2355
    %v2357 = vcombine.high %v2356, %v2356
    %v2358 = vcombine.low %v2255, %v2263
    %v2359 = vcombine.low %v2262, %v2264
    %v2361 = vunpack.c.l.s4 1983009808
    %v2362 = vunpack.c.0.s8 %v2361
    %v2363 = vlaneseq
    %v2364 = vshrl.u32 %v2363, 7
    %v2365 = vsub.s32 %v2362, %v2364
    %v2366 = vrot.slane %v2358, %v2365
    %v2368 = vunpack.c.l.s4 1983009808
    %v2369 = vunpack.c.0.s8 %v2368
    %v2370 = vlaneseq
    %v2371 = vshrl.u32 %v2370, 7
    %v2372 = vsub.s32 %v2369, %v2371
    %v2373 = vrot.slane %v2359, %v2372
    %v2374 = vcombine.low %v2366, %v2373
    %v2375 = vcombine.low %v2272, %v2280
    %v2376 = vcombine.low %v2279, %v2281
    %v2378 = vunpack.c.l.s4 1983009808
    %v2379 = vunpack.c.0.s8 %v2378
    %v2380 = vlaneseq
    %v2381 = vshrl.u32 %v2380, 7
    %v2382 = vsub.s32 %v2379, %v2381
    %v2383 = vrot.slane %v2375, %v2382
    %v2385 = vunpack.c.l.s4 1983009808
    %v2386 = vunpack.c.0.s8 %v2385
    %v2387 = vlaneseq
    %v2388 = vshrl.u32 %v2387, 7
    %v2389 = vsub.s32 %v2386, %v2388
    %v2390 = vrot.slane %v2376, %v2389
    %v2391 = vcombine.low %v2383, %v2390
    %v2392 = vcombine.low %v2289, %v2297
    %v2393 = vcombine.low %v2296, %v2298
    %v2395 = vunpack.c.l.s4 1983009808
    %v2396 = vunpack.c.0.s8 %v2395
    %v2397 = vlaneseq
    %v2398 = vshrl.u32 %v2397, 7
    %v2399 = vsub.s32 %v2396, %v2398
    %v2400 = vrot.slane %v2392, %v2399
    %v2402 = vunpack.c.l.s4 1983009808
    %v2403 = vunpack.c.0.s8 %v2402
    %v2404 = vlaneseq
    %v2405 = vshrl.u32 %v2404, 7
    %v2406 = vsub.s32 %v2403, %v2405
    %v2407 = vrot.slane %v2393, %v2406
    %v2408 = vcombine.low %v2400, %v2407
    %v2410 = vunpack.c.l.s4 1983009808
    %v2411 = vunpack.c.0.s8 %v2410
    %v2412 = vlaneseq
    %v2413 = vshrl.u32 %v2412, 7
    %v2414 = vsub.s32 %v2411, %v2413
    %v2415 = vrot.slane %v2306, %v2414
    %v2416 = vcombine.low %v2314, %v2313
    %v2417 = vcombine.low %v2315, %v2323
    %v2419 = vunpack.c.l.s4 1983009808
    %v2420 = vunpack.c.0.s8 %v2419
    %v2421 = vlaneseq
    %v2422 = vshrl.u32 %v2421, 7
    %v2423 = vsub.s32 %v2420, %v2422
    %v2424 = vrot.slane %v2416, %v2423
    %v2426 = vunpack.c.l.s4 1983009808
    %v2427 = vunpack.c.0.s8 %v2426
    %v2428 = vlaneseq
    %v2429 = vshrl.u32 %v2428, 7
    %v2430 = vsub.s32 %v2427, %v2429
    %v2431 = vrot.slane %v2417, %v2430
    %v2432 = vcombine.low %v2424, %v2431
    %v2433 = vcombine.low %v2331, %v2330
    %v2434 = vcombine.low %v2332, %v2340
    %v2436 = vunpack.c.l.s4 1983009808
    %v2437 = vunpack.c.0.s8 %v2436
    %v2438 = vlaneseq
    %v2439 = vshrl.u32 %v2438, 7
    %v2440 = vsub.s32 %v2437, %v2439
    %v2441 = vrot.slane %v2433, %v2440
    %v2443 = vunpack.c.l.s4 1983009808
    %v2444 = vunpack.c.0.s8 %v2443
    %v2445 = vlaneseq
    %v2446 = vshrl.u32 %v2445, 7
    %v2447 = vsub.s32 %v2444, %v2446
    %v2448 = vrot.slane %v2434, %v2447
    %v2449 = vcombine.low %v2441, %v2448
    %v2450 = vcombine.low %v2348, %v2347
    %v2451 = vcombine.low %v2349, %v2356
    %v2453 = vunpack.c.l.s4 1983009808
    %v2454 = vunpack.c.0.s8 %v2453
    %v2455 = vlaneseq
    %v2456 = vshrl.u32 %v2455, 7
    %v2457 = vsub.s32 %v2454, %v2456
    %v2458 = vrot.slane %v2450, %v2457
    %v2460 = vunpack.c.l.s4 1983009808
    %v2461 = vunpack.c.0.s8 %v2460
    %v2462 = vlaneseq
    %v2463 = vshrl.u32 %v2462, 7
    %v2464 = vsub.s32 %v2461, %v2463
    %v2465 = vrot.slane %v2451, %v2464
    %v2466 = vcombine.low %v2458, %v2465
    %v2468 = vunpack.c.l.s4 1983009808
    %v2469 = vunpack.c.0.s8 %v2468
    %v2470 = vlaneseq
    %v2471 = vshrl.u32 %v2470, 7
    %v2472 = vsub.s32 %v2469, %v2471
    %v2473 = vrot.slane %v2357, %v2472
    %2482 = vxpose.xlu0.b32.start [1/16] %v2374, 128
    %2483 = vxpose.xlu0.b32.cont [2/16] %v2391, 128
    %2484 = vxpose.xlu0.b32.cont [3/16] %v2408, 128
    %2485 = vxpose.xlu0.b32.cont [4/16] %v2415, 128
    %2486 = vxpose.xlu0.b32.cont [5/16] 0.0, 128
    %2487 = vxpose.xlu0.b32.cont [6/16] 0.0, 128
    %2488 = vxpose.xlu0.b32.cont [7/16] 0.0, 128
    %2489 = vxpose.xlu0.b32.cont [8/16] 0.0, 128
    %2490 = vxpose.xlu0.b32.cont [9/16] 0.0, 128
    %2491 = vxpose.xlu0.b32.cont [10/16] 0.0, 128
    %2492 = vxpose.xlu0.b32.cont [11/16] 0.0, 128
    %2493 = vxpose.xlu0.b32.cont [12/16] 0.0, 128
    %2494 = vxpose.xlu0.b32.cont [13/16] 0.0, 128
    %2495 = vxpose.xlu0.b32.cont [14/16] 0.0, 128
    %2496 = vxpose.xlu0.b32.cont [15/16] 0.0, 128
    %2497 = vxpose.xlu0.b32.end [16/16] 0.0, 128
    %v2498 = vpop.trf.xlu0
    %v2499 = vpop.trf.xlu0
    %v2500 = vpop.trf.xlu0
    %v2501 = vpop.trf.xlu0
    %v2502 = vpop.trf.xlu0
    %v2503 = vpop.trf.xlu0
    %v2504 = vpop.trf.xlu0
    %v2505 = vpop.trf.xlu0
    %v2506 = vpop.trf.xlu0
    %v2507 = vpop.trf.xlu0
    %v2508 = vpop.trf.xlu0
    %v2509 = vpop.trf.xlu0
    %v2510 = vpop.trf.xlu0
    %v2511 = vpop.trf.xlu0
    %v2512 = vpop.trf.xlu0
    %v2513 = vpop.trf.xlu0
    %2514 = vxpose.xlu0.b32.start [1/16] %v2432, 128
    %2515 = vxpose.xlu0.b32.cont [2/16] %v2449, 128
    %2516 = vxpose.xlu0.b32.cont [3/16] %v2466, 128
    %2517 = vxpose.xlu0.b32.cont [4/16] %v2473, 128
    %2518 = vxpose.xlu0.b32.cont [5/16] 0.0, 128
    %2519 = vxpose.xlu0.b32.cont [6/16] 0.0, 128
    %2520 = vxpose.xlu0.b32.cont [7/16] 0.0, 128
    %2521 = vxpose.xlu0.b32.cont [8/16] 0.0, 128
    %2522 = vxpose.xlu0.b32.cont [9/16] 0.0, 128
    %2523 = vxpose.xlu0.b32.cont [10/16] 0.0, 128
    %2524 = vxpose.xlu0.b32.cont [11/16] 0.0, 128
    %2525 = vxpose.xlu0.b32.cont [12/16] 0.0, 128
    %2526 = vxpose.xlu0.b32.cont [13/16] 0.0, 128
    %2527 = vxpose.xlu0.b32.cont [14/16] 0.0, 128
    %2528 = vxpose.xlu0.b32.cont [15/16] 0.0, 128
    %2529 = vxpose.xlu0.b32.end [16/16] 0.0, 128
    %v2530 = vpop.trf.xlu0
    %v2531 = vpop.trf.xlu0
    %v2532 = vpop.trf.xlu0
    %v2533 = vpop.trf.xlu0
    %v2534 = vpop.trf.xlu0
    %v2535 = vpop.trf.xlu0
    %v2536 = vpop.trf.xlu0
    %v2537 = vpop.trf.xlu0
    %v2538 = vpop.trf.xlu0
    %v2539 = vpop.trf.xlu0
    %v2540 = vpop.trf.xlu0
    %v2541 = vpop.trf.xlu0
    %v2542 = vpop.trf.xlu0
    %v2543 = vpop.trf.xlu0
    %v2544 = vpop.trf.xlu0
    %v2545 = vpop.trf.xlu0
    %2547 = vset.pattern.permute.xlu0 0
    %2548 = vperm.xlu0 %2547, %v89
    %v2549 = vpop.permute.xlu0 %2548
    %v2551 = vadd.f32 %v2498, %v2549
    %v2552 = vadd.f32 %v2530, %v2549
    %vm2553 = vcmask 211968
    %v2554 = vsel %vm2553, %v2551, 0.0
    %v2555 = vsel %vm2553, %v2552, 0.0
    %v2556 = vadd.f32 %v2554, %v2555
    %2557 = vadd.xlane.f32.xlu0 %v2556
    %v2558 = vpop.xlane.xlu0 %2557
    %v2559 = vmul.f32 %v2558, 0.01923077
    %v2560 = vmul.f32 %v2551, %v2551
    %v2561 = vmul.f32 %v2552, %v2552
    %v2562 = vsel %vm2553, %v2560, 0.0
    %v2563 = vsel %vm2553, %v2561, 0.0
    %v2564 = vadd.f32 %v2562, %v2563
    %2565 = vadd.xlane.f32.xlu0 %v2564
    %v2566 = vpop.xlane.xlu0 %2565
    %v2567 = vmul.f32 %v2566, 0.01923077
    %v2568 = vmul.f32 %v2559, %v2559
    %v2569 = vsub.f32 %v2567, %v2568
    %v2570 = vmax.f32 %v2569, 0.0
    %v2571 = vadd.f32 %v2570, 1e-05
    %v2572 = vrsqrt.pop %v2571
    %v2573 = vmul.f32 %v2572, %v90
    %v2574 = vmul.f32 %v2559, %v2573
    %v2575 = vsub.f32 %v91, %v2574
    %2577 = vset.pattern.permute.xlu0 0
    %2578 = vperm.xlu0 %2577, %v2573
    %v2579 = vpop.permute.xlu0 %2578
    %v2581 = vmul.f32 %v2551, %v2579
    %v2582 = vmul.f32 %v2552, %v2579
    %2584 = vset.pattern.permute.xlu0 0
    %2585 = vperm.xlu0 %2584, %v2575
    %v2586 = vpop.permute.xlu0 %2585
    %v2588 = vadd.f32 %v2581, %v2586
    %v2589 = vadd.f32 %v2582, %v2586
    %v2590 = vmax.f32 %v2588, 0.0
    %v2591 = vmax.f32 %v2589, 0.0
    %2592 = vxpose.xlu0.b32.start [1/16] %v2590, 128
    %2593 = vxpose.xlu0.b32.cont [2/16] 0.0, 128
    %2594 = vxpose.xlu0.b32.cont [3/16] 0.0, 128
    %2595 = vxpose.xlu0.b32.cont [4/16] 0.0, 128
    %2596 = vxpose.xlu0.b32.cont [5/16] 0.0, 128
    %2597 = vxpose.xlu0.b32.cont [6/16] 0.0, 128
    %2598 = vxpose.xlu0.b32.cont [7/16] 0.0, 128
    %2599 = vxpose.xlu0.b32.cont [8/16] 0.0, 128
    %2600 = vxpose.xlu0.b32.cont [9/16] 0.0, 128
    %2601 = vxpose.xlu0.b32.cont [10/16] 0.0, 128
    %2602 = vxpose.xlu0.b32.cont [11/16] 0.0, 128
    %2603 = vxpose.xlu0.b32.cont [12/16] 0.0, 128
    %2604 = vxpose.xlu0.b32.cont [13/16] 0.0, 128
    %2605 = vxpose.xlu0.b32.cont [14/16] 0.0, 128
    %2606 = vxpose.xlu0.b32.cont [15/16] 0.0, 128
    %2607 = vxpose.xlu0.b32.end [16/16] 0.0, 128
    %v2608 = vpop.trf.xlu0
    %v2609 = vpop.trf.xlu0
    %v2610 = vpop.trf.xlu0
    %v2611 = vpop.trf.xlu0
    %v2612 = vpop.trf.xlu0
    %v2613 = vpop.trf.xlu0
    %v2614 = vpop.trf.xlu0
    %v2615 = vpop.trf.xlu0
    %v2616 = vpop.trf.xlu0
    %v2617 = vpop.trf.xlu0
    %v2618 = vpop.trf.xlu0
    %v2619 = vpop.trf.xlu0
    %v2620 = vpop.trf.xlu0
    %v2621 = vpop.trf.xlu0
    %v2622 = vpop.trf.xlu0
    %v2623 = vpop.trf.xlu0
    %2624 = vxpose.xlu0.b32.start [1/16] %v2591, 128
    %2625 = vxpose.xlu0.b32.cont [2/16] 0.0, 128
    %2626 = vxpose.xlu0.b32.cont [3/16] 0.0, 128
    %2627 = vxpose.xlu0.b32.cont [4/16] 0.0, 128
    %2628 = vxpose.xlu0.b32.cont [5/16] 0.0, 128
    %2629 = vxpose.xlu0.b32.cont [6/16] 0.0, 128
    %2630 = vxpose.xlu0.b32.cont [7/16] 0.0, 128
    %2631 = vxpose.xlu0.b32.cont [8/16] 0.0, 128
    %2632 = vxpose.xlu0.b32.cont [9/16] 0.0, 128
    %2633 = vxpose.xlu0.b32.cont [10/16] 0.0, 128
    %2634 = vxpose.xlu0.b32.cont [11/16] 0.0, 128
    %2635 = vxpose.xlu0.b32.cont [12/16] 0.0, 128
    %2636 = vxpose.xlu0.b32.cont [13/16] 0.0, 128
    %2637 = vxpose.xlu0.b32.cont [14/16] 0.0, 128
    %2638 = vxpose.xlu0.b32.cont [15/16] 0.0, 128
    %2639 = vxpose.xlu0.b32.end [16/16] 0.0, 128
    %v2640 = vpop.trf.xlu0
    %v2641 = vpop.trf.xlu0
    %v2642 = vpop.trf.xlu0
    %v2643 = vpop.trf.xlu0
    %v2644 = vpop.trf.xlu0
    %v2645 = vpop.trf.xlu0
    %v2646 = vpop.trf.xlu0
    %v2647 = vpop.trf.xlu0
    %v2648 = vpop.trf.xlu0
    %v2649 = vpop.trf.xlu0
    %v2650 = vpop.trf.xlu0
    %v2651 = vpop.trf.xlu0
    %v2652 = vpop.trf.xlu0
    %v2653 = vpop.trf.xlu0
    %v2654 = vpop.trf.xlu0
    %v2655 = vpop.trf.xlu0
    %v2664 = vcombine.high %v2608, %v2608
    %v2666 = vunpack.c.l.s4 1983009808
    %v2667 = vunpack.c.0.s8 %v2666
    %v2668 = vlaneseq
    %v2669 = vshrl.u32 %v2668, 7
    %v2670 = vsub.s32 %v2667, %v2669
    %v2671 = vrot.slane %v2608, %v2670
    %v2673 = vunpack.c.l.s4 1983009808
    %v2674 = vunpack.c.0.s8 %v2673
    %v2675 = vlaneseq
    %v2676 = vshrl.u32 %v2675, 7
    %v2677 = vsub.s32 %v2674, %v2676
    %v2678 = vrot.slane %v2664, %v2677
    %v2679 = vcombine.high %v2671, %v2671
    %v2680 = vcombine.high %v2678, %v2678
    %v2681 = vcombine.high %v2609, %v2609
    %v2683 = vunpack.c.l.s4 1983009808
    %v2684 = vunpack.c.0.s8 %v2683
    %v2685 = vlaneseq
    %v2686 = vshrl.u32 %v2685, 7
    %v2687 = vsub.s32 %v2684, %v2686
    %v2688 = vrot.slane %v2609, %v2687
    %v2690 = vunpack.c.l.s4 1983009808
    %v2691 = vunpack.c.0.s8 %v2690
    %v2692 = vlaneseq
    %v2693 = vshrl.u32 %v2692, 7
    %v2694 = vsub.s32 %v2691, %v2693
    %v2695 = vrot.slane %v2681, %v2694
    %v2696 = vcombine.high %v2688, %v2688
    %v2697 = vcombine.high %v2695, %v2695
    %v2698 = vcombine.high %v2610, %v2610
    %v2700 = vunpack.c.l.s4 1983009808
    %v2701 = vunpack.c.0.s8 %v2700
    %v2702 = vlaneseq
    %v2703 = vshrl.u32 %v2702, 7
    %v2704 = vsub.s32 %v2701, %v2703
    %v2705 = vrot.slane %v2610, %v2704
    %v2707 = vunpack.c.l.s4 1983009808
    %v2708 = vunpack.c.0.s8 %v2707
    %v2709 = vlaneseq
    %v2710 = vshrl.u32 %v2709, 7
    %v2711 = vsub.s32 %v2708, %v2710
    %v2712 = vrot.slane %v2698, %v2711
    %v2713 = vcombine.high %v2705, %v2705
    %v2714 = vcombine.high %v2712, %v2712
    %v2716 = vunpack.c.l.s4 1983009808
    %v2717 = vunpack.c.0.s8 %v2716
    %v2718 = vlaneseq
    %v2719 = vshrl.u32 %v2718, 7
    %v2720 = vsub.s32 %v2717, %v2719
    %v2721 = vrot.slane %v2611, %v2720
    %v2722 = vcombine.high %v2640, %v2640
    %v2724 = vunpack.c.l.s4 1983009808
    %v2725 = vunpack.c.0.s8 %v2724
    %v2726 = vlaneseq
    %v2727 = vshrl.u32 %v2726, 7
    %v2728 = vsub.s32 %v2725, %v2727
    %v2729 = vrot.slane %v2640, %v2728
    %v2731 = vunpack.c.l.s4 1983009808
    %v2732 = vunpack.c.0.s8 %v2731
    %v2733 = vlaneseq
    %v2734 = vshrl.u32 %v2733, 7
    %v2735 = vsub.s32 %v2732, %v2734
    %v2736 = vrot.slane %v2722, %v2735
    %v2737 = vcombine.high %v2729, %v2729
    %v2738 = vcombine.high %v2736, %v2736
    %v2739 = vcombine.high %v2641, %v2641
    %v2741 = vunpack.c.l.s4 1983009808
    %v2742 = vunpack.c.0.s8 %v2741
    %v2743 = vlaneseq
    %v2744 = vshrl.u32 %v2743, 7
    %v2745 = vsub.s32 %v2742, %v2744
    %v2746 = vrot.slane %v2641, %v2745
    %v2748 = vunpack.c.l.s4 1983009808
    %v2749 = vunpack.c.0.s8 %v2748
    %v2750 = vlaneseq
    %v2751 = vshrl.u32 %v2750, 7
    %v2752 = vsub.s32 %v2749, %v2751
    %v2753 = vrot.slane %v2739, %v2752
    %v2754 = vcombine.high %v2746, %v2746
    %v2755 = vcombine.high %v2753, %v2753
    %v2756 = vcombine.high %v2642, %v2642
    %v2758 = vunpack.c.l.s4 1983009808
    %v2759 = vunpack.c.0.s8 %v2758
    %v2760 = vlaneseq
    %v2761 = vshrl.u32 %v2760, 7
    %v2762 = vsub.s32 %v2759, %v2761
    %v2763 = vrot.slane %v2642, %v2762
    %v2765 = vunpack.c.l.s4 1983009808
    %v2766 = vunpack.c.0.s8 %v2765
    %v2767 = vlaneseq
    %v2768 = vshrl.u32 %v2767, 7
    %v2769 = vsub.s32 %v2766, %v2768
    %v2770 = vrot.slane %v2756, %v2769
    %v2771 = vcombine.high %v2763, %v2763
    %v2772 = vcombine.high %v2770, %v2770
    %v2774 = vunpack.c.l.s4 1983009808
    %v2775 = vunpack.c.0.s8 %v2774
    %v2776 = vlaneseq
    %v2777 = vshrl.u32 %v2776, 7
    %v2778 = vsub.s32 %v2775, %v2777
    %v2779 = vrot.slane %v2643, %v2778
    %v2780 = vcombine.low %v2671, %v2679
    %v2781 = vcombine.low %v2678, %v2680
    %v2783 = vunpack.c.l.s4 1983009808
    %v2784 = vunpack.c.0.s8 %v2783
    %v2785 = vlaneseq
    %v2786 = vshrl.u32 %v2785, 7
    %v2787 = vsub.s32 %v2784, %v2786
    %v2788 = vrot.slane %v2780, %v2787
    %v2790 = vunpack.c.l.s4 1983009808
    %v2791 = vunpack.c.0.s8 %v2790
    %v2792 = vlaneseq
    %v2793 = vshrl.u32 %v2792, 7
    %v2794 = vsub.s32 %v2791, %v2793
    %v2795 = vrot.slane %v2781, %v2794
    %v2796 = vcombine.low %v2788, %v2795
    %v2797 = vcombine.low %v2688, %v2696
    %v2798 = vcombine.low %v2695, %v2697
    %v2800 = vunpack.c.l.s4 1983009808
    %v2801 = vunpack.c.0.s8 %v2800
    %v2802 = vlaneseq
    %v2803 = vshrl.u32 %v2802, 7
    %v2804 = vsub.s32 %v2801, %v2803
    %v2805 = vrot.slane %v2797, %v2804
    %v2807 = vunpack.c.l.s4 1983009808
    %v2808 = vunpack.c.0.s8 %v2807
    %v2809 = vlaneseq
    %v2810 = vshrl.u32 %v2809, 7
    %v2811 = vsub.s32 %v2808, %v2810
    %v2812 = vrot.slane %v2798, %v2811
    %v2813 = vcombine.low %v2805, %v2812
    %v2814 = vcombine.low %v2705, %v2713
    %v2815 = vcombine.low %v2712, %v2714
    %v2817 = vunpack.c.l.s4 1983009808
    %v2818 = vunpack.c.0.s8 %v2817
    %v2819 = vlaneseq
    %v2820 = vshrl.u32 %v2819, 7
    %v2821 = vsub.s32 %v2818, %v2820
    %v2822 = vrot.slane %v2814, %v2821
    %v2824 = vunpack.c.l.s4 1983009808
    %v2825 = vunpack.c.0.s8 %v2824
    %v2826 = vlaneseq
    %v2827 = vshrl.u32 %v2826, 7
    %v2828 = vsub.s32 %v2825, %v2827
    %v2829 = vrot.slane %v2815, %v2828
    %v2830 = vcombine.low %v2822, %v2829
    %v2831 = vcombine.low %v2721, %v2729
    %v2832 = vcombine.low %v2737, %v2736
    %v2834 = vunpack.c.l.s4 1983009808
    %v2835 = vunpack.c.0.s8 %v2834
    %v2836 = vlaneseq
    %v2837 = vshrl.u32 %v2836, 7
    %v2838 = vsub.s32 %v2835, %v2837
    %v2839 = vrot.slane %v2831, %v2838
    %v2841 = vunpack.c.l.s4 1983009808
    %v2842 = vunpack.c.0.s8 %v2841
    %v2843 = vlaneseq
    %v2844 = vshrl.u32 %v2843, 7
    %v2845 = vsub.s32 %v2842, %v2844
    %v2846 = vrot.slane %v2832, %v2845
    %v2847 = vcombine.low %v2839, %v2846
    %v2848 = vcombine.low %v2738, %v2746
    %v2849 = vcombine.low %v2754, %v2753
    %v2851 = vunpack.c.l.s4 1983009808
    %v2852 = vunpack.c.0.s8 %v2851
    %v2853 = vlaneseq
    %v2854 = vshrl.u32 %v2853, 7
    %v2855 = vsub.s32 %v2852, %v2854
    %v2856 = vrot.slane %v2848, %v2855
    %v2858 = vunpack.c.l.s4 1983009808
    %v2859 = vunpack.c.0.s8 %v2858
    %v2860 = vlaneseq
    %v2861 = vshrl.u32 %v2860, 7
    %v2862 = vsub.s32 %v2859, %v2861
    %v2863 = vrot.slane %v2849, %v2862
    %v2864 = vcombine.low %v2856, %v2863
    %v2865 = vcombine.low %v2755, %v2763
    %v2866 = vcombine.low %v2771, %v2770
    %v2868 = vunpack.c.l.s4 1983009808
    %v2869 = vunpack.c.0.s8 %v2868
    %v2870 = vlaneseq
    %v2871 = vshrl.u32 %v2870, 7
    %v2872 = vsub.s32 %v2869, %v2871
    %v2873 = vrot.slane %v2865, %v2872
    %v2875 = vunpack.c.l.s4 1983009808
    %v2876 = vunpack.c.0.s8 %v2875
    %v2877 = vlaneseq
    %v2878 = vshrl.u32 %v2877, 7
    %v2879 = vsub.s32 %v2876, %v2878
    %v2880 = vrot.slane %v2866, %v2879
    %v2881 = vcombine.low %v2873, %v2880
    %v2882 = vcombine.low %v2772, %v2779
    %v2884 = vunpack.c.l.s4 1983009808
    %v2885 = vunpack.c.0.s8 %v2884
    %v2886 = vlaneseq
    %v2887 = vshrl.u32 %v2886, 7
    %v2888 = vsub.s32 %v2885, %v2887
    %v2889 = vrot.slane %v2882, %v2888
    %v2890 = vsel %vm1299, %v2796, 0
    %v2892 = vsel %vm1299, %v2813, 0
    %v2894 = vsel %vm1299, %v2830, 0
    %v2896 = vsel %vm1299, %v2847, 0
    %v2898 = vsel %vm1299, %v2864, 0
    %v2900 = vsel %vm1299, %v2881, 0
    %v2902 = vsel %vm1299, %v2889, 0
    %v2905 = vsel %vm1299, %v80, 0
    %2907 = vmatprep.subr.mxu0 0.0
    %2908 = vmatpush1.xpose.msra.mxu0 %v2905
    %2909 = vmatprep.subr.mxu0 0.0
    %2910 = vmatpush1.xpose.msra.mxu0 0.0
    %2911 = vmatprep.subr.mxu0 0.0
    %2912 = vmatpush1.xpose.msra.mxu0 0.0
    %2913 = vmatprep.subr.mxu0 0.0
    %2914 = vmatpush1.xpose.msra.mxu0 0.0
    %2915 = vmatprep.subr.mxu0 0.0
    %2916 = vmatpush1.xpose.msra.mxu0 0.0
    %2917 = vmatprep.subr.mxu0 0.0
    %2918 = vmatpush1.xpose.msra.mxu0 0.0
    %2919 = vmatprep.subr.mxu0 0.0
    %2920 = vmatpush1.xpose.msra.mxu0 0.0
    %2921 = vmatprep.subr.mxu0 0.0
    %2922 = vmatpush1.xpose.msra.mxu0 0.0
    %2923 = vmatprep.subr.mxu0 0.0
    %2924 = vmatpush1.xpose.msra.mxu0 0.0
    %2925 = vmatprep.subr.mxu0 0.0
    %2926 = vmatpush1.xpose.msra.mxu0 0.0
    %2927 = vmatprep.subr.mxu0 0.0
    %2928 = vmatpush1.xpose.msra.mxu0 0.0
    %2929 = vmatprep.subr.mxu0 0.0
    %2930 = vmatpush1.xpose.msra.mxu0 0.0
    %2931 = vmatprep.subr.mxu0 0.0
    %2932 = vmatpush1.xpose.msra.mxu0 0.0
    %2933 = vmatprep.subr.mxu0 0.0
    %2934 = vmatpush1.xpose.msra.mxu0 0.0
    %2935 = vmatprep.subr.mxu0 0.0
    %2936 = vmatpush1.xpose.msra.mxu0 0.0
    %2937 = vmatprep.subr.mxu0 0.0
    %2938 = vmatpush1.xpose.msra.mxu0 0.0
    %2939 = vmatprep.subr.mxu0 0.0
    %2940 = vmatpush1.xpose.msra.mxu0 0.0
    %2941 = vmatprep.subr.mxu0 0.0
    %2942 = vmatpush1.xpose.msra.mxu0 0.0
    %2943 = vmatprep.subr.mxu0 0.0
    %2944 = vmatpush1.xpose.msra.mxu0 0.0
    %2945 = vmatprep.subr.mxu0 0.0
    %2946 = vmatpush1.xpose.msra.mxu0 0.0
    %2947 = vmatprep.subr.mxu0 0.0
    %2948 = vmatpush1.xpose.msra.mxu0 0.0
    %2949 = vmatprep.subr.mxu0 0.0
    %2950 = vmatpush1.xpose.msra.mxu0 0.0
    %2951 = vmatprep.subr.mxu0 0.0
    %2952 = vmatpush1.xpose.msra.mxu0 0.0
    %2953 = vmatprep.subr.mxu0 0.0
    %2954 = vmatpush1.xpose.msra.mxu0 0.0
    %2955 = vmatprep.subr.mxu0 0.0
    %2956 = vmatpush1.xpose.msra.mxu0 0.0
    %2957 = vmatprep.subr.mxu0 0.0
    %2958 = vmatpush1.xpose.msra.mxu0 0.0
    %2959 = vmatprep.subr.mxu0 0.0
    %2960 = vmatpush1.xpose.msra.mxu0 0.0
    %2961 = vmatprep.subr.mxu0 0.0
    %2962 = vmatpush1.xpose.msra.mxu0 0.0
    %2963 = vmatprep.subr.mxu0 0.0
    %2964 = vmatpush1.xpose.msra.mxu0 0.0
    %2965 = vmatprep.subr.mxu0 0.0
    %2966 = vmatpush1.xpose.msra.mxu0 0.0
    %2967 = vmatprep.subr.mxu0 0.0
    %2968 = vmatpush1.xpose.msra.mxu0 0.0
    %2969 = vmatprep.subr.mxu0 0.0
    %2970 = vmatpush1.xpose.msra.mxu0 0.0
    %2971 = vmatprep.mubr.f32.mxu0 0.0
    %2972 = vmatmul.mubr.f32.gmra.mrb[0].mxu0 %v2890
    %v2973 = vpop.f32.mrb[0].mxu0
    %v2974 = vadd.f32 0.0, %v2973
    %v2975 = vpop.f32.mrb[0].mxu0
    %2976 = vmatprep.mubr.f32.mxu0 0.0
    %2977 = vmatmul.mubr.f32.gmra.mrb[0].mxu0 %v2892
    %v2978 = vpop.f32.mrb[0].mxu0
    %v2979 = vadd.f32 0.0, %v2978
    %v2980 = vpop.f32.mrb[0].mxu0
    %2981 = vmatprep.mubr.f32.mxu0 0.0
    %2982 = vmatmul.mubr.f32.gmra.mrb[0].mxu0 %v2894
    %v2983 = vpop.f32.mrb[0].mxu0
    %v2984 = vadd.f32 0.0, %v2983
    %v2985 = vpop.f32.mrb[0].mxu0
    %2986 = vmatprep.mubr.f32.mxu0 0.0
    %2987 = vmatmul.mubr.f32.gmra.mrb[0].mxu0 %v2896
    %v2988 = vpop.f32.mrb[0].mxu0
    %v2989 = vadd.f32 0.0, %v2988
    %v2990 = vpop.f32.mrb[0].mxu0
    %2991 = vmatprep.mubr.f32.mxu0 0.0
    %2992 = vmatmul.mubr.f32.gmra.mrb[0].mxu0 %v2898
    %v2993 = vpop.f32.mrb[0].mxu0
    %v2994 = vadd.f32 0.0, %v2993
    %v2995 = vpop.f32.mrb[0].mxu0
    %2996 = vmatprep.mubr.f32.mxu0 0.0
    %2997 = vmatmul.mubr.f32.gmra.mrb[0].mxu0 %v2900
    %v2998 = vpop.f32.mrb[0].mxu0
    %v2999 = vadd.f32 0.0, %v2998
    %v3000 = vpop.f32.mrb[0].mxu0
    %3001 = vmatprep.mubr.f32.mxu0 0.0
    %3002 = vmatmul.mubr.f32.gmra.mrb[0].mxu0 %v2902
    %v3003 = vpop.f32.mrb[0].mxu0
    %v3004 = vadd.f32 0.0, %v3003
    %v3005 = vpop.f32.mrb[0].mxu0
    %3006 = vdwg.mxu0
    %v3014 = vcombine.high %v2974, %v2974
    %v3016 = vunpack.c.l.s4 1983009808
    %v3017 = vunpack.c.0.s8 %v3016
    %v3018 = vlaneseq
    %v3019 = vshrl.u32 %v3018, 7
    %v3020 = vsub.s32 %v3017, %v3019
    %v3021 = vrot.slane %v2974, %v3020
    %v3023 = vunpack.c.l.s4 1983009808
    %v3024 = vunpack.c.0.s8 %v3023
    %v3025 = vlaneseq
    %v3026 = vshrl.u32 %v3025, 7
    %v3027 = vsub.s32 %v3024, %v3026
    %v3028 = vrot.slane %v3014, %v3027
    %v3029 = vcombine.high %v3021, %v3021
    %v3030 = vcombine.high %v3028, %v3028
    %v3031 = vcombine.high %v2979, %v2979
    %v3033 = vunpack.c.l.s4 1983009808
    %v3034 = vunpack.c.0.s8 %v3033
    %v3035 = vlaneseq
    %v3036 = vshrl.u32 %v3035, 7
    %v3037 = vsub.s32 %v3034, %v3036
    %v3038 = vrot.slane %v2979, %v3037
    %v3040 = vunpack.c.l.s4 1983009808
    %v3041 = vunpack.c.0.s8 %v3040
    %v3042 = vlaneseq
    %v3043 = vshrl.u32 %v3042, 7
    %v3044 = vsub.s32 %v3041, %v3043
    %v3045 = vrot.slane %v3031, %v3044
    %v3046 = vcombine.high %v3038, %v3038
    %v3047 = vcombine.high %v3045, %v3045
    %v3048 = vcombine.high %v2984, %v2984
    %v3050 = vunpack.c.l.s4 1983009808
    %v3051 = vunpack.c.0.s8 %v3050
    %v3052 = vlaneseq
    %v3053 = vshrl.u32 %v3052, 7
    %v3054 = vsub.s32 %v3051, %v3053
    %v3055 = vrot.slane %v2984, %v3054
    %v3057 = vunpack.c.l.s4 1983009808
    %v3058 = vunpack.c.0.s8 %v3057
    %v3059 = vlaneseq
    %v3060 = vshrl.u32 %v3059, 7
    %v3061 = vsub.s32 %v3058, %v3060
    %v3062 = vrot.slane %v3048, %v3061
    %v3063 = vcombine.high %v3055, %v3055
    %v3064 = vcombine.high %v3062, %v3062
    %v3065 = vcombine.high %v2989, %v2989
    %v3067 = vunpack.c.l.s4 1983009808
    %v3068 = vunpack.c.0.s8 %v3067
    %v3069 = vlaneseq
    %v3070 = vshrl.u32 %v3069, 7
    %v3071 = vsub.s32 %v3068, %v3070
    %v3072 = vrot.slane %v2989, %v3071
    %v3074 = vunpack.c.l.s4 1983009808
    %v3075 = vunpack.c.0.s8 %v3074
    %v3076 = vlaneseq
    %v3077 = vshrl.u32 %v3076, 7
    %v3078 = vsub.s32 %v3075, %v3077
    %v3079 = vrot.slane %v3065, %v3078
    %v3080 = vcombine.high %v3072, %v3072
    %v3081 = vcombine.high %v3079, %v3079
    %v3082 = vcombine.high %v2994, %v2994
    %v3084 = vunpack.c.l.s4 1983009808
    %v3085 = vunpack.c.0.s8 %v3084
    %v3086 = vlaneseq
    %v3087 = vshrl.u32 %v3086, 7
    %v3088 = vsub.s32 %v3085, %v3087
    %v3089 = vrot.slane %v2994, %v3088
    %v3091 = vunpack.c.l.s4 1983009808
    %v3092 = vunpack.c.0.s8 %v3091
    %v3093 = vlaneseq
    %v3094 = vshrl.u32 %v3093, 7
    %v3095 = vsub.s32 %v3092, %v3094
    %v3096 = vrot.slane %v3082, %v3095
    %v3097 = vcombine.high %v3089, %v3089
    %v3098 = vcombine.high %v3096, %v3096
    %v3099 = vcombine.high %v2999, %v2999
    %v3101 = vunpack.c.l.s4 1983009808
    %v3102 = vunpack.c.0.s8 %v3101
    %v3103 = vlaneseq
    %v3104 = vshrl.u32 %v3103, 7
    %v3105 = vsub.s32 %v3102, %v3104
    %v3106 = vrot.slane %v2999, %v3105
    %v3108 = vunpack.c.l.s4 1983009808
    %v3109 = vunpack.c.0.s8 %v3108
    %v3110 = vlaneseq
    %v3111 = vshrl.u32 %v3110, 7
    %v3112 = vsub.s32 %v3109, %v3111
    %v3113 = vrot.slane %v3099, %v3112
    %v3114 = vcombine.high %v3106, %v3106
    %v3115 = vcombine.high %v3113, %v3113
    %v3117 = vunpack.c.l.s4 1983009808
    %v3118 = vunpack.c.0.s8 %v3117
    %v3119 = vlaneseq
    %v3120 = vshrl.u32 %v3119, 7
    %v3121 = vsub.s32 %v3118, %v3120
    %v3122 = vrot.slane %v3004, %v3121
    %v3123 = vcombine.high %v3122, %v3122
    %v3124 = vcombine.low %v3021, %v3029
    %v3125 = vcombine.low %v3028, %v3030
    %v3127 = vunpack.c.l.s4 1983009808
    %v3128 = vunpack.c.0.s8 %v3127
    %v3129 = vlaneseq
    %v3130 = vshrl.u32 %v3129, 7
    %v3131 = vsub.s32 %v3128, %v3130
    %v3132 = vrot.slane %v3124, %v3131
    %v3134 = vunpack.c.l.s4 1983009808
    %v3135 = vunpack.c.0.s8 %v3134
    %v3136 = vlaneseq
    %v3137 = vshrl.u32 %v3136, 7
    %v3138 = vsub.s32 %v3135, %v3137
    %v3139 = vrot.slane %v3125, %v3138
    %v3140 = vcombine.low %v3132, %v3139
    %v3141 = vcombine.low %v3038, %v3046
    %v3142 = vcombine.low %v3045, %v3047
    %v3144 = vunpack.c.l.s4 1983009808
    %v3145 = vunpack.c.0.s8 %v3144
    %v3146 = vlaneseq
    %v3147 = vshrl.u32 %v3146, 7
    %v3148 = vsub.s32 %v3145, %v3147
    %v3149 = vrot.slane %v3141, %v3148
    %v3151 = vunpack.c.l.s4 1983009808
    %v3152 = vunpack.c.0.s8 %v3151
    %v3153 = vlaneseq
    %v3154 = vshrl.u32 %v3153, 7
    %v3155 = vsub.s32 %v3152, %v3154
    %v3156 = vrot.slane %v3142, %v3155
    %v3157 = vcombine.low %v3149, %v3156
    %v3158 = vcombine.low %v3055, %v3063
    %v3159 = vcombine.low %v3062, %v3064
    %v3161 = vunpack.c.l.s4 1983009808
    %v3162 = vunpack.c.0.s8 %v3161
    %v3163 = vlaneseq
    %v3164 = vshrl.u32 %v3163, 7
    %v3165 = vsub.s32 %v3162, %v3164
    %v3166 = vrot.slane %v3158, %v3165
    %v3168 = vunpack.c.l.s4 1983009808
    %v3169 = vunpack.c.0.s8 %v3168
    %v3170 = vlaneseq
    %v3171 = vshrl.u32 %v3170, 7
    %v3172 = vsub.s32 %v3169, %v3171
    %v3173 = vrot.slane %v3159, %v3172
    %v3174 = vcombine.low %v3166, %v3173
    %v3176 = vunpack.c.l.s4 1983009808
    %v3177 = vunpack.c.0.s8 %v3176
    %v3178 = vlaneseq
    %v3179 = vshrl.u32 %v3178, 7
    %v3180 = vsub.s32 %v3177, %v3179
    %v3181 = vrot.slane %v3072, %v3180
    %v3182 = vcombine.low %v3080, %v3079
    %v3183 = vcombine.low %v3081, %v3089
    %v3185 = vunpack.c.l.s4 1983009808
    %v3186 = vunpack.c.0.s8 %v3185
    %v3187 = vlaneseq
    %v3188 = vshrl.u32 %v3187, 7
    %v3189 = vsub.s32 %v3186, %v3188
    %v3190 = vrot.slane %v3182, %v3189
    %v3192 = vunpack.c.l.s4 1983009808
    %v3193 = vunpack.c.0.s8 %v3192
    %v3194 = vlaneseq
    %v3195 = vshrl.u32 %v3194, 7
    %v3196 = vsub.s32 %v3193, %v3195
    %v3197 = vrot.slane %v3183, %v3196
    %v3198 = vcombine.low %v3190, %v3197
    %v3199 = vcombine.low %v3097, %v3096
    %v3200 = vcombine.low %v3098, %v3106
    %v3202 = vunpack.c.l.s4 1983009808
    %v3203 = vunpack.c.0.s8 %v3202
    %v3204 = vlaneseq
    %v3205 = vshrl.u32 %v3204, 7
    %v3206 = vsub.s32 %v3203, %v3205
    %v3207 = vrot.slane %v3199, %v3206
    %v3209 = vunpack.c.l.s4 1983009808
    %v3210 = vunpack.c.0.s8 %v3209
    %v3211 = vlaneseq
    %v3212 = vshrl.u32 %v3211, 7
    %v3213 = vsub.s32 %v3210, %v3212
    %v3214 = vrot.slane %v3200, %v3213
    %v3215 = vcombine.low %v3207, %v3214
    %v3216 = vcombine.low %v3114, %v3113
    %v3217 = vcombine.low %v3115, %v3122
    %v3219 = vunpack.c.l.s4 1983009808
    %v3220 = vunpack.c.0.s8 %v3219
    %v3221 = vlaneseq
    %v3222 = vshrl.u32 %v3221, 7
    %v3223 = vsub.s32 %v3220, %v3222
    %v3224 = vrot.slane %v3216, %v3223
    %v3226 = vunpack.c.l.s4 1983009808
    %v3227 = vunpack.c.0.s8 %v3226
    %v3228 = vlaneseq
    %v3229 = vshrl.u32 %v3228, 7
    %v3230 = vsub.s32 %v3227, %v3229
    %v3231 = vrot.slane %v3217, %v3230
    %v3232 = vcombine.low %v3224, %v3231
    %v3234 = vunpack.c.l.s4 1983009808
    %v3235 = vunpack.c.0.s8 %v3234
    %v3236 = vlaneseq
    %v3237 = vshrl.u32 %v3236, 7
    %v3238 = vsub.s32 %v3235, %v3237
    %v3239 = vrot.slane %v3123, %v3238
    %3248 = vxpose.xlu0.b32.start [1/16] %v3140, 128
    %3249 = vxpose.xlu0.b32.cont [2/16] %v3157, 128
    %3250 = vxpose.xlu0.b32.cont [3/16] %v3174, 128
    %3251 = vxpose.xlu0.b32.cont [4/16] %v3181, 128
    %3252 = vxpose.xlu0.b32.cont [5/16] 0.0, 128
    %3253 = vxpose.xlu0.b32.cont [6/16] 0.0, 128
    %3254 = vxpose.xlu0.b32.cont [7/16] 0.0, 128
    %3255 = vxpose.xlu0.b32.cont [8/16] 0.0, 128
    %3256 = vxpose.xlu0.b32.cont [9/16] 0.0, 128
    %3257 = vxpose.xlu0.b32.cont [10/16] 0.0, 128
    %3258 = vxpose.xlu0.b32.cont [11/16] 0.0, 128
    %3259 = vxpose.xlu0.b32.cont [12/16] 0.0, 128
    %3260 = vxpose.xlu0.b32.cont [13/16] 0.0, 128
    %3261 = vxpose.xlu0.b32.cont [14/16] 0.0, 128
    %3262 = vxpose.xlu0.b32.cont [15/16] 0.0, 128
    %3263 = vxpose.xlu0.b32.end [16/16] 0.0, 128
    %v3264 = vpop.trf.xlu0
    %v3265 = vpop.trf.xlu0
    %v3266 = vpop.trf.xlu0
    %v3267 = vpop.trf.xlu0
    %v3268 = vpop.trf.xlu0
    %v3269 = vpop.trf.xlu0
    %v3270 = vpop.trf.xlu0
    %v3271 = vpop.trf.xlu0
    %v3272 = vpop.trf.xlu0
    %v3273 = vpop.trf.xlu0
    %v3274 = vpop.trf.xlu0
    %v3275 = vpop.trf.xlu0
    %v3276 = vpop.trf.xlu0
    %v3277 = vpop.trf.xlu0
    %v3278 = vpop.trf.xlu0
    %v3279 = vpop.trf.xlu0
    %3280 = vxpose.xlu0.b32.start [1/16] %v3198, 128
    %3281 = vxpose.xlu0.b32.cont [2/16] %v3215, 128
    %3282 = vxpose.xlu0.b32.cont [3/16] %v3232, 128
    %3283 = vxpose.xlu0.b32.cont [4/16] %v3239, 128
    %3284 = vxpose.xlu0.b32.cont [5/16] 0.0, 128
    %3285 = vxpose.xlu0.b32.cont [6/16] 0.0, 128
    %3286 = vxpose.xlu0.b32.cont [7/16] 0.0, 128
    %3287 = vxpose.xlu0.b32.cont [8/16] 0.0, 128
    %3288 = vxpose.xlu0.b32.cont [9/16] 0.0, 128
    %3289 = vxpose.xlu0.b32.cont [10/16] 0.0, 128
    %3290 = vxpose.xlu0.b32.cont [11/16] 0.0, 128
    %3291 = vxpose.xlu0.b32.cont [12/16] 0.0, 128
    %3292 = vxpose.xlu0.b32.cont [13/16] 0.0, 128
    %3293 = vxpose.xlu0.b32.cont [14/16] 0.0, 128
    %3294 = vxpose.xlu0.b32.cont [15/16] 0.0, 128
    %3295 = vxpose.xlu0.b32.end [16/16] 0.0, 128
    %v3296 = vpop.trf.xlu0
    %v3297 = vpop.trf.xlu0
    %v3298 = vpop.trf.xlu0
    %v3299 = vpop.trf.xlu0
    %v3300 = vpop.trf.xlu0
    %v3301 = vpop.trf.xlu0
    %v3302 = vpop.trf.xlu0
    %v3303 = vpop.trf.xlu0
    %v3304 = vpop.trf.xlu0
    %v3305 = vpop.trf.xlu0
    %v3306 = vpop.trf.xlu0
    %v3307 = vpop.trf.xlu0
    %v3308 = vpop.trf.xlu0
    %v3309 = vpop.trf.xlu0
    %v3310 = vpop.trf.xlu0
    %v3311 = vpop.trf.xlu0
    %3313 = vset.pattern.permute.xlu0 0
    %3314 = vperm.xlu0 %3313, %v92
    %v3315 = vpop.permute.xlu0 %3314
    %v3317 = vadd.f32 %v3264, %v3315
    %v3318 = vadd.f32 %v3296, %v3315
    %v3319 = vsel %vm2553, %v3317, 0.0
    %v3320 = vsel %vm2553, %v3318, 0.0
    %v3321 = vadd.f32 %v3319, %v3320
    %3322 = vadd.xlane.f32.xlu0 %v3321
    %v3323 = vpop.xlane.xlu0 %3322
    %v3324 = vmul.f32 %v3323, 0.01923077
    %v3325 = vmul.f32 %v3317, %v3317
    %v3326 = vmul.f32 %v3318, %v3318
    %v3327 = vsel %vm2553, %v3325, 0.0
    %v3328 = vsel %vm2553, %v3326, 0.0
    %v3329 = vadd.f32 %v3327, %v3328
    %3330 = vadd.xlane.f32.xlu0 %v3329
    %v3331 = vpop.xlane.xlu0 %3330
    %v3332 = vmul.f32 %v3331, 0.01923077
    %v3333 = vmul.f32 %v3324, %v3324
    %v3334 = vsub.f32 %v3332, %v3333
    %v3335 = vmax.f32 %v3334, 0.0
    %v3336 = vadd.f32 %v3335, 1e-05
    %v3337 = vrsqrt.pop %v3336
    %v3338 = vmul.f32 %v3337, %v93
    %v3339 = vmul.f32 %v3324, %v3338
    %v3340 = vsub.f32 %v94, %v3339
    %3342 = vset.pattern.permute.xlu0 0
    %3343 = vperm.xlu0 %3342, %v3338
    %v3344 = vpop.permute.xlu0 %3343
    %v3346 = vmul.f32 %v3317, %v3344
    %v3347 = vmul.f32 %v3318, %v3344
    %3349 = vset.pattern.permute.xlu0 0
    %3350 = vperm.xlu0 %3349, %v3340
    %v3351 = vpop.permute.xlu0 %3350
    %v3353 = vadd.f32 %v3346, %v3351
    %v3354 = vadd.f32 %v3347, %v3351
    %v3355 = vadd.f32 %v3353, %v1815
    %v3356 = vadd.f32 %v3354, %v1817
    %v3357 = vmax.f32 %v3355, 0.0
    %v3358 = vmax.f32 %v3356, 0.0
    %3361 = vrot.lane.b32.xlu0 %v3357, 127
    %v3362 = vpop.permute.xlu0 %3361
    %3363 = vrot.lane.b32.xlu0 %v3358, 127
    %v3364 = vpop.permute.xlu0 %3363
    %3367 = vrot.lane.b32.xlu0 %v3357, 126
    %v3368 = vpop.permute.xlu0 %3367
    %3369 = vrot.lane.b32.xlu0 %v3358, 126
    %v3370 = vpop.permute.xlu0 %3369
    %3373 = vxpose.xlu0.b32.start [1/16] %v3357, 128
    %3374 = vxpose.xlu0.b32.cont [2/16] %v3362, 128
    %3375 = vxpose.xlu0.b32.cont [3/16] %v3368, 128
    %3376 = vxpose.xlu0.b32.cont [4/16] 0.0, 128
    %3377 = vxpose.xlu0.b32.cont [5/16] 0.0, 128
    %3378 = vxpose.xlu0.b32.cont [6/16] 0.0, 128
    %3379 = vxpose.xlu0.b32.cont [7/16] 0.0, 128
    %3380 = vxpose.xlu0.b32.cont [8/16] 0.0, 128
    %3381 = vxpose.xlu0.b32.cont [9/16] 0.0, 128
    %3382 = vxpose.xlu0.b32.cont [10/16] 0.0, 128
    %3383 = vxpose.xlu0.b32.cont [11/16] 0.0, 128
    %3384 = vxpose.xlu0.b32.cont [12/16] 0.0, 128
    %3385 = vxpose.xlu0.b32.cont [13/16] 0.0, 128
    %3386 = vxpose.xlu0.b32.cont [14/16] 0.0, 128
    %3387 = vxpose.xlu0.b32.cont [15/16] 0.0, 128
    %3388 = vxpose.xlu0.b32.end [16/16] 0.0, 128
    %v3389 = vpop.trf.xlu0
    %v3390 = vpop.trf.xlu0
    %v3391 = vpop.trf.xlu0
    %v3392 = vpop.trf.xlu0
    %v3393 = vpop.trf.xlu0
    %v3394 = vpop.trf.xlu0
    %v3395 = vpop.trf.xlu0
    %v3396 = vpop.trf.xlu0
    %v3397 = vpop.trf.xlu0
    %v3398 = vpop.trf.xlu0
    %v3399 = vpop.trf.xlu0
    %v3400 = vpop.trf.xlu0
    %v3401 = vpop.trf.xlu0
    %v3402 = vpop.trf.xlu0
    %v3403 = vpop.trf.xlu0
    %v3404 = vpop.trf.xlu0
    %3405 = vxpose.xlu0.b32.start [1/16] %v3358, 128
    %3406 = vxpose.xlu0.b32.cont [2/16] %v3364, 128
    %3407 = vxpose.xlu0.b32.cont [3/16] %v3370, 128
    %3408 = vxpose.xlu0.b32.cont [4/16] 0.0, 128
    %3409 = vxpose.xlu0.b32.cont [5/16] 0.0, 128
    %3410 = vxpose.xlu0.b32.cont [6/16] 0.0, 128
    %3411 = vxpose.xlu0.b32.cont [7/16] 0.0, 128
    %3412 = vxpose.xlu0.b32.cont [8/16] 0.0, 128
    %3413 = vxpose.xlu0.b32.cont [9/16] 0.0, 128
    %3414 = vxpose.xlu0.b32.cont [10/16] 0.0, 128
    %3415 = vxpose.xlu0.b32.cont [11/16] 0.0, 128
    %3416 = vxpose.xlu0.b32.cont [12/16] 0.0, 128
    %3417 = vxpose.xlu0.b32.cont [13/16] 0.0, 128
    %3418 = vxpose.xlu0.b32.cont [14/16] 0.0, 128
    %3419 = vxpose.xlu0.b32.cont [15/16] 0.0, 128
    %3420 = vxpose.xlu0.b32.end [16/16] 0.0, 128
    %v3421 = vpop.trf.xlu0
    %v3422 = vpop.trf.xlu0
    %v3423 = vpop.trf.xlu0
    %v3424 = vpop.trf.xlu0
    %v3425 = vpop.trf.xlu0
    %v3426 = vpop.trf.xlu0
    %v3427 = vpop.trf.xlu0
    %v3428 = vpop.trf.xlu0
    %v3429 = vpop.trf.xlu0
    %v3430 = vpop.trf.xlu0
    %v3431 = vpop.trf.xlu0
    %v3432 = vpop.trf.xlu0
    %v3433 = vpop.trf.xlu0
    %v3434 = vpop.trf.xlu0
    %v3435 = vpop.trf.xlu0
    %v3436 = vpop.trf.xlu0
    %v3438 = vsel %vm454, %v3389, 0
    %v3441 = vsel %vm454, %v3390, 0
    %v3444 = vsel %vm454, %v3391, 0
    %v3447 = vsel %vm454, %v3421, 0
    %v3450 = vsel %vm454, %v3422, 0
    %v3453 = vsel %vm454, %v3423, 0
    %v3456 = vsel %vm454, %v77, 0
    %3458 = vmatprep.subr.mxu0 0.0
    %3459 = vmatpush1.xpose.msra.mxu0 %v3456
    %3460 = vmatprep.subr.mxu0 0.0
    %3461 = vmatpush1.xpose.msra.mxu0 0.0
    %3462 = vmatprep.subr.mxu0 0.0
    %3463 = vmatpush1.xpose.msra.mxu0 0.0
    %3464 = vmatprep.subr.mxu0 0.0
    %3465 = vmatpush1.xpose.msra.mxu0 0.0
    %3466 = vmatprep.subr.mxu0 0.0
    %3467 = vmatpush1.xpose.msra.mxu0 0.0
    %3468 = vmatprep.subr.mxu0 0.0
    %3469 = vmatpush1.xpose.msra.mxu0 0.0
    %3470 = vmatprep.subr.mxu0 0.0
    %3471 = vmatpush1.xpose.msra.mxu0 0.0
    %3472 = vmatprep.subr.mxu0 0.0
    %3473 = vmatpush1.xpose.msra.mxu0 0.0
    %3474 = vmatprep.subr.mxu0 0.0
    %3475 = vmatpush1.xpose.msra.mxu0 0.0
    %3476 = vmatprep.subr.mxu0 0.0
    %3477 = vmatpush1.xpose.msra.mxu0 0.0
    %3478 = vmatprep.subr.mxu0 0.0
    %3479 = vmatpush1.xpose.msra.mxu0 0.0
    %3480 = vmatprep.subr.mxu0 0.0
    %3481 = vmatpush1.xpose.msra.mxu0 0.0
    %3482 = vmatprep.subr.mxu0 0.0
    %3483 = vmatpush1.xpose.msra.mxu0 0.0
    %3484 = vmatprep.subr.mxu0 0.0
    %3485 = vmatpush1.xpose.msra.mxu0 0.0
    %3486 = vmatprep.subr.mxu0 0.0
    %3487 = vmatpush1.xpose.msra.mxu0 0.0
    %3488 = vmatprep.subr.mxu0 0.0
    %3489 = vmatpush1.xpose.msra.mxu0 0.0
    %3490 = vmatprep.subr.mxu0 0.0
    %3491 = vmatpush1.xpose.msra.mxu0 0.0
    %3492 = vmatprep.subr.mxu0 0.0
    %3493 = vmatpush1.xpose.msra.mxu0 0.0
    %3494 = vmatprep.subr.mxu0 0.0
    %3495 = vmatpush1.xpose.msra.mxu0 0.0
    %3496 = vmatprep.subr.mxu0 0.0
    %3497 = vmatpush1.xpose.msra.mxu0 0.0
    %3498 = vmatprep.subr.mxu0 0.0
    %3499 = vmatpush1.xpose.msra.mxu0 0.0
    %3500 = vmatprep.subr.mxu0 0.0
    %3501 = vmatpush1.xpose.msra.mxu0 0.0
    %3502 = vmatprep.subr.mxu0 0.0
    %3503 = vmatpush1.xpose.msra.mxu0 0.0
    %3504 = vmatprep.subr.mxu0 0.0
    %3505 = vmatpush1.xpose.msra.mxu0 0.0
    %3506 = vmatprep.subr.mxu0 0.0
    %3507 = vmatpush1.xpose.msra.mxu0 0.0
    %3508 = vmatprep.subr.mxu0 0.0
    %3509 = vmatpush1.xpose.msra.mxu0 0.0
    %3510 = vmatprep.subr.mxu0 0.0
    %3511 = vmatpush1.xpose.msra.mxu0 0.0
    %3512 = vmatprep.subr.mxu0 0.0
    %3513 = vmatpush1.xpose.msra.mxu0 0.0
    %3514 = vmatprep.subr.mxu0 0.0
    %3515 = vmatpush1.xpose.msra.mxu0 0.0
    %3516 = vmatprep.subr.mxu0 0.0
    %3517 = vmatpush1.xpose.msra.mxu0 0.0
    %3518 = vmatprep.subr.mxu0 0.0
    %3519 = vmatpush1.xpose.msra.mxu0 0.0
    %3520 = vmatprep.subr.mxu0 0.0
    %3521 = vmatpush1.xpose.msra.mxu0 0.0
    %3522 = vmatprep.mubr.f32.mxu0 0.0
    %3523 = vmatmul.mubr.f32.gmra.mrb[0].mxu0 %v3438
    %v3524 = vpop.f32.mrb[0].mxu0
    %v3525 = vadd.f32 0.0, %v3524
    %v3526 = vpop.f32.mrb[0].mxu0
    %3527 = vmatprep.mubr.f32.mxu0 0.0
    %3528 = vmatmul.mubr.f32.gmra.mrb[0].mxu0 %v3441
    %v3529 = vpop.f32.mrb[0].mxu0
    %v3530 = vadd.f32 0.0, %v3529
    %v3531 = vpop.f32.mrb[0].mxu0
    %3532 = vmatprep.mubr.f32.mxu0 0.0
    %3533 = vmatmul.mubr.f32.gmra.mrb[0].mxu0 %v3444
    %v3534 = vpop.f32.mrb[0].mxu0
    %v3535 = vadd.f32 0.0, %v3534
    %v3536 = vpop.f32.mrb[0].mxu0
    %3537 = vmatprep.mubr.f32.mxu0 0.0
    %3538 = vmatmul.mubr.f32.gmra.mrb[0].mxu0 %v3447
    %v3539 = vpop.f32.mrb[0].mxu0
    %v3540 = vadd.f32 0.0, %v3539
    %v3541 = vpop.f32.mrb[0].mxu0
    %3542 = vmatprep.mubr.f32.mxu0 0.0
    %3543 = vmatmul.mubr.f32.gmra.mrb[0].mxu0 %v3450
    %v3544 = vpop.f32.mrb[0].mxu0
    %v3545 = vadd.f32 0.0, %v3544
    %v3546 = vpop.f32.mrb[0].mxu0
    %3547 = vmatprep.mubr.f32.mxu0 0.0
    %3548 = vmatmul.mubr.f32.gmra.mrb[0].mxu0 %v3453
    %v3549 = vpop.f32.mrb[0].mxu0
    %v3550 = vadd.f32 0.0, %v3549
    %v3551 = vpop.f32.mrb[0].mxu0
    %3552 = vdwg.mxu0
    %3553 = vxpose.xlu0.b32.start [1/16] %v3525, 128
    %3554 = vxpose.xlu0.b32.cont [2/16] %v3530, 128
    %3555 = vxpose.xlu0.b32.cont [3/16] %v3535, 128
    %3556 = vxpose.xlu0.b32.cont [4/16] 0.0, 128
    %3557 = vxpose.xlu0.b32.cont [5/16] 0.0, 128
    %3558 = vxpose.xlu0.b32.cont [6/16] 0.0, 128
    %3559 = vxpose.xlu0.b32.cont [7/16] 0.0, 128
    %3560 = vxpose.xlu0.b32.cont [8/16] 0.0, 128
    %3561 = vxpose.xlu0.b32.cont [9/16] 0.0, 128
    %3562 = vxpose.xlu0.b32.cont [10/16] 0.0, 128
    %3563 = vxpose.xlu0.b32.cont [11/16] 0.0, 128
    %3564 = vxpose.xlu0.b32.cont [12/16] 0.0, 128
    %3565 = vxpose.xlu0.b32.cont [13/16] 0.0, 128
    %3566 = vxpose.xlu0.b32.cont [14/16] 0.0, 128
    %3567 = vxpose.xlu0.b32.cont [15/16] 0.0, 128
    %3568 = vxpose.xlu0.b32.end [16/16] 0.0, 128
    %v3569 = vpop.trf.xlu0
    %v3570 = vpop.trf.xlu0
    %v3571 = vpop.trf.xlu0
    %v3572 = vpop.trf.xlu0
    %v3573 = vpop.trf.xlu0
    %v3574 = vpop.trf.xlu0
    %v3575 = vpop.trf.xlu0
    %v3576 = vpop.trf.xlu0
    %v3577 = vpop.trf.xlu0
    %v3578 = vpop.trf.xlu0
    %v3579 = vpop.trf.xlu0
    %v3580 = vpop.trf.xlu0
    %v3581 = vpop.trf.xlu0
    %v3582 = vpop.trf.xlu0
    %v3583 = vpop.trf.xlu0
    %v3584 = vpop.trf.xlu0
    %3585 = vxpose.xlu0.b32.start [1/16] %v3540, 128
    %3586 = vxpose.xlu0.b32.cont [2/16] %v3545, 128
    %3587 = vxpose.xlu0.b32.cont [3/16] %v3550, 128
    %3588 = vxpose.xlu0.b32.cont [4/16] 0.0, 128
    %3589 = vxpose.xlu0.b32.cont [5/16] 0.0, 128
    %3590 = vxpose.xlu0.b32.cont [6/16] 0.0, 128
    %3591 = vxpose.xlu0.b32.cont [7/16] 0.0, 128
    %3592 = vxpose.xlu0.b32.cont [8/16] 0.0, 128
    %3593 = vxpose.xlu0.b32.cont [9/16] 0.0, 128
    %3594 = vxpose.xlu0.b32.cont [10/16] 0.0, 128
    %3595 = vxpose.xlu0.b32.cont [11/16] 0.0, 128
    %3596 = vxpose.xlu0.b32.cont [12/16] 0.0, 128
    %3597 = vxpose.xlu0.b32.cont [13/16] 0.0, 128
    %3598 = vxpose.xlu0.b32.cont [14/16] 0.0, 128
    %3599 = vxpose.xlu0.b32.cont [15/16] 0.0, 128
    %3600 = vxpose.xlu0.b32.end [16/16] 0.0, 128
    %v3601 = vpop.trf.xlu0
    %v3602 = vpop.trf.xlu0
    %v3603 = vpop.trf.xlu0
    %v3604 = vpop.trf.xlu0
    %v3605 = vpop.trf.xlu0
    %v3606 = vpop.trf.xlu0
    %v3607 = vpop.trf.xlu0
    %v3608 = vpop.trf.xlu0
    %v3609 = vpop.trf.xlu0
    %v3610 = vpop.trf.xlu0
    %v3611 = vpop.trf.xlu0
    %v3612 = vpop.trf.xlu0
    %v3613 = vpop.trf.xlu0
    %v3614 = vpop.trf.xlu0
    %v3615 = vpop.trf.xlu0
    %v3616 = vpop.trf.xlu0
    %3618 = vset.pattern.permute.xlu0 0
    %3619 = vperm.xlu0 %3618, %v95
    %v3620 = vpop.permute.xlu0 %3619
    %v3622 = vadd.f32 %v3569, %v3620
    %v3623 = vadd.f32 %v3601, %v3620
    %v3624 = vsel %vm454, %v3622, 0.0
    %v3625 = vsel %vm454, %v3623, 0.0
    %v3626 = vadd.f32 %v3624, %v3625
    %3627 = vadd.xlane.f32.xlu0 %v3626
    %v3628 = vpop.xlane.xlu0 %3627
    %v3629 = vmul.f32 %v3628, 0.020833334
    %v3630 = vmul.f32 %v3622, %v3622
    %v3631 = vmul.f32 %v3623, %v3623
    %v3632 = vsel %vm454, %v3630, 0.0
    %v3633 = vsel %vm454, %v3631, 0.0
    %v3634 = vadd.f32 %v3632, %v3633
    %3635 = vadd.xlane.f32.xlu0 %v3634
    %v3636 = vpop.xlane.xlu0 %3635
    %v3637 = vmul.f32 %v3636, 0.020833334
    %v3638 = vmul.f32 %v3629, %v3629
    %v3639 = vsub.f32 %v3637, %v3638
    %v3640 = vmax.f32 %v3639, 0.0
    %v3641 = vadd.f32 %v3640, 1e-05
    %v3642 = vrsqrt.pop %v3641
    %v3643 = vmul.f32 %v3642, %v96
    %v3644 = vmul.f32 %v3629, %v3643
    %v3645 = vsub.f32 %v97, %v3644
    %3647 = vset.pattern.permute.xlu0 0
    %3648 = vperm.xlu0 %3647, %v3643
    %v3649 = vpop.permute.xlu0 %3648
    %v3651 = vmul.f32 %v3622, %v3649
    %v3652 = vmul.f32 %v3623, %v3649
    %3654 = vset.pattern.permute.xlu0 0
    %3655 = vperm.xlu0 %3654, %v3645
    %v3656 = vpop.permute.xlu0 %3655
    %v3658 = vadd.f32 %v3651, %v3656
    %v3659 = vadd.f32 %v3652, %v3656
    %v3660 = vmax.f32 %v3658, 0.0
    %v3661 = vmax.f32 %v3659, 0.0
    %3662 = vxpose.xlu0.b32.start [1/16] %v3660, 128
    %3663 = vxpose.xlu0.b32.cont [2/16] 0.0, 128
    %3664 = vxpose.xlu0.b32.cont [3/16] 0.0, 128
    %3665 = vxpose.xlu0.b32.cont [4/16] 0.0, 128
    %3666 = vxpose.xlu0.b32.cont [5/16] 0.0, 128
    %3667 = vxpose.xlu0.b32.cont [6/16] 0.0, 128
    %3668 = vxpose.xlu0.b32.cont [7/16] 0.0, 128
    %3669 = vxpose.xlu0.b32.cont [8/16] 0.0, 128
    %3670 = vxpose.xlu0.b32.cont [9/16] 0.0, 128
    %3671 = vxpose.xlu0.b32.cont [10/16] 0.0, 128
    %3672 = vxpose.xlu0.b32.cont [11/16] 0.0, 128
    %3673 = vxpose.xlu0.b32.cont [12/16] 0.0, 128
    %3674 = vxpose.xlu0.b32.cont [13/16] 0.0, 128
    %3675 = vxpose.xlu0.b32.cont [14/16] 0.0, 128
    %3676 = vxpose.xlu0.b32.cont [15/16] 0.0, 128
    %3677 = vxpose.xlu0.b32.end [16/16] 0.0, 128
    %v3678 = vpop.trf.xlu0
    %v3679 = vpop.trf.xlu0
    %v3680 = vpop.trf.xlu0
    %v3681 = vpop.trf.xlu0
    %v3682 = vpop.trf.xlu0
    %v3683 = vpop.trf.xlu0
    %v3684 = vpop.trf.xlu0
    %v3685 = vpop.trf.xlu0
    %v3686 = vpop.trf.xlu0
    %v3687 = vpop.trf.xlu0
    %v3688 = vpop.trf.xlu0
    %v3689 = vpop.trf.xlu0
    %v3690 = vpop.trf.xlu0
    %v3691 = vpop.trf.xlu0
    %v3692 = vpop.trf.xlu0
    %v3693 = vpop.trf.xlu0
    %3694 = vxpose.xlu0.b32.start [1/16] %v3661, 128
    %3695 = vxpose.xlu0.b32.cont [2/16] 0.0, 128
    %3696 = vxpose.xlu0.b32.cont [3/16] 0.0, 128
    %3697 = vxpose.xlu0.b32.cont [4/16] 0.0, 128
    %3698 = vxpose.xlu0.b32.cont [5/16] 0.0, 128
    %3699 = vxpose.xlu0.b32.cont [6/16] 0.0, 128
    %3700 = vxpose.xlu0.b32.cont [7/16] 0.0, 128
    %3701 = vxpose.xlu0.b32.cont [8/16] 0.0, 128
    %3702 = vxpose.xlu0.b32.cont [9/16] 0.0, 128
    %3703 = vxpose.xlu0.b32.cont [10/16] 0.0, 128
    %3704 = vxpose.xlu0.b32.cont [11/16] 0.0, 128
    %3705 = vxpose.xlu0.b32.cont [12/16] 0.0, 128
    %3706 = vxpose.xlu0.b32.cont [13/16] 0.0, 128
    %3707 = vxpose.xlu0.b32.cont [14/16] 0.0, 128
    %3708 = vxpose.xlu0.b32.cont [15/16] 0.0, 128
    %3709 = vxpose.xlu0.b32.end [16/16] 0.0, 128
    %v3710 = vpop.trf.xlu0
    %v3711 = vpop.trf.xlu0
    %v3712 = vpop.trf.xlu0
    %v3713 = vpop.trf.xlu0
    %v3714 = vpop.trf.xlu0
    %v3715 = vpop.trf.xlu0
    %v3716 = vpop.trf.xlu0
    %v3717 = vpop.trf.xlu0
    %v3718 = vpop.trf.xlu0
    %v3719 = vpop.trf.xlu0
    %v3720 = vpop.trf.xlu0
    %v3721 = vpop.trf.xlu0
    %v3722 = vpop.trf.xlu0
    %v3723 = vpop.trf.xlu0
    %v3724 = vpop.trf.xlu0
    %v3725 = vpop.trf.xlu0
    %v3727 = vsel %vm1299, %v3678, 0
    %v3730 = vsel %vm1299, %v3679, 0
    %v3733 = vsel %vm1299, %v3680, 0
    %v3736 = vsel %vm1299, %v3710, 0
    %v3739 = vsel %vm1299, %v3711, 0
    %v3742 = vsel %vm1299, %v3712, 0
    %v3745 = vsel %vm1299, %v81, 0
    %3747 = vmatprep.subr.mxu0 0.0
    %3748 = vmatpush1.xpose.msra.mxu0 %v3745
    %3749 = vmatprep.subr.mxu0 0.0
    %3750 = vmatpush1.xpose.msra.mxu0 0.0
    %3751 = vmatprep.subr.mxu0 0.0
    %3752 = vmatpush1.xpose.msra.mxu0 0.0
    %3753 = vmatprep.subr.mxu0 0.0
    %3754 = vmatpush1.xpose.msra.mxu0 0.0
    %3755 = vmatprep.subr.mxu0 0.0
    %3756 = vmatpush1.xpose.msra.mxu0 0.0
    %3757 = vmatprep.subr.mxu0 0.0
    %3758 = vmatpush1.xpose.msra.mxu0 0.0
    %3759 = vmatprep.subr.mxu0 0.0
    %3760 = vmatpush1.xpose.msra.mxu0 0.0
    %3761 = vmatprep.subr.mxu0 0.0
    %3762 = vmatpush1.xpose.msra.mxu0 0.0
    %3763 = vmatprep.subr.mxu0 0.0
    %3764 = vmatpush1.xpose.msra.mxu0 0.0
    %3765 = vmatprep.subr.mxu0 0.0
    %3766 = vmatpush1.xpose.msra.mxu0 0.0
    %3767 = vmatprep.subr.mxu0 0.0
    %3768 = vmatpush1.xpose.msra.mxu0 0.0
    %3769 = vmatprep.subr.mxu0 0.0
    %3770 = vmatpush1.xpose.msra.mxu0 0.0
    %3771 = vmatprep.subr.mxu0 0.0
    %3772 = vmatpush1.xpose.msra.mxu0 0.0
    %3773 = vmatprep.subr.mxu0 0.0
    %3774 = vmatpush1.xpose.msra.mxu0 0.0
    %3775 = vmatprep.subr.mxu0 0.0
    %3776 = vmatpush1.xpose.msra.mxu0 0.0
    %3777 = vmatprep.subr.mxu0 0.0
    %3778 = vmatpush1.xpose.msra.mxu0 0.0
    %3779 = vmatprep.subr.mxu0 0.0
    %3780 = vmatpush1.xpose.msra.mxu0 0.0
    %3781 = vmatprep.subr.mxu0 0.0
    %3782 = vmatpush1.xpose.msra.mxu0 0.0
    %3783 = vmatprep.subr.mxu0 0.0
    %3784 = vmatpush1.xpose.msra.mxu0 0.0
    %3785 = vmatprep.subr.mxu0 0.0
    %3786 = vmatpush1.xpose.msra.mxu0 0.0
    %3787 = vmatprep.subr.mxu0 0.0
    %3788 = vmatpush1.xpose.msra.mxu0 0.0
    %3789 = vmatprep.subr.mxu0 0.0
    %3790 = vmatpush1.xpose.msra.mxu0 0.0
    %3791 = vmatprep.subr.mxu0 0.0
    %3792 = vmatpush1.xpose.msra.mxu0 0.0
    %3793 = vmatprep.subr.mxu0 0.0
    %3794 = vmatpush1.xpose.msra.mxu0 0.0
    %3795 = vmatprep.subr.mxu0 0.0
    %3796 = vmatpush1.xpose.msra.mxu0 0.0
    %3797 = vmatprep.subr.mxu0 0.0
    %3798 = vmatpush1.xpose.msra.mxu0 0.0
    %3799 = vmatprep.subr.mxu0 0.0
    %3800 = vmatpush1.xpose.msra.mxu0 0.0
    %3801 = vmatprep.subr.mxu0 0.0
    %3802 = vmatpush1.xpose.msra.mxu0 0.0
    %3803 = vmatprep.subr.mxu0 0.0
    %3804 = vmatpush1.xpose.msra.mxu0 0.0
    %3805 = vmatprep.subr.mxu0 0.0
    %3806 = vmatpush1.xpose.msra.mxu0 0.0
    %3807 = vmatprep.subr.mxu0 0.0
    %3808 = vmatpush1.xpose.msra.mxu0 0.0
    %3809 = vmatprep.subr.mxu0 0.0
    %3810 = vmatpush1.xpose.msra.mxu0 0.0
    %3811 = vmatprep.mubr.f32.mxu0 0.0
    %3812 = vmatmul.mubr.f32.gmra.mrb[0].mxu0 %v3727
    %v3813 = vpop.f32.mrb[0].mxu0
    %v3814 = vadd.f32 0.0, %v3813
    %v3815 = vpop.f32.mrb[0].mxu0
    %3816 = vmatprep.mubr.f32.mxu0 0.0
    %3817 = vmatmul.mubr.f32.gmra.mrb[0].mxu0 %v3730
    %v3818 = vpop.f32.mrb[0].mxu0
    %v3819 = vadd.f32 0.0, %v3818
    %v3820 = vpop.f32.mrb[0].mxu0
    %3821 = vmatprep.mubr.f32.mxu0 0.0
    %3822 = vmatmul.mubr.f32.gmra.mrb[0].mxu0 %v3733
    %v3823 = vpop.f32.mrb[0].mxu0
    %v3824 = vadd.f32 0.0, %v3823
    %v3825 = vpop.f32.mrb[0].mxu0
    %3826 = vmatprep.mubr.f32.mxu0 0.0
    %3827 = vmatmul.mubr.f32.gmra.mrb[0].mxu0 %v3736
    %v3828 = vpop.f32.mrb[0].mxu0
    %v3829 = vadd.f32 0.0, %v3828
    %v3830 = vpop.f32.mrb[0].mxu0
    %3831 = vmatprep.mubr.f32.mxu0 0.0
    %3832 = vmatmul.mubr.f32.gmra.mrb[0].mxu0 %v3739
    %v3833 = vpop.f32.mrb[0].mxu0
    %v3834 = vadd.f32 0.0, %v3833
    %v3835 = vpop.f32.mrb[0].mxu0
    %3836 = vmatprep.mubr.f32.mxu0 0.0
    %3837 = vmatmul.mubr.f32.gmra.mrb[0].mxu0 %v3742
    %v3838 = vpop.f32.mrb[0].mxu0
    %v3839 = vadd.f32 0.0, %v3838
    %v3840 = vpop.f32.mrb[0].mxu0
    %3841 = vdwg.mxu0
    %3842 = vxpose.xlu0.b32.start [1/16] %v3814, 128
    %3843 = vxpose.xlu0.b32.cont [2/16] %v3819, 128
    %3844 = vxpose.xlu0.b32.cont [3/16] %v3824, 128
    %3845 = vxpose.xlu0.b32.cont [4/16] 0.0, 128
    %3846 = vxpose.xlu0.b32.cont [5/16] 0.0, 128
    %3847 = vxpose.xlu0.b32.cont [6/16] 0.0, 128
    %3848 = vxpose.xlu0.b32.cont [7/16] 0.0, 128
    %3849 = vxpose.xlu0.b32.cont [8/16] 0.0, 128
    %3850 = vxpose.xlu0.b32.cont [9/16] 0.0, 128
    %3851 = vxpose.xlu0.b32.cont [10/16] 0.0, 128
    %3852 = vxpose.xlu0.b32.cont [11/16] 0.0, 128
    %3853 = vxpose.xlu0.b32.cont [12/16] 0.0, 128
    %3854 = vxpose.xlu0.b32.cont [13/16] 0.0, 128
    %3855 = vxpose.xlu0.b32.cont [14/16] 0.0, 128
    %3856 = vxpose.xlu0.b32.cont [15/16] 0.0, 128
    %3857 = vxpose.xlu0.b32.end [16/16] 0.0, 128
    %v3858 = vpop.trf.xlu0
    %v3859 = vpop.trf.xlu0
    %v3860 = vpop.trf.xlu0
    %v3861 = vpop.trf.xlu0
    %v3862 = vpop.trf.xlu0
    %v3863 = vpop.trf.xlu0
    %v3864 = vpop.trf.xlu0
    %v3865 = vpop.trf.xlu0
    %v3866 = vpop.trf.xlu0
    %v3867 = vpop.trf.xlu0
    %v3868 = vpop.trf.xlu0
    %v3869 = vpop.trf.xlu0
    %v3870 = vpop.trf.xlu0
    %v3871 = vpop.trf.xlu0
    %v3872 = vpop.trf.xlu0
    %v3873 = vpop.trf.xlu0
    %3874 = vxpose.xlu0.b32.start [1/16] %v3829, 128
    %3875 = vxpose.xlu0.b32.cont [2/16] %v3834, 128
    %3876 = vxpose.xlu0.b32.cont [3/16] %v3839, 128
    %3877 = vxpose.xlu0.b32.cont [4/16] 0.0, 128
    %3878 = vxpose.xlu0.b32.cont [5/16] 0.0, 128
    %3879 = vxpose.xlu0.b32.cont [6/16] 0.0, 128
    %3880 = vxpose.xlu0.b32.cont [7/16] 0.0, 128
    %3881 = vxpose.xlu0.b32.cont [8/16] 0.0, 128
    %3882 = vxpose.xlu0.b32.cont [9/16] 0.0, 128
    %3883 = vxpose.xlu0.b32.cont [10/16] 0.0, 128
    %3884 = vxpose.xlu0.b32.cont [11/16] 0.0, 128
    %3885 = vxpose.xlu0.b32.cont [12/16] 0.0, 128
    %3886 = vxpose.xlu0.b32.cont [13/16] 0.0, 128
    %3887 = vxpose.xlu0.b32.cont [14/16] 0.0, 128
    %3888 = vxpose.xlu0.b32.cont [15/16] 0.0, 128
    %3889 = vxpose.xlu0.b32.end [16/16] 0.0, 128
    %v3890 = vpop.trf.xlu0
    %v3891 = vpop.trf.xlu0
    %v3892 = vpop.trf.xlu0
    %v3893 = vpop.trf.xlu0
    %v3894 = vpop.trf.xlu0
    %v3895 = vpop.trf.xlu0
    %v3896 = vpop.trf.xlu0
    %v3897 = vpop.trf.xlu0
    %v3898 = vpop.trf.xlu0
    %v3899 = vpop.trf.xlu0
    %v3900 = vpop.trf.xlu0
    %v3901 = vpop.trf.xlu0
    %v3902 = vpop.trf.xlu0
    %v3903 = vpop.trf.xlu0
    %v3904 = vpop.trf.xlu0
    %v3905 = vpop.trf.xlu0
    %3907 = vset.pattern.permute.xlu0 0
    %3908 = vperm.xlu0 %3907, %v98
    %v3909 = vpop.permute.xlu0 %3908
    %v3911 = vadd.f32 %v3858, %v3909
    %v3912 = vadd.f32 %v3890, %v3909
    %v3913 = vsel %vm454, %v3911, 0.0
    %v3914 = vsel %vm454, %v3912, 0.0
    %v3915 = vadd.f32 %v3913, %v3914
    %3916 = vadd.xlane.f32.xlu0 %v3915
    %v3917 = vpop.xlane.xlu0 %3916
    %v3918 = vmul.f32 %v3917, 0.020833334
    %v3919 = vmul.f32 %v3911, %v3911
    %v3920 = vmul.f32 %v3912, %v3912
    %v3921 = vsel %vm454, %v3919, 0.0
    %v3922 = vsel %vm454, %v3920, 0.0
    %v3923 = vadd.f32 %v3921, %v3922
    %3924 = vadd.xlane.f32.xlu0 %v3923
    %v3925 = vpop.xlane.xlu0 %3924
    %v3926 = vmul.f32 %v3925, 0.020833334
    %v3927 = vmul.f32 %v3918, %v3918
    %v3928 = vsub.f32 %v3926, %v3927
    %v3929 = vmax.f32 %v3928, 0.0
    %v3930 = vadd.f32 %v3929, 1e-05
    %v3931 = vrsqrt.pop %v3930
    %v3932 = vmul.f32 %v3931, %v99
    %v3933 = vmul.f32 %v3918, %v3932
    %v3934 = vsub.f32 %v100, %v3933
    %3936 = vset.pattern.permute.xlu0 0
    %3937 = vperm.xlu0 %3936, %v3932
    %v3938 = vpop.permute.xlu0 %3937
    %v3940 = vmul.f32 %v3911, %v3938
    %v3941 = vmul.f32 %v3912, %v3938
    %3943 = vset.pattern.permute.xlu0 0
    %3944 = vperm.xlu0 %3943, %v3934
    %v3945 = vpop.permute.xlu0 %3944
    %v3947 = vadd.f32 %v3940, %v3945
    %v3948 = vadd.f32 %v3941, %v3945
    %v3949 = vadd.f32 %v3947, %v3362
    %v3950 = vadd.f32 %v3948, %v3364
    %v3951 = vmax.f32 %v3949, 0.0
    %v3952 = vmax.f32 %v3950, 0.0
    %3955 = vrot.lane.b32.xlu0 %v3951, 126
    %v3956 = vpop.permute.xlu0 %3955
    %3957 = vrot.lane.b32.xlu0 %v3952, 126
    %v3958 = vpop.permute.xlu0 %3957
    %3961 = vrot.lane.b32.xlu0 %v3951, 124
    %v3962 = vpop.permute.xlu0 %3961
    %3963 = vrot.lane.b32.xlu0 %v3952, 124
    %v3964 = vpop.permute.xlu0 %3963
    %3967 = vxpose.xlu0.b32.start [1/16] %v3951, 128
    %3968 = vxpose.xlu0.b32.cont [2/16] %v3956, 128
    %3969 = vxpose.xlu0.b32.cont [3/16] %v3962, 128
    %3970 = vxpose.xlu0.b32.cont [4/16] 0.0, 128
    %3971 = vxpose.xlu0.b32.cont [5/16] 0.0, 128
    %3972 = vxpose.xlu0.b32.cont [6/16] 0.0, 128
    %3973 = vxpose.xlu0.b32.cont [7/16] 0.0, 128
    %3974 = vxpose.xlu0.b32.cont [8/16] 0.0, 128
    %3975 = vxpose.xlu0.b32.cont [9/16] 0.0, 128
    %3976 = vxpose.xlu0.b32.cont [10/16] 0.0, 128
    %3977 = vxpose.xlu0.b32.cont [11/16] 0.0, 128
    %3978 = vxpose.xlu0.b32.cont [12/16] 0.0, 128
    %3979 = vxpose.xlu0.b32.cont [13/16] 0.0, 128
    %3980 = vxpose.xlu0.b32.cont [14/16] 0.0, 128
    %3981 = vxpose.xlu0.b32.cont [15/16] 0.0, 128
    %3982 = vxpose.xlu0.b32.end [16/16] 0.0, 128
    %v3983 = vpop.trf.xlu0
    %v3984 = vpop.trf.xlu0
    %v3985 = vpop.trf.xlu0
    %v3986 = vpop.trf.xlu0
    %v3987 = vpop.trf.xlu0
    %v3988 = vpop.trf.xlu0
    %v3989 = vpop.trf.xlu0
    %v3990 = vpop.trf.xlu0
    %v3991 = vpop.trf.xlu0
    %v3992 = vpop.trf.xlu0
    %v3993 = vpop.trf.xlu0
    %v3994 = vpop.trf.xlu0
    %v3995 = vpop.trf.xlu0
    %v3996 = vpop.trf.xlu0
    %v3997 = vpop.trf.xlu0
    %v3998 = vpop.trf.xlu0
    %3999 = vxpose.xlu0.b32.start [1/16] %v3952, 128
    %4000 = vxpose.xlu0.b32.cont [2/16] %v3958, 128
    %4001 = vxpose.xlu0.b32.cont [3/16] %v3964, 128
    %4002 = vxpose.xlu0.b32.cont [4/16] 0.0, 128
    %4003 = vxpose.xlu0.b32.cont [5/16] 0.0, 128
    %4004 = vxpose.xlu0.b32.cont [6/16] 0.0, 128
    %4005 = vxpose.xlu0.b32.cont [7/16] 0.0, 128
    %4006 = vxpose.xlu0.b32.cont [8/16] 0.0, 128
    %4007 = vxpose.xlu0.b32.cont [9/16] 0.0, 128
    %4008 = vxpose.xlu0.b32.cont [10/16] 0.0, 128
    %4009 = vxpose.xlu0.b32.cont [11/16] 0.0, 128
    %4010 = vxpose.xlu0.b32.cont [12/16] 0.0, 128
    %4011 = vxpose.xlu0.b32.cont [13/16] 0.0, 128
    %4012 = vxpose.xlu0.b32.cont [14/16] 0.0, 128
    %4013 = vxpose.xlu0.b32.cont [15/16] 0.0, 128
    %4014 = vxpose.xlu0.b32.end [16/16] 0.0, 128
    %v4015 = vpop.trf.xlu0
    %v4016 = vpop.trf.xlu0
    %v4017 = vpop.trf.xlu0
    %v4018 = vpop.trf.xlu0
    %v4019 = vpop.trf.xlu0
    %v4020 = vpop.trf.xlu0
    %v4021 = vpop.trf.xlu0
    %v4022 = vpop.trf.xlu0
    %v4023 = vpop.trf.xlu0
    %v4024 = vpop.trf.xlu0
    %v4025 = vpop.trf.xlu0
    %v4026 = vpop.trf.xlu0
    %v4027 = vpop.trf.xlu0
    %v4028 = vpop.trf.xlu0
    %v4029 = vpop.trf.xlu0
    %v4030 = vpop.trf.xlu0
    %v4037 = vcombine.high %v3983, %v3983
    %v4038 = vcombine.high %v3984, %v3984
    %v4039 = vcombine.high %v4015, %v4015
    %v4040 = vcombine.high %v4016, %v4016
    %v4041 = vcombine.low %v3983, %v4037
    %v4042 = vcombine.low %v3984, %v4038
    %v4043 = vcombine.low %v3985, %v4015
    %v4044 = vcombine.low %v4039, %v4016
    %v4045 = vcombine.low %v4040, %v4017
    %v4046 = vsel %vm454, %v4041, 0
    %v4048 = vsel %vm454, %v4042, 0
    %v4050 = vsel %vm454, %v4043, 0
    %v4052 = vsel %vm454, %v4044, 0
    %v4054 = vsel %vm454, %v4045, 0
    %v4057 = vsel %vm454, %v78, 0
    %4059 = vmatprep.subr.mxu0 0.0
    %4060 = vmatpush1.xpose.msra.mxu0 %v4057
    %4061 = vmatprep.subr.mxu0 0.0
    %4062 = vmatpush1.xpose.msra.mxu0 0.0
    %4063 = vmatprep.subr.mxu0 0.0
    %4064 = vmatpush1.xpose.msra.mxu0 0.0
    %4065 = vmatprep.subr.mxu0 0.0
    %4066 = vmatpush1.xpose.msra.mxu0 0.0
    %4067 = vmatprep.subr.mxu0 0.0
    %4068 = vmatpush1.xpose.msra.mxu0 0.0
    %4069 = vmatprep.subr.mxu0 0.0
    %4070 = vmatpush1.xpose.msra.mxu0 0.0
    %4071 = vmatprep.subr.mxu0 0.0
    %4072 = vmatpush1.xpose.msra.mxu0 0.0
    %4073 = vmatprep.subr.mxu0 0.0
    %4074 = vmatpush1.xpose.msra.mxu0 0.0
    %4075 = vmatprep.subr.mxu0 0.0
    %4076 = vmatpush1.xpose.msra.mxu0 0.0
    %4077 = vmatprep.subr.mxu0 0.0
    %4078 = vmatpush1.xpose.msra.mxu0 0.0
    %4079 = vmatprep.subr.mxu0 0.0
    %4080 = vmatpush1.xpose.msra.mxu0 0.0
    %4081 = vmatprep.subr.mxu0 0.0
    %4082 = vmatpush1.xpose.msra.mxu0 0.0
    %4083 = vmatprep.subr.mxu0 0.0
    %4084 = vmatpush1.xpose.msra.mxu0 0.0
    %4085 = vmatprep.subr.mxu0 0.0
    %4086 = vmatpush1.xpose.msra.mxu0 0.0
    %4087 = vmatprep.subr.mxu0 0.0
    %4088 = vmatpush1.xpose.msra.mxu0 0.0
    %4089 = vmatprep.subr.mxu0 0.0
    %4090 = vmatpush1.xpose.msra.mxu0 0.0
    %4091 = vmatprep.subr.mxu0 0.0
    %4092 = vmatpush1.xpose.msra.mxu0 0.0
    %4093 = vmatprep.subr.mxu0 0.0
    %4094 = vmatpush1.xpose.msra.mxu0 0.0
    %4095 = vmatprep.subr.mxu0 0.0
    %4096 = vmatpush1.xpose.msra.mxu0 0.0
    %4097 = vmatprep.subr.mxu0 0.0
    %4098 = vmatpush1.xpose.msra.mxu0 0.0
    %4099 = vmatprep.subr.mxu0 0.0
    %4100 = vmatpush1.xpose.msra.mxu0 0.0
    %4101 = vmatprep.subr.mxu0 0.0
    %4102 = vmatpush1.xpose.msra.mxu0 0.0
    %4103 = vmatprep.subr.mxu0 0.0
    %4104 = vmatpush1.xpose.msra.mxu0 0.0
    %4105 = vmatprep.subr.mxu0 0.0
    %4106 = vmatpush1.xpose.msra.mxu0 0.0
    %4107 = vmatprep.subr.mxu0 0.0
    %4108 = vmatpush1.xpose.msra.mxu0 0.0
    %4109 = vmatprep.subr.mxu0 0.0
    %4110 = vmatpush1.xpose.msra.mxu0 0.0
    %4111 = vmatprep.subr.mxu0 0.0
    %4112 = vmatpush1.xpose.msra.mxu0 0.0
    %4113 = vmatprep.subr.mxu0 0.0
    %4114 = vmatpush1.xpose.msra.mxu0 0.0
    %4115 = vmatprep.subr.mxu0 0.0
    %4116 = vmatpush1.xpose.msra.mxu0 0.0
    %4117 = vmatprep.subr.mxu0 0.0
    %4118 = vmatpush1.xpose.msra.mxu0 0.0
    %4119 = vmatprep.subr.mxu0 0.0
    %4120 = vmatpush1.xpose.msra.mxu0 0.0
    %4121 = vmatprep.subr.mxu0 0.0
    %4122 = vmatpush1.xpose.msra.mxu0 0.0
    %4123 = vmatprep.mubr.f32.mxu0 0.0
    %4124 = vmatmul.mubr.f32.gmra.mrb[0].mxu0 %v4046
    %v4125 = vpop.f32.mrb[0].mxu0
    %v4126 = vadd.f32 0.0, %v4125
    %v4127 = vpop.f32.mrb[0].mxu0
    %4128 = vmatprep.mubr.f32.mxu0 0.0
    %4129 = vmatmul.mubr.f32.gmra.mrb[0].mxu0 %v4048
    %v4130 = vpop.f32.mrb[0].mxu0
    %v4131 = vadd.f32 0.0, %v4130
    %v4132 = vpop.f32.mrb[0].mxu0
    %4133 = vmatprep.mubr.f32.mxu0 0.0
    %4134 = vmatmul.mubr.f32.gmra.mrb[0].mxu0 %v4050
    %v4135 = vpop.f32.mrb[0].mxu0
    %v4136 = vadd.f32 0.0, %v4135
    %v4137 = vpop.f32.mrb[0].mxu0
    %4138 = vmatprep.mubr.f32.mxu0 0.0
    %4139 = vmatmul.mubr.f32.gmra.mrb[0].mxu0 %v4052
    %v4140 = vpop.f32.mrb[0].mxu0
    %v4141 = vadd.f32 0.0, %v4140
    %v4142 = vpop.f32.mrb[0].mxu0
    %4143 = vmatprep.mubr.f32.mxu0 0.0
    %4144 = vmatmul.mubr.f32.gmra.mrb[0].mxu0 %v4054
    %v4145 = vpop.f32.mrb[0].mxu0
    %v4146 = vadd.f32 0.0, %v4145
    %v4147 = vpop.f32.mrb[0].mxu0
    %4148 = vdwg.mxu0
    %v4154 = vcombine.high %v4126, %v4126
    %v4155 = vcombine.high %v4131, %v4131
    %v4156 = vcombine.high %v4136, %v4136
    %v4157 = vcombine.high %v4141, %v4141
    %v4158 = vcombine.high %v4146, %v4146
    %v4160 = vcombine.low %v4126, %v4154
    %v4161 = vcombine.low %v4131, %v4155
    %v4162 = vcombine.low %v4156, %v4141
    %v4163 = vcombine.low %v4157, %v4146
    %4168 = vxpose.xlu0.b32.start [1/16] %v4160, 128
    %4169 = vxpose.xlu0.b32.cont [2/16] %v4161, 128
    %4170 = vxpose.xlu0.b32.cont [3/16] %v4136, 128
    %4171 = vxpose.xlu0.b32.cont [4/16] 0.0, 128
    %4172 = vxpose.xlu0.b32.cont [5/16] 0.0, 128
    %4173 = vxpose.xlu0.b32.cont [6/16] 0.0, 128
    %4174 = vxpose.xlu0.b32.cont [7/16] 0.0, 128
    %4175 = vxpose.xlu0.b32.cont [8/16] 0.0, 128
    %4176 = vxpose.xlu0.b32.cont [9/16] 0.0, 128
    %4177 = vxpose.xlu0.b32.cont [10/16] 0.0, 128
    %4178 = vxpose.xlu0.b32.cont [11/16] 0.0, 128
    %4179 = vxpose.xlu0.b32.cont [12/16] 0.0, 128
    %4180 = vxpose.xlu0.b32.cont [13/16] 0.0, 128
    %4181 = vxpose.xlu0.b32.cont [14/16] 0.0, 128
    %4182 = vxpose.xlu0.b32.cont [15/16] 0.0, 128
    %4183 = vxpose.xlu0.b32.end [16/16] 0.0, 128
    %v4184 = vpop.trf.xlu0
    %v4185 = vpop.trf.xlu0
    %v4186 = vpop.trf.xlu0
    %v4187 = vpop.trf.xlu0
    %v4188 = vpop.trf.xlu0
    %v4189 = vpop.trf.xlu0
    %v4190 = vpop.trf.xlu0
    %v4191 = vpop.trf.xlu0
    %v4192 = vpop.trf.xlu0
    %v4193 = vpop.trf.xlu0
    %v4194 = vpop.trf.xlu0
    %v4195 = vpop.trf.xlu0
    %v4196 = vpop.trf.xlu0
    %v4197 = vpop.trf.xlu0
    %v4198 = vpop.trf.xlu0
    %v4199 = vpop.trf.xlu0
    %4200 = vxpose.xlu0.b32.start [1/16] %v4162, 128
    %4201 = vxpose.xlu0.b32.cont [2/16] %v4163, 128
    %4202 = vxpose.xlu0.b32.cont [3/16] %v4158, 128
    %4203 = vxpose.xlu0.b32.cont [4/16] 0.0, 128
    %4204 = vxpose.xlu0.b32.cont [5/16] 0.0, 128
    %4205 = vxpose.xlu0.b32.cont [6/16] 0.0, 128
    %4206 = vxpose.xlu0.b32.cont [7/16] 0.0, 128
    %4207 = vxpose.xlu0.b32.cont [8/16] 0.0, 128
    %4208 = vxpose.xlu0.b32.cont [9/16] 0.0, 128
    %4209 = vxpose.xlu0.b32.cont [10/16] 0.0, 128
    %4210 = vxpose.xlu0.b32.cont [11/16] 0.0, 128
    %4211 = vxpose.xlu0.b32.cont [12/16] 0.0, 128
    %4212 = vxpose.xlu0.b32.cont [13/16] 0.0, 128
    %4213 = vxpose.xlu0.b32.cont [14/16] 0.0, 128
    %4214 = vxpose.xlu0.b32.cont [15/16] 0.0, 128
    %4215 = vxpose.xlu0.b32.end [16/16] 0.0, 128
    %v4216 = vpop.trf.xlu0
    %v4217 = vpop.trf.xlu0
    %v4218 = vpop.trf.xlu0
    %v4219 = vpop.trf.xlu0
    %v4220 = vpop.trf.xlu0
    %v4221 = vpop.trf.xlu0
    %v4222 = vpop.trf.xlu0
    %v4223 = vpop.trf.xlu0
    %v4224 = vpop.trf.xlu0
    %v4225 = vpop.trf.xlu0
    %v4226 = vpop.trf.xlu0
    %v4227 = vpop.trf.xlu0
    %v4228 = vpop.trf.xlu0
    %v4229 = vpop.trf.xlu0
    %v4230 = vpop.trf.xlu0
    %v4231 = vpop.trf.xlu0
    %4233 = vset.pattern.permute.xlu0 0
    %4234 = vperm.xlu0 %4233, %v101
    %v4235 = vpop.permute.xlu0 %4234
    %v4237 = vadd.f32 %v4184, %v4235
    %v4238 = vadd.f32 %v4216, %v4235
    %vm4239 = vcmask 162816
    %v4240 = vsel %vm4239, %v4237, 0.0
    %v4241 = vsel %vm4239, %v4238, 0.0
    %v4242 = vadd.f32 %v4240, %v4241
    %4243 = vadd.xlane.f32.xlu0 %v4242
    %v4244 = vpop.xlane.xlu0 %4243
    %v4245 = vmul.f32 %v4244, 0.025
    %v4246 = vmul.f32 %v4237, %v4237
    %v4247 = vmul.f32 %v4238, %v4238
    %v4248 = vsel %vm4239, %v4246, 0.0
    %v4249 = vsel %vm4239, %v4247, 0.0
    %v4250 = vadd.f32 %v4248, %v4249
    %4251 = vadd.xlane.f32.xlu0 %v4250
    %v4252 = vpop.xlane.xlu0 %4251
    %v4253 = vmul.f32 %v4252, 0.025
    %v4254 = vmul.f32 %v4245, %v4245
    %v4255 = vsub.f32 %v4253, %v4254
    %v4256 = vmax.f32 %v4255, 0.0
    %v4257 = vadd.f32 %v4256, 1e-05
    %v4258 = vrsqrt.pop %v4257
    %v4259 = vmul.f32 %v4258, %v102
    %v4260 = vmul.f32 %v4245, %v4259
    %v4261 = vsub.f32 %v103, %v4260
    %4263 = vset.pattern.permute.xlu0 0
    %4264 = vperm.xlu0 %4263, %v4259
    %v4265 = vpop.permute.xlu0 %4264
    %v4267 = vmul.f32 %v4237, %v4265
    %v4268 = vmul.f32 %v4238, %v4265
    %4270 = vset.pattern.permute.xlu0 0
    %4271 = vperm.xlu0 %4270, %v4261
    %v4272 = vpop.permute.xlu0 %4271
    %v4274 = vadd.f32 %v4267, %v4272
    %v4275 = vadd.f32 %v4268, %v4272
    %v4276 = vmax.f32 %v4274, 0.0
    %v4277 = vmax.f32 %v4275, 0.0
    %4278 = vxpose.xlu0.b32.start [1/16] %v4276, 128
    %4279 = vxpose.xlu0.b32.cont [2/16] 0.0, 128
    %4280 = vxpose.xlu0.b32.cont [3/16] 0.0, 128
    %4281 = vxpose.xlu0.b32.cont [4/16] 0.0, 128
    %4282 = vxpose.xlu0.b32.cont [5/16] 0.0, 128
    %4283 = vxpose.xlu0.b32.cont [6/16] 0.0, 128
    %4284 = vxpose.xlu0.b32.cont [7/16] 0.0, 128
    %4285 = vxpose.xlu0.b32.cont [8/16] 0.0, 128
    %4286 = vxpose.xlu0.b32.cont [9/16] 0.0, 128
    %4287 = vxpose.xlu0.b32.cont [10/16] 0.0, 128
    %4288 = vxpose.xlu0.b32.cont [11/16] 0.0, 128
    %4289 = vxpose.xlu0.b32.cont [12/16] 0.0, 128
    %4290 = vxpose.xlu0.b32.cont [13/16] 0.0, 128
    %4291 = vxpose.xlu0.b32.cont [14/16] 0.0, 128
    %4292 = vxpose.xlu0.b32.cont [15/16] 0.0, 128
    %4293 = vxpose.xlu0.b32.end [16/16] 0.0, 128
    %v4294 = vpop.trf.xlu0
    %v4295 = vpop.trf.xlu0
    %v4296 = vpop.trf.xlu0
    %v4297 = vpop.trf.xlu0
    %v4298 = vpop.trf.xlu0
    %v4299 = vpop.trf.xlu0
    %v4300 = vpop.trf.xlu0
    %v4301 = vpop.trf.xlu0
    %v4302 = vpop.trf.xlu0
    %v4303 = vpop.trf.xlu0
    %v4304 = vpop.trf.xlu0
    %v4305 = vpop.trf.xlu0
    %v4306 = vpop.trf.xlu0
    %v4307 = vpop.trf.xlu0
    %v4308 = vpop.trf.xlu0
    %v4309 = vpop.trf.xlu0
    %4310 = vxpose.xlu0.b32.start [1/16] %v4277, 128
    %4311 = vxpose.xlu0.b32.cont [2/16] 0.0, 128
    %4312 = vxpose.xlu0.b32.cont [3/16] 0.0, 128
    %4313 = vxpose.xlu0.b32.cont [4/16] 0.0, 128
    %4314 = vxpose.xlu0.b32.cont [5/16] 0.0, 128
    %4315 = vxpose.xlu0.b32.cont [6/16] 0.0, 128
    %4316 = vxpose.xlu0.b32.cont [7/16] 0.0, 128
    %4317 = vxpose.xlu0.b32.cont [8/16] 0.0, 128
    %4318 = vxpose.xlu0.b32.cont [9/16] 0.0, 128
    %4319 = vxpose.xlu0.b32.cont [10/16] 0.0, 128
    %4320 = vxpose.xlu0.b32.cont [11/16] 0.0, 128
    %4321 = vxpose.xlu0.b32.cont [12/16] 0.0, 128
    %4322 = vxpose.xlu0.b32.cont [13/16] 0.0, 128
    %4323 = vxpose.xlu0.b32.cont [14/16] 0.0, 128
    %4324 = vxpose.xlu0.b32.cont [15/16] 0.0, 128
    %4325 = vxpose.xlu0.b32.end [16/16] 0.0, 128
    %v4326 = vpop.trf.xlu0
    %v4327 = vpop.trf.xlu0
    %v4328 = vpop.trf.xlu0
    %v4329 = vpop.trf.xlu0
    %v4330 = vpop.trf.xlu0
    %v4331 = vpop.trf.xlu0
    %v4332 = vpop.trf.xlu0
    %v4333 = vpop.trf.xlu0
    %v4334 = vpop.trf.xlu0
    %v4335 = vpop.trf.xlu0
    %v4336 = vpop.trf.xlu0
    %v4337 = vpop.trf.xlu0
    %v4338 = vpop.trf.xlu0
    %v4339 = vpop.trf.xlu0
    %v4340 = vpop.trf.xlu0
    %v4341 = vpop.trf.xlu0
    %v4348 = vcombine.high %v4294, %v4294
    %v4349 = vcombine.high %v4295, %v4295
    %v4350 = vcombine.high %v4326, %v4326
    %v4351 = vcombine.high %v4327, %v4327
    %v4352 = vcombine.low %v4294, %v4348
    %v4353 = vcombine.low %v4295, %v4349
    %v4354 = vcombine.low %v4296, %v4326
    %v4355 = vcombine.low %v4350, %v4327
    %v4356 = vcombine.low %v4351, %v4328
    %v4357 = vsel %vm1299, %v4352, 0
    %v4359 = vsel %vm1299, %v4353, 0
    %v4361 = vsel %vm1299, %v4354, 0
    %v4363 = vsel %vm1299, %v4355, 0
    %v4365 = vsel %vm1299, %v4356, 0
    %v4368 = vsel %vm1299, %v82, 0
    %4370 = vmatprep.subr.mxu0 0.0
    %4371 = vmatpush1.xpose.msra.mxu0 %v4368
    %4372 = vmatprep.subr.mxu0 0.0
    %4373 = vmatpush1.xpose.msra.mxu0 0.0
    %4374 = vmatprep.subr.mxu0 0.0
    %4375 = vmatpush1.xpose.msra.mxu0 0.0
    %4376 = vmatprep.subr.mxu0 0.0
    %4377 = vmatpush1.xpose.msra.mxu0 0.0
    %4378 = vmatprep.subr.mxu0 0.0
    %4379 = vmatpush1.xpose.msra.mxu0 0.0
    %4380 = vmatprep.subr.mxu0 0.0
    %4381 = vmatpush1.xpose.msra.mxu0 0.0
    %4382 = vmatprep.subr.mxu0 0.0
    %4383 = vmatpush1.xpose.msra.mxu0 0.0
    %4384 = vmatprep.subr.mxu0 0.0
    %4385 = vmatpush1.xpose.msra.mxu0 0.0
    %4386 = vmatprep.subr.mxu0 0.0
    %4387 = vmatpush1.xpose.msra.mxu0 0.0
    %4388 = vmatprep.subr.mxu0 0.0
    %4389 = vmatpush1.xpose.msra.mxu0 0.0
    %4390 = vmatprep.subr.mxu0 0.0
    %4391 = vmatpush1.xpose.msra.mxu0 0.0
    %4392 = vmatprep.subr.mxu0 0.0
    %4393 = vmatpush1.xpose.msra.mxu0 0.0
    %4394 = vmatprep.subr.mxu0 0.0
    %4395 = vmatpush1.xpose.msra.mxu0 0.0
    %4396 = vmatprep.subr.mxu0 0.0
    %4397 = vmatpush1.xpose.msra.mxu0 0.0
    %4398 = vmatprep.subr.mxu0 0.0
    %4399 = vmatpush1.xpose.msra.mxu0 0.0
    %4400 = vmatprep.subr.mxu0 0.0
    %4401 = vmatpush1.xpose.msra.mxu0 0.0
    %4402 = vmatprep.subr.mxu0 0.0
    %4403 = vmatpush1.xpose.msra.mxu0 0.0
    %4404 = vmatprep.subr.mxu0 0.0
    %4405 = vmatpush1.xpose.msra.mxu0 0.0
    %4406 = vmatprep.subr.mxu0 0.0
    %4407 = vmatpush1.xpose.msra.mxu0 0.0
    %4408 = vmatprep.subr.mxu0 0.0
    %4409 = vmatpush1.xpose.msra.mxu0 0.0
    %4410 = vmatprep.subr.mxu0 0.0
    %4411 = vmatpush1.xpose.msra.mxu0 0.0
    %4412 = vmatprep.subr.mxu0 0.0
    %4413 = vmatpush1.xpose.msra.mxu0 0.0
    %4414 = vmatprep.subr.mxu0 0.0
    %4415 = vmatpush1.xpose.msra.mxu0 0.0
    %4416 = vmatprep.subr.mxu0 0.0
    %4417 = vmatpush1.xpose.msra.mxu0 0.0
    %4418 = vmatprep.subr.mxu0 0.0
    %4419 = vmatpush1.xpose.msra.mxu0 0.0
    %4420 = vmatprep.subr.mxu0 0.0
    %4421 = vmatpush1.xpose.msra.mxu0 0.0
    %4422 = vmatprep.subr.mxu0 0.0
    %4423 = vmatpush1.xpose.msra.mxu0 0.0
    %4424 = vmatprep.subr.mxu0 0.0
    %4425 = vmatpush1.xpose.msra.mxu0 0.0
    %4426 = vmatprep.subr.mxu0 0.0
    %4427 = vmatpush1.xpose.msra.mxu0 0.0
    %4428 = vmatprep.subr.mxu0 0.0
    %4429 = vmatpush1.xpose.msra.mxu0 0.0
    %4430 = vmatprep.subr.mxu0 0.0
    %4431 = vmatpush1.xpose.msra.mxu0 0.0
    %4432 = vmatprep.subr.mxu0 0.0
    %4433 = vmatpush1.xpose.msra.mxu0 0.0
    %4434 = vmatprep.mubr.f32.mxu0 0.0
    %4435 = vmatmul.mubr.f32.gmra.mrb[0].mxu0 %v4357
    %v4436 = vpop.f32.mrb[0].mxu0
    %v4437 = vadd.f32 0.0, %v4436
    %v4438 = vpop.f32.mrb[0].mxu0
    %4439 = vmatprep.mubr.f32.mxu0 0.0
    %4440 = vmatmul.mubr.f32.gmra.mrb[0].mxu0 %v4359
    %v4441 = vpop.f32.mrb[0].mxu0
    %v4442 = vadd.f32 0.0, %v4441
    %v4443 = vpop.f32.mrb[0].mxu0
    %4444 = vmatprep.mubr.f32.mxu0 0.0
    %4445 = vmatmul.mubr.f32.gmra.mrb[0].mxu0 %v4361
    %v4446 = vpop.f32.mrb[0].mxu0
    %v4447 = vadd.f32 0.0, %v4446
    %v4448 = vpop.f32.mrb[0].mxu0
    %4449 = vmatprep.mubr.f32.mxu0 0.0
    %4450 = vmatmul.mubr.f32.gmra.mrb[0].mxu0 %v4363
    %v4451 = vpop.f32.mrb[0].mxu0
    %v4452 = vadd.f32 0.0, %v4451
    %v4453 = vpop.f32.mrb[0].mxu0
    %4454 = vmatprep.mubr.f32.mxu0 0.0
    %4455 = vmatmul.mubr.f32.gmra.mrb[0].mxu0 %v4365
    %v4456 = vpop.f32.mrb[0].mxu0
    %v4457 = vadd.f32 0.0, %v4456
    %v4458 = vpop.f32.mrb[0].mxu0
    %4459 = vdwg.mxu0
    %v4465 = vcombine.high %v4437, %v4437
    %v4466 = vcombine.high %v4442, %v4442
    %v4467 = vcombine.high %v4447, %v4447
    %v4468 = vcombine.high %v4452, %v4452
    %v4469 = vcombine.high %v4457, %v4457
    %v4471 = vcombine.low %v4437, %v4465
    %v4472 = vcombine.low %v4442, %v4466
    %v4473 = vcombine.low %v4467, %v4452
    %v4474 = vcombine.low %v4468, %v4457
    %4479 = vxpose.xlu0.b32.start [1/16] %v4471, 128
    %4480 = vxpose.xlu0.b32.cont [2/16] %v4472, 128
    %4481 = vxpose.xlu0.b32.cont [3/16] %v4447, 128
    %4482 = vxpose.xlu0.b32.cont [4/16] 0.0, 128
    %4483 = vxpose.xlu0.b32.cont [5/16] 0.0, 128
    %4484 = vxpose.xlu0.b32.cont [6/16] 0.0, 128
    %4485 = vxpose.xlu0.b32.cont [7/16] 0.0, 128
    %4486 = vxpose.xlu0.b32.cont [8/16] 0.0, 128
    %4487 = vxpose.xlu0.b32.cont [9/16] 0.0, 128
    %4488 = vxpose.xlu0.b32.cont [10/16] 0.0, 128
    %4489 = vxpose.xlu0.b32.cont [11/16] 0.0, 128
    %4490 = vxpose.xlu0.b32.cont [12/16] 0.0, 128
    %4491 = vxpose.xlu0.b32.cont [13/16] 0.0, 128
    %4492 = vxpose.xlu0.b32.cont [14/16] 0.0, 128
    %4493 = vxpose.xlu0.b32.cont [15/16] 0.0, 128
    %4494 = vxpose.xlu0.b32.end [16/16] 0.0, 128
    %v4495 = vpop.trf.xlu0
    %v4496 = vpop.trf.xlu0
    %v4497 = vpop.trf.xlu0
    %v4498 = vpop.trf.xlu0
    %v4499 = vpop.trf.xlu0
    %v4500 = vpop.trf.xlu0
    %v4501 = vpop.trf.xlu0
    %v4502 = vpop.trf.xlu0
    %v4503 = vpop.trf.xlu0
    %v4504 = vpop.trf.xlu0
    %v4505 = vpop.trf.xlu0
    %v4506 = vpop.trf.xlu0
    %v4507 = vpop.trf.xlu0
    %v4508 = vpop.trf.xlu0
    %v4509 = vpop.trf.xlu0
    %v4510 = vpop.trf.xlu0
    %4511 = vxpose.xlu0.b32.start [1/16] %v4473, 128
    %4512 = vxpose.xlu0.b32.cont [2/16] %v4474, 128
    %4513 = vxpose.xlu0.b32.cont [3/16] %v4469, 128
    %4514 = vxpose.xlu0.b32.cont [4/16] 0.0, 128
    %4515 = vxpose.xlu0.b32.cont [5/16] 0.0, 128
    %4516 = vxpose.xlu0.b32.cont [6/16] 0.0, 128
    %4517 = vxpose.xlu0.b32.cont [7/16] 0.0, 128
    %4518 = vxpose.xlu0.b32.cont [8/16] 0.0, 128
    %4519 = vxpose.xlu0.b32.cont [9/16] 0.0, 128
    %4520 = vxpose.xlu0.b32.cont [10/16] 0.0, 128
    %4521 = vxpose.xlu0.b32.cont [11/16] 0.0, 128
    %4522 = vxpose.xlu0.b32.cont [12/16] 0.0, 128
    %4523 = vxpose.xlu0.b32.cont [13/16] 0.0, 128
    %4524 = vxpose.xlu0.b32.cont [14/16] 0.0, 128
    %4525 = vxpose.xlu0.b32.cont [15/16] 0.0, 128
    %4526 = vxpose.xlu0.b32.end [16/16] 0.0, 128
    %v4527 = vpop.trf.xlu0
    %v4528 = vpop.trf.xlu0
    %v4529 = vpop.trf.xlu0
    %v4530 = vpop.trf.xlu0
    %v4531 = vpop.trf.xlu0
    %v4532 = vpop.trf.xlu0
    %v4533 = vpop.trf.xlu0
    %v4534 = vpop.trf.xlu0
    %v4535 = vpop.trf.xlu0
    %v4536 = vpop.trf.xlu0
    %v4537 = vpop.trf.xlu0
    %v4538 = vpop.trf.xlu0
    %v4539 = vpop.trf.xlu0
    %v4540 = vpop.trf.xlu0
    %v4541 = vpop.trf.xlu0
    %v4542 = vpop.trf.xlu0
    %4544 = vset.pattern.permute.xlu0 0
    %4545 = vperm.xlu0 %4544, %v104
    %v4546 = vpop.permute.xlu0 %4545
    %v4548 = vadd.f32 %v4495, %v4546
    %v4549 = vadd.f32 %v4527, %v4546
    %v4550 = vsel %vm4239, %v4548, 0.0
    %v4551 = vsel %vm4239, %v4549, 0.0
    %v4552 = vadd.f32 %v4550, %v4551
    %4553 = vadd.xlane.f32.xlu0 %v4552
    %v4554 = vpop.xlane.xlu0 %4553
    %v4555 = vmul.f32 %v4554, 0.025
    %v4556 = vmul.f32 %v4548, %v4548
    %v4557 = vmul.f32 %v4549, %v4549
    %v4558 = vsel %vm4239, %v4556, 0.0
    %v4559 = vsel %vm4239, %v4557, 0.0
    %v4560 = vadd.f32 %v4558, %v4559
    %4561 = vadd.xlane.f32.xlu0 %v4560
    %v4562 = vpop.xlane.xlu0 %4561
    %v4563 = vmul.f32 %v4562, 0.025
    %v4564 = vmul.f32 %v4555, %v4555
    %v4565 = vsub.f32 %v4563, %v4564
    %v4566 = vmax.f32 %v4565, 0.0
    %v4567 = vadd.f32 %v4566, 1e-05
    %v4568 = vrsqrt.pop %v4567
    %v4569 = vmul.f32 %v4568, %v105
    %v4570 = vmul.f32 %v4555, %v4569
    %v4571 = vsub.f32 %v106, %v4570
    %4573 = vset.pattern.permute.xlu0 0
    %4574 = vperm.xlu0 %4573, %v4569
    %v4575 = vpop.permute.xlu0 %4574
    %v4577 = vmul.f32 %v4548, %v4575
    %v4578 = vmul.f32 %v4549, %v4575
    %4580 = vset.pattern.permute.xlu0 0
    %4581 = vperm.xlu0 %4580, %v4571
    %v4582 = vpop.permute.xlu0 %4581
    %v4584 = vadd.f32 %v4577, %v4582
    %v4585 = vadd.f32 %v4578, %v4582
    %v4586 = vadd.f32 %v4584, %v3956
    %v4587 = vadd.f32 %v4585, %v3958
    %v4588 = vmax.f32 %v4586, 0.0
    %v4589 = vmax.f32 %v4587, 0.0
    %4590 = vst.msk [vmem:[#allocation10] sm:$0xff] %vm4239, %v4588
    %4591 = vst.msk [vmem:[#allocation10 + $0x8] sm:$0xff] %vm4239, %v4589
    // Predicated region
    $region34: #{_lambda_.1} parent=1 // pred_check
      _
    $region35: #{_lambda_.1} parent=1 // pred_check_branch
      %4593 = sbr.rel (0) target = $region37
    $region36: #{_lambda_.1} parent=1 // pred_region
      %s4595 = ssub.s32 256, 256
      %4596 = vsyncadd [#allocation4], %s4595
      %s4597 = sshll.u32 [#allocation10], 4
      %s4598 = int_to_ptr.vmem [resolvable:$true] %s4597
      %4603 = dma.vmem_to_hbm [thread:$0]  %s4598, 256, %s4, [#allocation4], 128, 128, 8
    $region37: #{_lambda_.1} parent=1 // pred_fallthru
      _
    // Predicated region
    $region38: #{_lambda_.1} parent=1 // pred_check
      _
    $region39: #{_lambda_.1} parent=1 // pred_check_branch
      %4605 = sbr.rel (0) target = $region41
    $region40: #{_lambda_.1} parent=1 // pred_region
      %4606 = dma.done [#allocation4], 256
    $region41: #{_lambda_.1} parent=1 // pred_fallthru
      _
    %4607 = vsyncpa [#allocation3], 1
    %4608 = vsyncpa [#allocation6], 1
    %4609 = vsyncpa [#allocation9], 1
    %4610 = vsyncpa [#allocation4], 1

</llo_original>
